<compile_context>
chip_gen: v5e
topology: v5e:2x2
jax: 0.10.0
libtpu: 0.0.40
codegen_flags: <defaults>
</compile_context>

<pallas_src>
import functools
import math

import jax
import jax.numpy as jnp
import numpy as np
from jax.experimental import pallas as pl
from jax.experimental.pallas import tpu as pltpu


# ----------------------------------------------------------------------------- kernel
def distance_block_kernel(dist_ref, kT_ref, v_ref, nbr_ref,
                          wq_ref, bq_ref, wo_ref, bo_ref,
                          w1_ref, b1_ref, w2_ref, b2_ref, w3_ref, b3_ref,
                          wp_ref, bp_ref,
                          out_ref, o_scratch, *, heads, attention_size):
    A = attention_size
    tn = dist_ref.shape[0]
    n_nodes = kT_ref.shape[1]
    n_nbrs = nbr_ref.shape[1]

    dist = dist_ref[...]                                   # (TN, D) f32
    dist_bf = dist.astype(jnp.bfloat16)

    # Neighbourhood hit mask, built ONCE per tile from the (TN, K) index list.
    # Kept as a boolean across the head loop (tiny live footprint vs an f32 bias).
    col = jax.lax.broadcasted_iota(jnp.int32, (tn, n_nodes), 1)
    nbr = nbr_ref[...]                                     # (TN, K) int32
    hit = col == nbr[:, 0:1]
    for kk in range(1, n_nbrs):
        hit = hit | (col == nbr[:, kk:kk + 1])             # (TN, N) bool

    # Fused Q projection for all heads at once (scale already folded into wq/bq).
    qall = (jnp.dot(dist_bf, wq_ref[...], preferred_element_type=jnp.float32)
            + bq_ref[...]).astype(jnp.bfloat16)            # (TN, HA)

    # Static unroll over heads; every slice is 128-lane/sublane aligned (A = 128).
    for h in range(heads):
        sl = slice(h * A, (h + 1) * A)
        # Scores: K is pre-transposed to (HA, N), so this is a plain MXU matmul.
        s = jnp.dot(qall[:, sl], kT_ref[sl, :],
                    preferred_element_type=jnp.float32)    # (TN, N) f32
        s = jnp.where(hit, s, -1e30)
        s = s - jnp.max(s, axis=-1, keepdims=True)
        p = jnp.exp(s)
        p = p * pl.reciprocal(jnp.sum(p, axis=-1, keepdims=True), approx=True)

        # Stash this head's context block; one deep wo matmul happens after the loop.
        o_scratch[:, sl] = jnp.dot(p.astype(jnp.bfloat16), v_ref[:, sl],
                                   preferred_element_type=jnp.float32
                                   ).astype(jnp.bfloat16)  # (TN, A)

    # Single output projection: (TN, HA) @ (HA, D) with contraction depth 1024.
    attn = (jnp.dot(o_scratch[...], wo_ref[...],
                    preferred_element_type=jnp.float32) + bo_ref[...])   # (TN, D)

    out1 = dist + attn                                     # residual 1 (dropout = identity)

    # Local MLP: depth=3 hidden ReLU layers + output linear.
    h1 = jnp.maximum(jnp.dot(out1.astype(jnp.bfloat16), w1_ref[...],
                             preferred_element_type=jnp.float32) + b1_ref[...], 0.0)
    h2 = jnp.maximum(jnp.dot(h1.astype(jnp.bfloat16), w2_ref[...],
                             preferred_element_type=jnp.float32) + b2_ref[...], 0.0)
    h3 = jnp.maximum(jnp.dot(h2.astype(jnp.bfloat16), w3_ref[...],
                             preferred_element_type=jnp.float32) + b3_ref[...], 0.0)
    mlp = jnp.dot(h3.astype(jnp.bfloat16), wp_ref[...],
                  preferred_element_type=jnp.float32) + bp_ref[...]

    out_ref[...] = (out1 + mlp).astype(out_ref.dtype)      # residual 2


# ----------------------------------------------------------------------------- wrapper
def distance_block(features, distance_features, neighbours, params, *,
                   heads, attention_size, tile_n=None):
    N, F = features.shape
    _, D = distance_features.shape
    K = neighbours.shape[1]
    A = attention_size
    HA = heads * A
    Hm = params["w2"].shape[0]

    if tile_n is None:
        # At least 2 row tiles when N allows, so a v7x chip's 2nd TensorCore gets work
        # (dimension_semantics=("parallel",) shards grid steps across cores). Cap rows
        # per MXU pass at 256.
        tile_n = min(N, 256)
        if N >= 16 and (N // 2) % 8 == 0:
            tile_n = min(N // 2, 256)
    assert N % tile_n == 0 and tile_n % 8 == 0

    # Hoisted K/V projections (contraction dim F is tiny; one XLA matmul is fine).
    # K is pre-transposed to (HA, N) so the in-kernel score matmul needs no XLU transpose.
    k = features @ params["wk"] + params["bk"]                        # (N, HA) f32
    v = features @ params["wv"] + params["bv"]                        # (N, HA) f32
    kT = k.T.astype(jnp.bfloat16)                                     # (HA, N) bf16
    v_bf = v.astype(jnp.bfloat16)                                     # (N, HA) bf16

    # Fold the 1/sqrt(A) softmax scale into the query projection.
    scale = 1.0 / math.sqrt(A)
    wq_s = (params["wq"] * scale).astype(jnp.bfloat16)
    bq_s = params["bq"] * scale

    bf = lambda w: w.astype(jnp.bfloat16)
    weights = [wq_s, bq_s,
               bf(params["wo"]), params["bo"],
               bf(params["w1"]), params["b1"],
               bf(params["w2"]), params["b2"],
               bf(params["w3"]), params["b3"],
               bf(params["wp"]), params["bp"]]

    full = lambda i: (0, 0)
    row = lambda i: (i, 0)

    kernel = functools.partial(distance_block_kernel,
                               heads=heads, attention_size=attention_size)

    flops = (2 * N * D * HA                                  # q projection
             + 2 * 2 * N * N * HA                            # QK^T + P@V (all heads)
             + 2 * N * HA * D                                # output projection
             + 2 * N * (D * Hm + 2 * Hm * Hm + Hm * D))      # MLP
    bytes_accessed = (kT.size * 2 + v_bf.size * 2 + distance_features.size * 4
                      + neighbours.size * 4 + N * D * 4
                      + sum(int(w.size) * w.dtype.itemsize for w in weights))
    cost = pl.CostEstimate(flops=int(flops),
                           transcendentals=int(heads * N * N),
                           bytes_accessed=int(bytes_accessed))

    return pl.pallas_call(
        kernel,
        out_shape=jax.ShapeDtypeStruct((N, D), jnp.float32),
        grid=(N // tile_n,),
        in_specs=[pl.BlockSpec((tile_n, D), row),            # distance_features tile
                  pl.BlockSpec((HA, N), full),               # K^T (bf16, resident)
                  pl.BlockSpec((N, HA), full),               # V   (bf16, resident)
                  pl.BlockSpec((tile_n, K), row)]            # neighbour indices tile
                 + [pl.BlockSpec(w.shape, full) for w in weights],
        out_specs=pl.BlockSpec((tile_n, D), row),
        scratch_shapes=[pltpu.VMEM((tile_n, HA), jnp.bfloat16)],   # per-head P@V blocks
        compiler_params=pltpu.CompilerParams(dimension_semantics=("parallel",)),
        cost_estimate=cost,
    )(distance_features, kT, v_bf, neighbours, *weights)


# ----------------------------------------------------------------------------- params
def init_params(key, size, distance_size, attention_size, heads, hidden_size):
    F = size + 1
    D = distance_size
    HA = heads * attention_size
    Hm = hidden_size

    def linear(k, fan_in, fan_out):
        kw, kb = jax.random.split(k)
        bound = 1.0 / math.sqrt(fan_in)
        w = jax.random.uniform(kw, (fan_in, fan_out), jnp.float32, -bound, bound)
        b = jax.random.uniform(kb, (1, fan_out), jnp.float32, -bound, bound)
        return w, b

    keys = jax.random.split(key, 8)
    p = {}
    p["wq"], p["bq"] = linear(keys[0], D, HA)
    p["wk"], p["bk"] = linear(keys[1], F, HA)
    p["wv"], p["bv"] = linear(keys[2], F, HA)
    p["wo"], p["bo"] = linear(keys[3], HA, D)
    p["w1"], p["b1"] = linear(keys[4], D, Hm)
    p["w2"], p["b2"] = linear(keys[5], Hm, Hm)
    p["w3"], p["b3"] = linear(keys[6], Hm, Hm)
    p["wp"], p["bp"] = linear(keys[7], Hm, D)
    return p


# ----------------------------------------------------------------------------- reference
def distance_block_ref(features, distance_features, neighbours, params, *,
                       heads, attention_size):
    N = features.shape[0]
    mask = jnp.zeros((N, N), jnp.float32)
    mask = mask.at[jnp.arange(N)[:, None], neighbours].set(1.0)

    q = distance_features @ params["wq"] + params["bq"]
    k = features @ params["wk"] + params["bk"]
    v = features @ params["wv"] + params["bv"]
    A = attention_size
    outs = []
    for h in range(heads):
        sl = slice(h * A, (h + 1) * A)
        s = (q[:, sl] @ k[:, sl].T) / math.sqrt(A)
        s = jnp.where(mask > 0, s, -1e30)
        p = jax.nn.softmax(s, axis=-1)
        outs.append(p @ v[:, sl])
    o = jnp.concatenate(outs, axis=-1)
    attn = o @ params["wo"] + params["bo"]
    out1 = distance_features + attn
    h1 = jax.nn.relu(out1 @ params["w1"] + params["b1"])
    h2 = jax.nn.relu(h1 @ params["w2"] + params["b2"])
    h3 = jax.nn.relu(h2 @ params["w3"] + params["b3"])
    return out1 + h3 @ params["wp"] + params["bp"]


# ----------------------------------------------------------------------------- main
if __name__ == "__main__":
    size = 4              # -> features have size + 1 = 5 channels
    distance_size = 8
    attention_size = 128  # as passed in DistanceBlock.__init__
    heads = 8             # hardwired in DistanceBlock.__init__
    hidden_size = 128
    N = 64                # number of nodes
    K = 8                 # neighbours per node (every node has neighbours -> no empty rows)

    key = jax.random.PRNGKey(0)
    k_feat, k_dist, k_par = jax.random.split(key, 3)

    features = jax.random.normal(k_feat, (N, size + 1), jnp.float32)
    distance_features = jax.random.normal(k_dist, (N, distance_size), jnp.float32)
    # deterministic ring-style neighbourhood structure: node i attends to i, i+1, ..., i+K-1
    neighbours = (jnp.arange(N)[:, None] + jnp.arange(K)[None, :]) % N
    neighbours = neighbours.astype(jnp.int32)

    params = init_params(k_par, size, distance_size, attention_size, heads, hidden_size)

    out = distance_block(features, distance_features, neighbours, params,
                         heads=heads, attention_size=attention_size)
    out = jax.block_until_ready(out)

    ref = distance_block_ref(features, distance_features, neighbours, params,
                             heads=heads, attention_size=attention_size)
    # bf16 MXU inputs (f32 accumulation) + approx reciprocal -> relaxed tolerance vs f32 ref
    np.testing.assert_allclose(np.asarray(out), np.asarray(ref), rtol=5e-2, atol=5e-2)

    print("KERNEL_OK")
</pallas_src>

<mosaic_0001>
module attributes {stable_mosaic.version = 11 : i64} {
  func.func @distance_block_kernel(%arg0: i32, %arg1: memref<32x8xf32, #tpu.memory_space<vmem>>, %arg2: memref<1024x64xbf16, #tpu.memory_space<vmem>>, %arg3: memref<64x1024xbf16, #tpu.memory_space<vmem>>, %arg4: memref<32x8xi32, #tpu.memory_space<vmem>>, %arg5: memref<8x1024xbf16, #tpu.memory_space<vmem>>, %arg6: memref<1x1024xf32, #tpu.memory_space<vmem>>, %arg7: memref<1024x8xbf16, #tpu.memory_space<vmem>>, %arg8: memref<1x8xf32, #tpu.memory_space<vmem>>, %arg9: memref<8x128xbf16, #tpu.memory_space<vmem>>, %arg10: memref<1x128xf32, #tpu.memory_space<vmem>>, %arg11: memref<128x128xbf16, #tpu.memory_space<vmem>>, %arg12: memref<1x128xf32, #tpu.memory_space<vmem>>, %arg13: memref<128x128xbf16, #tpu.memory_space<vmem>>, %arg14: memref<1x128xf32, #tpu.memory_space<vmem>>, %arg15: memref<128x8xbf16, #tpu.memory_space<vmem>>, %arg16: memref<1x8xf32, #tpu.memory_space<vmem>>, %arg17: memref<32x8xf32, #tpu.memory_space<vmem>>, %arg18: memref<32x1024xbf16, #tpu.memory_space<vmem>>) attributes {dimension_semantics = [#tpu.dimension_semantics<parallel>], iteration_bounds = array<i64: 2>, scalar_prefetch = 0 : i64, scratch_operands = 1 : i64, tpu.core_type = #tpu.core_type<tc>, window_params = [{transform_indices = @transform_0, window_bounds = array<i64: 32, 8>}, {pipeline_mode = #tpu.pipeline_mode<synchronous>, transform_indices = @transform_1, window_bounds = array<i64: 1024, 64>}, {pipeline_mode = #tpu.pipeline_mode<synchronous>, transform_indices = @transform_2, window_bounds = array<i64: 64, 1024>}, {transform_indices = @transform_3, window_bounds = array<i64: 32, 8>}, {pipeline_mode = #tpu.pipeline_mode<synchronous>, transform_indices = @transform_4, window_bounds = array<i64: 8, 1024>}, {pipeline_mode = #tpu.pipeline_mode<synchronous>, transform_indices = @transform_5, window_bounds = array<i64: 1, 1024>}, {pipeline_mode = #tpu.pipeline_mode<synchronous>, transform_indices = @transform_6, window_bounds = array<i64: 1024, 8>}, {pipeline_mode = #tpu.pipeline_mode<synchronous>, transform_indices = @transform_7, window_bounds = array<i64: 1, 8>}, {pipeline_mode = #tpu.pipeline_mode<synchronous>, transform_indices = @transform_8, window_bounds = array<i64: 8, 128>}, {pipeline_mode = #tpu.pipeline_mode<synchronous>, transform_indices = @transform_9, window_bounds = array<i64: 1, 128>}, {pipeline_mode = #tpu.pipeline_mode<synchronous>, transform_indices = @transform_10, window_bounds = array<i64: 128, 128>}, {pipeline_mode = #tpu.pipeline_mode<synchronous>, transform_indices = @transform_11, window_bounds = array<i64: 1, 128>}, {pipeline_mode = #tpu.pipeline_mode<synchronous>, transform_indices = @transform_12, window_bounds = array<i64: 128, 128>}, {pipeline_mode = #tpu.pipeline_mode<synchronous>, transform_indices = @transform_13, window_bounds = array<i64: 1, 128>}, {pipeline_mode = #tpu.pipeline_mode<synchronous>, transform_indices = @transform_14, window_bounds = array<i64: 128, 8>}, {pipeline_mode = #tpu.pipeline_mode<synchronous>, transform_indices = @transform_15, window_bounds = array<i64: 1, 8>}, {transform_indices = @transform_16, window_bounds = array<i64: 32, 8>}]} {
    %c0 = arith.constant 0 : index
    %c0_0 = arith.constant 0 : index
    %0 = vector.load %arg1[%c0, %c0_0] : memref<32x8xf32, #tpu.memory_space<vmem>>, vector<32x8xf32>
    %1 = arith.truncf %0 : vector<32x8xf32> to vector<32x8xbf16>
    %2 = tpu.iota {dimensions = array<i32: 1>} : vector<32x64xi32>
    %c0_1 = arith.constant 0 : index
    %c0_2 = arith.constant 0 : index
    %3 = vector.load %arg4[%c0_1, %c0_2] : memref<32x8xi32, #tpu.memory_space<vmem>>, vector<32x8xi32>
    %4 = vector.extract_strided_slice %3 {offsets = [0, 0], sizes = [32, 1], strides = [1, 1]} : vector<32x8xi32> to vector<32x1xi32>
    %5 = vector.broadcast %4 : vector<32x1xi32> to vector<32x64xi32>
    %6 = arith.cmpi eq, %2, %5 : vector<32x64xi32>
    %7 = vector.extract_strided_slice %3 {offsets = [0, 1], sizes = [32, 1], strides = [1, 1]} : vector<32x8xi32> to vector<32x1xi32>
    %8 = vector.broadcast %7 : vector<32x1xi32> to vector<32x64xi32>
    %9 = arith.cmpi eq, %2, %8 : vector<32x64xi32>
    %10 = arith.ori %6, %9 : vector<32x64xi1>
    %11 = vector.extract_strided_slice %3 {offsets = [0, 2], sizes = [32, 1], strides = [1, 1]} : vector<32x8xi32> to vector<32x1xi32>
    %12 = vector.broadcast %11 : vector<32x1xi32> to vector<32x64xi32>
    %13 = arith.cmpi eq, %2, %12 : vector<32x64xi32>
    %14 = arith.ori %10, %13 : vector<32x64xi1>
    %15 = vector.extract_strided_slice %3 {offsets = [0, 3], sizes = [32, 1], strides = [1, 1]} : vector<32x8xi32> to vector<32x1xi32>
    %16 = vector.broadcast %15 : vector<32x1xi32> to vector<32x64xi32>
    %17 = arith.cmpi eq, %2, %16 : vector<32x64xi32>
    %18 = arith.ori %14, %17 : vector<32x64xi1>
    %19 = vector.extract_strided_slice %3 {offsets = [0, 4], sizes = [32, 1], strides = [1, 1]} : vector<32x8xi32> to vector<32x1xi32>
    %20 = vector.broadcast %19 : vector<32x1xi32> to vector<32x64xi32>
    %21 = arith.cmpi eq, %2, %20 : vector<32x64xi32>
    %22 = arith.ori %18, %21 : vector<32x64xi1>
    %23 = vector.extract_strided_slice %3 {offsets = [0, 5], sizes = [32, 1], strides = [1, 1]} : vector<32x8xi32> to vector<32x1xi32>
    %24 = vector.broadcast %23 : vector<32x1xi32> to vector<32x64xi32>
    %25 = arith.cmpi eq, %2, %24 : vector<32x64xi32>
    %26 = arith.ori %22, %25 : vector<32x64xi1>
    %27 = vector.extract_strided_slice %3 {offsets = [0, 6], sizes = [32, 1], strides = [1, 1]} : vector<32x8xi32> to vector<32x1xi32>
    %28 = vector.broadcast %27 : vector<32x1xi32> to vector<32x64xi32>
    %29 = arith.cmpi eq, %2, %28 : vector<32x64xi32>
    %30 = arith.ori %26, %29 : vector<32x64xi1>
    %31 = vector.extract_strided_slice %3 {offsets = [0, 7], sizes = [32, 1], strides = [1, 1]} : vector<32x8xi32> to vector<32x1xi32>
    %32 = vector.broadcast %31 : vector<32x1xi32> to vector<32x64xi32>
    %33 = arith.cmpi eq, %2, %32 : vector<32x64xi32>
    %34 = arith.ori %30, %33 : vector<32x64xi1>
    %c0_3 = arith.constant 0 : index
    %c0_4 = arith.constant 0 : index
    %35 = vector.load %arg5[%c0_3, %c0_4] : memref<8x1024xbf16, #tpu.memory_space<vmem>>, vector<8x1024xbf16>
    %cst = arith.constant dense<0.000000e+00> : vector<32x1024xf32>
    %36 = tpu.matmul %1, %35, %cst {dimension_numbers = #tpu.dot_dimension_numbers<[1], [0], [0], [1], [0, 0, 1, 1], [], []>} : vector<32x8xbf16>, vector<8x1024xbf16>, vector<32x1024xf32> -> vector<32x1024xf32>
    %c0_5 = arith.constant 0 : index
    %c0_6 = arith.constant 0 : index
    %37 = vector.load %arg6[%c0_5, %c0_6] : memref<1x1024xf32, #tpu.memory_space<vmem>>, vector<1x1024xf32>
    %38 = vector.broadcast %37 : vector<1x1024xf32> to vector<32x1024xf32>
    %39 = arith.addf %36, %38 : vector<32x1024xf32>
    %40 = arith.truncf %39 : vector<32x1024xf32> to vector<32x1024xbf16>
    %41 = vector.extract_strided_slice %40 {offsets = [0, 0], sizes = [32, 128], strides = [1, 1]} : vector<32x1024xbf16> to vector<32x128xbf16>
    %c0_7 = arith.constant 0 : index
    %c0_8 = arith.constant 0 : index
    %42 = vector.load %arg2[%c0_7, %c0_8] : memref<1024x64xbf16, #tpu.memory_space<vmem>>, vector<128x64xbf16>
    %cst_9 = arith.constant dense<0.000000e+00> : vector<32x64xf32>
    %43 = tpu.matmul %41, %42, %cst_9 {dimension_numbers = #tpu.dot_dimension_numbers<[1], [0], [0], [1], [0, 0, 1, 1], [], []>} : vector<32x128xbf16>, vector<128x64xbf16>, vector<32x64xf32> -> vector<32x64xf32>
    %cst_10 = arith.constant -1.000000e+30 : f32
    %44 = vector.broadcast %cst_10 : f32 to vector<32x64xf32>
    %45 = arith.select %34, %43, %44 : vector<32x64xi1>, vector<32x64xf32>
    %cst_11 = arith.constant dense<0xFF800000> : vector<32xf32>
    %46 = vector.multi_reduction <maximumf>, %45, %cst_11 [1] : vector<32x64xf32> to vector<32xf32>
    %47 = vector.shape_cast %46 : vector<32xf32> to vector<32x1xf32>
    %48 = vector.broadcast %47 : vector<32x1xf32> to vector<32x64xf32>
    %49 = arith.subf %45, %48 : vector<32x64xf32>
    %50 = math.exp %49 : vector<32x64xf32>
    %cst_12 = arith.constant dense<0.000000e+00> : vector<32xf32>
    %51 = vector.multi_reduction <add>, %50, %cst_12 [1] : vector<32x64xf32> to vector<32xf32>
    %52 = vector.shape_cast %51 : vector<32xf32> to vector<32x1xf32>
    %53 = tpu.reciprocal %52 {approx = true} : vector<32x1xf32> -> vector<32x1xf32>
    %54 = vector.broadcast %53 : vector<32x1xf32> to vector<32x64xf32>
    %55 = arith.mulf %50, %54 : vector<32x64xf32>
    %56 = arith.truncf %55 : vector<32x64xf32> to vector<32x64xbf16>
    %c0_13 = arith.constant 0 : index
    %c0_14 = arith.constant 0 : index
    %57 = vector.load %arg3[%c0_13, %c0_14] : memref<64x1024xbf16, #tpu.memory_space<vmem>>, vector<64x128xbf16>
    %cst_15 = arith.constant dense<0.000000e+00> : vector<32x128xf32>
    %58 = tpu.matmul %56, %57, %cst_15 {dimension_numbers = #tpu.dot_dimension_numbers<[1], [0], [0], [1], [0, 0, 1, 1], [], []>} : vector<32x64xbf16>, vector<64x128xbf16>, vector<32x128xf32> -> vector<32x128xf32>
    %59 = arith.truncf %58 : vector<32x128xf32> to vector<32x128xbf16>
    %c0_16 = arith.constant 0 : index
    %c0_17 = arith.constant 0 : index
    %60 = vector.load %arg18[%c0_16, %c0_17] : memref<32x1024xbf16, #tpu.memory_space<vmem>>, vector<32x128xbf16>
    tpu.vector_store %arg18[%c0_16, %c0_17], %59 {strides = array<i32>} : memref<32x1024xbf16, #tpu.memory_space<vmem>>, vector<32x128xbf16>,
    %61 = vector.extract_strided_slice %40 {offsets = [0, 128], sizes = [32, 128], strides = [1, 1]} : vector<32x1024xbf16> to vector<32x128xbf16>
    %c128 = arith.constant 128 : index
    %c0_18 = arith.constant 0 : index
    %62 = vector.load %arg2[%c128, %c0_18] : memref<1024x64xbf16, #tpu.memory_space<vmem>>, vector<128x64xbf16>
    %cst_19 = arith.constant dense<0.000000e+00> : vector<32x64xf32>
    %63 = tpu.matmul %61, %62, %cst_19 {dimension_numbers = #tpu.dot_dimension_numbers<[1], [0], [0], [1], [0, 0, 1, 1], [], []>} : vector<32x128xbf16>, vector<128x64xbf16>, vector<32x64xf32> -> vector<32x64xf32>
    %cst_20 = arith.constant -1.000000e+30 : f32
    %64 = vector.broadcast %cst_20 : f32 to vector<32x64xf32>
    %65 = arith.select %34, %63, %64 : vector<32x64xi1>, vector<32x64xf32>
    %cst_21 = arith.constant dense<0xFF800000> : vector<32xf32>
    %66 = vector.multi_reduction <maximumf>, %65, %cst_21 [1] : vector<32x64xf32> to vector<32xf32>
    %67 = vector.shape_cast %66 : vector<32xf32> to vector<32x1xf32>
    %68 = vector.broadcast %67 : vector<32x1xf32> to vector<32x64xf32>
    %69 = arith.subf %65, %68 : vector<32x64xf32>
    %70 = math.exp %69 : vector<32x64xf32>
    %cst_22 = arith.constant dense<0.000000e+00> : vector<32xf32>
    %71 = vector.multi_reduction <add>, %70, %cst_22 [1] : vector<32x64xf32> to vector<32xf32>
    %72 = vector.shape_cast %71 : vector<32xf32> to vector<32x1xf32>
    %73 = tpu.reciprocal %72 {approx = true} : vector<32x1xf32> -> vector<32x1xf32>
    %74 = vector.broadcast %73 : vector<32x1xf32> to vector<32x64xf32>
    %75 = arith.mulf %70, %74 : vector<32x64xf32>
    %76 = arith.truncf %75 : vector<32x64xf32> to vector<32x64xbf16>
    %c0_23 = arith.constant 0 : index
    %c128_24 = arith.constant 128 : index
    %77 = vector.load %arg3[%c0_23, %c128_24] : memref<64x1024xbf16, #tpu.memory_space<vmem>>, vector<64x128xbf16>
    %cst_25 = arith.constant dense<0.000000e+00> : vector<32x128xf32>
    %78 = tpu.matmul %76, %77, %cst_25 {dimension_numbers = #tpu.dot_dimension_numbers<[1], [0], [0], [1], [0, 0, 1, 1], [], []>} : vector<32x64xbf16>, vector<64x128xbf16>, vector<32x128xf32> -> vector<32x128xf32>
    %79 = arith.truncf %78 : vector<32x128xf32> to vector<32x128xbf16>
    %c0_26 = arith.constant 0 : index
    %c128_27 = arith.constant 128 : index
    %80 = vector.load %arg18[%c0_26, %c128_27] : memref<32x1024xbf16, #tpu.memory_space<vmem>>, vector<32x128xbf16>
    tpu.vector_store %arg18[%c0_26, %c128_27], %79 {strides = array<i32>} : memref<32x1024xbf16, #tpu.memory_space<vmem>>, vector<32x128xbf16>,
    %81 = vector.extract_strided_slice %40 {offsets = [0, 256], sizes = [32, 128], strides = [1, 1]} : vector<32x1024xbf16> to vector<32x128xbf16>
    %c256 = arith.constant 256 : index
    %c0_28 = arith.constant 0 : index
    %82 = vector.load %arg2[%c256, %c0_28] : memref<1024x64xbf16, #tpu.memory_space<vmem>>, vector<128x64xbf16>
    %cst_29 = arith.constant dense<0.000000e+00> : vector<32x64xf32>
    %83 = tpu.matmul %81, %82, %cst_29 {dimension_numbers = #tpu.dot_dimension_numbers<[1], [0], [0], [1], [0, 0, 1, 1], [], []>} : vector<32x128xbf16>, vector<128x64xbf16>, vector<32x64xf32> -> vector<32x64xf32>
    %cst_30 = arith.constant -1.000000e+30 : f32
    %84 = vector.broadcast %cst_30 : f32 to vector<32x64xf32>
    %85 = arith.select %34, %83, %84 : vector<32x64xi1>, vector<32x64xf32>
    %cst_31 = arith.constant dense<0xFF800000> : vector<32xf32>
    %86 = vector.multi_reduction <maximumf>, %85, %cst_31 [1] : vector<32x64xf32> to vector<32xf32>
    %87 = vector.shape_cast %86 : vector<32xf32> to vector<32x1xf32>
    %88 = vector.broadcast %87 : vector<32x1xf32> to vector<32x64xf32>
    %89 = arith.subf %85, %88 : vector<32x64xf32>
    %90 = math.exp %89 : vector<32x64xf32>
    %cst_32 = arith.constant dense<0.000000e+00> : vector<32xf32>
    %91 = vector.multi_reduction <add>, %90, %cst_32 [1] : vector<32x64xf32> to vector<32xf32>
    %92 = vector.shape_cast %91 : vector<32xf32> to vector<32x1xf32>
    %93 = tpu.reciprocal %92 {approx = true} : vector<32x1xf32> -> vector<32x1xf32>
    %94 = vector.broadcast %93 : vector<32x1xf32> to vector<32x64xf32>
    %95 = arith.mulf %90, %94 : vector<32x64xf32>
    %96 = arith.truncf %95 : vector<32x64xf32> to vector<32x64xbf16>
    %c0_33 = arith.constant 0 : index
    %c256_34 = arith.constant 256 : index
    %97 = vector.load %arg3[%c0_33, %c256_34] : memref<64x1024xbf16, #tpu.memory_space<vmem>>, vector<64x128xbf16>
    %cst_35 = arith.constant dense<0.000000e+00> : vector<32x128xf32>
    %98 = tpu.matmul %96, %97, %cst_35 {dimension_numbers = #tpu.dot_dimension_numbers<[1], [0], [0], [1], [0, 0, 1, 1], [], []>} : vector<32x64xbf16>, vector<64x128xbf16>, vector<32x128xf32> -> vector<32x128xf32>
    %99 = arith.truncf %98 : vector<32x128xf32> to vector<32x128xbf16>
    %c0_36 = arith.constant 0 : index
    %c256_37 = arith.constant 256 : index
    %100 = vector.load %arg18[%c0_36, %c256_37] : memref<32x1024xbf16, #tpu.memory_space<vmem>>, vector<32x128xbf16>
    tpu.vector_store %arg18[%c0_36, %c256_37], %99 {strides = array<i32>} : memref<32x1024xbf16, #tpu.memory_space<vmem>>, vector<32x128xbf16>,
    %101 = vector.extract_strided_slice %40 {offsets = [0, 384], sizes = [32, 128], strides = [1, 1]} : vector<32x1024xbf16> to vector<32x128xbf16>
    %c384 = arith.constant 384 : index
    %c0_38 = arith.constant 0 : index
    %102 = vector.load %arg2[%c384, %c0_38] : memref<1024x64xbf16, #tpu.memory_space<vmem>>, vector<128x64xbf16>
    %cst_39 = arith.constant dense<0.000000e+00> : vector<32x64xf32>
    %103 = tpu.matmul %101, %102, %cst_39 {dimension_numbers = #tpu.dot_dimension_numbers<[1], [0], [0], [1], [0, 0, 1, 1], [], []>} : vector<32x128xbf16>, vector<128x64xbf16>, vector<32x64xf32> -> vector<32x64xf32>
    %cst_40 = arith.constant -1.000000e+30 : f32
    %104 = vector.broadcast %cst_40 : f32 to vector<32x64xf32>
    %105 = arith.select %34, %103, %104 : vector<32x64xi1>, vector<32x64xf32>
    %cst_41 = arith.constant dense<0xFF800000> : vector<32xf32>
    %106 = vector.multi_reduction <maximumf>, %105, %cst_41 [1] : vector<32x64xf32> to vector<32xf32>
    %107 = vector.shape_cast %106 : vector<32xf32> to vector<32x1xf32>
    %108 = vector.broadcast %107 : vector<32x1xf32> to vector<32x64xf32>
    %109 = arith.subf %105, %108 : vector<32x64xf32>
    %110 = math.exp %109 : vector<32x64xf32>
    %cst_42 = arith.constant dense<0.000000e+00> : vector<32xf32>
    %111 = vector.multi_reduction <add>, %110, %cst_42 [1] : vector<32x64xf32> to vector<32xf32>
    %112 = vector.shape_cast %111 : vector<32xf32> to vector<32x1xf32>
    %113 = tpu.reciprocal %112 {approx = true} : vector<32x1xf32> -> vector<32x1xf32>
    %114 = vector.broadcast %113 : vector<32x1xf32> to vector<32x64xf32>
    %115 = arith.mulf %110, %114 : vector<32x64xf32>
    %116 = arith.truncf %115 : vector<32x64xf32> to vector<32x64xbf16>
    %c0_43 = arith.constant 0 : index
    %c384_44 = arith.constant 384 : index
    %117 = vector.load %arg3[%c0_43, %c384_44] : memref<64x1024xbf16, #tpu.memory_space<vmem>>, vector<64x128xbf16>
    %cst_45 = arith.constant dense<0.000000e+00> : vector<32x128xf32>
    %118 = tpu.matmul %116, %117, %cst_45 {dimension_numbers = #tpu.dot_dimension_numbers<[1], [0], [0], [1], [0, 0, 1, 1], [], []>} : vector<32x64xbf16>, vector<64x128xbf16>, vector<32x128xf32> -> vector<32x128xf32>
    %119 = arith.truncf %118 : vector<32x128xf32> to vector<32x128xbf16>
    %c0_46 = arith.constant 0 : index
    %c384_47 = arith.constant 384 : index
    %120 = vector.load %arg18[%c0_46, %c384_47] : memref<32x1024xbf16, #tpu.memory_space<vmem>>, vector<32x128xbf16>
    tpu.vector_store %arg18[%c0_46, %c384_47], %119 {strides = array<i32>} : memref<32x1024xbf16, #tpu.memory_space<vmem>>, vector<32x128xbf16>,
    %121 = vector.extract_strided_slice %40 {offsets = [0, 512], sizes = [32, 128], strides = [1, 1]} : vector<32x1024xbf16> to vector<32x128xbf16>
    %c512 = arith.constant 512 : index
    %c0_48 = arith.constant 0 : index
    %122 = vector.load %arg2[%c512, %c0_48] : memref<1024x64xbf16, #tpu.memory_space<vmem>>, vector<128x64xbf16>
    %cst_49 = arith.constant dense<0.000000e+00> : vector<32x64xf32>
    %123 = tpu.matmul %121, %122, %cst_49 {dimension_numbers = #tpu.dot_dimension_numbers<[1], [0], [0], [1], [0, 0, 1, 1], [], []>} : vector<32x128xbf16>, vector<128x64xbf16>, vector<32x64xf32> -> vector<32x64xf32>
    %cst_50 = arith.constant -1.000000e+30 : f32
    %124 = vector.broadcast %cst_50 : f32 to vector<32x64xf32>
    %125 = arith.select %34, %123, %124 : vector<32x64xi1>, vector<32x64xf32>
    %cst_51 = arith.constant dense<0xFF800000> : vector<32xf32>
    %126 = vector.multi_reduction <maximumf>, %125, %cst_51 [1] : vector<32x64xf32> to vector<32xf32>
    %127 = vector.shape_cast %126 : vector<32xf32> to vector<32x1xf32>
    %128 = vector.broadcast %127 : vector<32x1xf32> to vector<32x64xf32>
    %129 = arith.subf %125, %128 : vector<32x64xf32>
    %130 = math.exp %129 : vector<32x64xf32>
    %cst_52 = arith.constant dense<0.000000e+00> : vector<32xf32>
    %131 = vector.multi_reduction <add>, %130, %cst_52 [1] : vector<32x64xf32> to vector<32xf32>
    %132 = vector.shape_cast %131 : vector<32xf32> to vector<32x1xf32>
    %133 = tpu.reciprocal %132 {approx = true} : vector<32x1xf32> -> vector<32x1xf32>
    %134 = vector.broadcast %133 : vector<32x1xf32> to vector<32x64xf32>
    %135 = arith.mulf %130, %134 : vector<32x64xf32>
    %136 = arith.truncf %135 : vector<32x64xf32> to vector<32x64xbf16>
    %c0_53 = arith.constant 0 : index
    %c512_54 = arith.constant 512 : index
    %137 = vector.load %arg3[%c0_53, %c512_54] : memref<64x1024xbf16, #tpu.memory_space<vmem>>, vector<64x128xbf16>
    %cst_55 = arith.constant dense<0.000000e+00> : vector<32x128xf32>
    %138 = tpu.matmul %136, %137, %cst_55 {dimension_numbers = #tpu.dot_dimension_numbers<[1], [0], [0], [1], [0, 0, 1, 1], [], []>} : vector<32x64xbf16>, vector<64x128xbf16>, vector<32x128xf32> -> vector<32x128xf32>
    %139 = arith.truncf %138 : vector<32x128xf32> to vector<32x128xbf16>
    %c0_56 = arith.constant 0 : index
    %c512_57 = arith.constant 512 : index
    %140 = vector.load %arg18[%c0_56, %c512_57] : memref<32x1024xbf16, #tpu.memory_space<vmem>>, vector<32x128xbf16>
    tpu.vector_store %arg18[%c0_56, %c512_57], %139 {strides = array<i32>} : memref<32x1024xbf16, #tpu.memory_space<vmem>>, vector<32x128xbf16>,
    %141 = vector.extract_strided_slice %40 {offsets = [0, 640], sizes = [32, 128], strides = [1, 1]} : vector<32x1024xbf16> to vector<32x128xbf16>
    %c640 = arith.constant 640 : index
    %c0_58 = arith.constant 0 : index
    %142 = vector.load %arg2[%c640, %c0_58] : memref<1024x64xbf16, #tpu.memory_space<vmem>>, vector<128x64xbf16>
    %cst_59 = arith.constant dense<0.000000e+00> : vector<32x64xf32>
    %143 = tpu.matmul %141, %142, %cst_59 {dimension_numbers = #tpu.dot_dimension_numbers<[1], [0], [0], [1], [0, 0, 1, 1], [], []>} : vector<32x128xbf16>, vector<128x64xbf16>, vector<32x64xf32> -> vector<32x64xf32>
    %cst_60 = arith.constant -1.000000e+30 : f32
    %144 = vector.broadcast %cst_60 : f32 to vector<32x64xf32>
    %145 = arith.select %34, %143, %144 : vector<32x64xi1>, vector<32x64xf32>
    %cst_61 = arith.constant dense<0xFF800000> : vector<32xf32>
    %146 = vector.multi_reduction <maximumf>, %145, %cst_61 [1] : vector<32x64xf32> to vector<32xf32>
    %147 = vector.shape_cast %146 : vector<32xf32> to vector<32x1xf32>
    %148 = vector.broadcast %147 : vector<32x1xf32> to vector<32x64xf32>
    %149 = arith.subf %145, %148 : vector<32x64xf32>
    %150 = math.exp %149 : vector<32x64xf32>
    %cst_62 = arith.constant dense<0.000000e+00> : vector<32xf32>
    %151 = vector.multi_reduction <add>, %150, %cst_62 [1] : vector<32x64xf32> to vector<32xf32>
    %152 = vector.shape_cast %151 : vector<32xf32> to vector<32x1xf32>
    %153 = tpu.reciprocal %152 {approx = true} : vector<32x1xf32> -> vector<32x1xf32>
    %154 = vector.broadcast %153 : vector<32x1xf32> to vector<32x64xf32>
    %155 = arith.mulf %150, %154 : vector<32x64xf32>
    %156 = arith.truncf %155 : vector<32x64xf32> to vector<32x64xbf16>
    %c0_63 = arith.constant 0 : index
    %c640_64 = arith.constant 640 : index
    %157 = vector.load %arg3[%c0_63, %c640_64] : memref<64x1024xbf16, #tpu.memory_space<vmem>>, vector<64x128xbf16>
    %cst_65 = arith.constant dense<0.000000e+00> : vector<32x128xf32>
    %158 = tpu.matmul %156, %157, %cst_65 {dimension_numbers = #tpu.dot_dimension_numbers<[1], [0], [0], [1], [0, 0, 1, 1], [], []>} : vector<32x64xbf16>, vector<64x128xbf16>, vector<32x128xf32> -> vector<32x128xf32>
    %159 = arith.truncf %158 : vector<32x128xf32> to vector<32x128xbf16>
    %c0_66 = arith.constant 0 : index
    %c640_67 = arith.constant 640 : index
    %160 = vector.load %arg18[%c0_66, %c640_67] : memref<32x1024xbf16, #tpu.memory_space<vmem>>, vector<32x128xbf16>
    tpu.vector_store %arg18[%c0_66, %c640_67], %159 {strides = array<i32>} : memref<32x1024xbf16, #tpu.memory_space<vmem>>, vector<32x128xbf16>,
    %161 = vector.extract_strided_slice %40 {offsets = [0, 768], sizes = [32, 128], strides = [1, 1]} : vector<32x1024xbf16> to vector<32x128xbf16>
    %c768 = arith.constant 768 : index
    %c0_68 = arith.constant 0 : index
    %162 = vector.load %arg2[%c768, %c0_68] : memref<1024x64xbf16, #tpu.memory_space<vmem>>, vector<128x64xbf16>
    %cst_69 = arith.constant dense<0.000000e+00> : vector<32x64xf32>
    %163 = tpu.matmul %161, %162, %cst_69 {dimension_numbers = #tpu.dot_dimension_numbers<[1], [0], [0], [1], [0, 0, 1, 1], [], []>} : vector<32x128xbf16>, vector<128x64xbf16>, vector<32x64xf32> -> vector<32x64xf32>
    %cst_70 = arith.constant -1.000000e+30 : f32
    %164 = vector.broadcast %cst_70 : f32 to vector<32x64xf32>
    %165 = arith.select %34, %163, %164 : vector<32x64xi1>, vector<32x64xf32>
    %cst_71 = arith.constant dense<0xFF800000> : vector<32xf32>
    %166 = vector.multi_reduction <maximumf>, %165, %cst_71 [1] : vector<32x64xf32> to vector<32xf32>
    %167 = vector.shape_cast %166 : vector<32xf32> to vector<32x1xf32>
    %168 = vector.broadcast %167 : vector<32x1xf32> to vector<32x64xf32>
    %169 = arith.subf %165, %168 : vector<32x64xf32>
    %170 = math.exp %169 : vector<32x64xf32>
    %cst_72 = arith.constant dense<0.000000e+00> : vector<32xf32>
    %171 = vector.multi_reduction <add>, %170, %cst_72 [1] : vector<32x64xf32> to vector<32xf32>
    %172 = vector.shape_cast %171 : vector<32xf32> to vector<32x1xf32>
    %173 = tpu.reciprocal %172 {approx = true} : vector<32x1xf32> -> vector<32x1xf32>
    %174 = vector.broadcast %173 : vector<32x1xf32> to vector<32x64xf32>
    %175 = arith.mulf %170, %174 : vector<32x64xf32>
    %176 = arith.truncf %175 : vector<32x64xf32> to vector<32x64xbf16>
    %c0_73 = arith.constant 0 : index
    %c768_74 = arith.constant 768 : index
    %177 = vector.load %arg3[%c0_73, %c768_74] : memref<64x1024xbf16, #tpu.memory_space<vmem>>, vector<64x128xbf16>
    %cst_75 = arith.constant dense<0.000000e+00> : vector<32x128xf32>
    %178 = tpu.matmul %176, %177, %cst_75 {dimension_numbers = #tpu.dot_dimension_numbers<[1], [0], [0], [1], [0, 0, 1, 1], [], []>} : vector<32x64xbf16>, vector<64x128xbf16>, vector<32x128xf32> -> vector<32x128xf32>
    %179 = arith.truncf %178 : vector<32x128xf32> to vector<32x128xbf16>
    %c0_76 = arith.constant 0 : index
    %c768_77 = arith.constant 768 : index
    %180 = vector.load %arg18[%c0_76, %c768_77] : memref<32x1024xbf16, #tpu.memory_space<vmem>>, vector<32x128xbf16>
    tpu.vector_store %arg18[%c0_76, %c768_77], %179 {strides = array<i32>} : memref<32x1024xbf16, #tpu.memory_space<vmem>>, vector<32x128xbf16>,
    %181 = vector.extract_strided_slice %40 {offsets = [0, 896], sizes = [32, 128], strides = [1, 1]} : vector<32x1024xbf16> to vector<32x128xbf16>
    %c896 = arith.constant 896 : index
    %c0_78 = arith.constant 0 : index
    %182 = vector.load %arg2[%c896, %c0_78] : memref<1024x64xbf16, #tpu.memory_space<vmem>>, vector<128x64xbf16>
    %cst_79 = arith.constant dense<0.000000e+00> : vector<32x64xf32>
    %183 = tpu.matmul %181, %182, %cst_79 {dimension_numbers = #tpu.dot_dimension_numbers<[1], [0], [0], [1], [0, 0, 1, 1], [], []>} : vector<32x128xbf16>, vector<128x64xbf16>, vector<32x64xf32> -> vector<32x64xf32>
    %cst_80 = arith.constant -1.000000e+30 : f32
    %184 = vector.broadcast %cst_80 : f32 to vector<32x64xf32>
    %185 = arith.select %34, %183, %184 : vector<32x64xi1>, vector<32x64xf32>
    %cst_81 = arith.constant dense<0xFF800000> : vector<32xf32>
    %186 = vector.multi_reduction <maximumf>, %185, %cst_81 [1] : vector<32x64xf32> to vector<32xf32>
    %187 = vector.shape_cast %186 : vector<32xf32> to vector<32x1xf32>
    %188 = vector.broadcast %187 : vector<32x1xf32> to vector<32x64xf32>
    %189 = arith.subf %185, %188 : vector<32x64xf32>
    %190 = math.exp %189 : vector<32x64xf32>
    %cst_82 = arith.constant dense<0.000000e+00> : vector<32xf32>
    %191 = vector.multi_reduction <add>, %190, %cst_82 [1] : vector<32x64xf32> to vector<32xf32>
    %192 = vector.shape_cast %191 : vector<32xf32> to vector<32x1xf32>
    %193 = tpu.reciprocal %192 {approx = true} : vector<32x1xf32> -> vector<32x1xf32>
    %194 = vector.broadcast %193 : vector<32x1xf32> to vector<32x64xf32>
    %195 = arith.mulf %190, %194 : vector<32x64xf32>
    %196 = arith.truncf %195 : vector<32x64xf32> to vector<32x64xbf16>
    %c0_83 = arith.constant 0 : index
    %c896_84 = arith.constant 896 : index
    %197 = vector.load %arg3[%c0_83, %c896_84] : memref<64x1024xbf16, #tpu.memory_space<vmem>>, vector<64x128xbf16>
    %cst_85 = arith.constant dense<0.000000e+00> : vector<32x128xf32>
    %198 = tpu.matmul %196, %197, %cst_85 {dimension_numbers = #tpu.dot_dimension_numbers<[1], [0], [0], [1], [0, 0, 1, 1], [], []>} : vector<32x64xbf16>, vector<64x128xbf16>, vector<32x128xf32> -> vector<32x128xf32>
    %199 = arith.truncf %198 : vector<32x128xf32> to vector<32x128xbf16>
    %c0_86 = arith.constant 0 : index
    %c896_87 = arith.constant 896 : index
    %200 = vector.load %arg18[%c0_86, %c896_87] : memref<32x1024xbf16, #tpu.memory_space<vmem>>, vector<32x128xbf16>
    tpu.vector_store %arg18[%c0_86, %c896_87], %199 {strides = array<i32>} : memref<32x1024xbf16, #tpu.memory_space<vmem>>, vector<32x128xbf16>,
    %c0_88 = arith.constant 0 : index
    %c0_89 = arith.constant 0 : index
    %201 = vector.load %arg18[%c0_88, %c0_89] : memref<32x1024xbf16, #tpu.memory_space<vmem>>, vector<32x1024xbf16>
    %c0_90 = arith.constant 0 : index
    %c0_91 = arith.constant 0 : index
    %202 = vector.load %arg7[%c0_90, %c0_91] : memref<1024x8xbf16, #tpu.memory_space<vmem>>, vector<1024x8xbf16>
    %cst_92 = arith.constant dense<0.000000e+00> : vector<32x8xf32>
    %203 = tpu.matmul %201, %202, %cst_92 {dimension_numbers = #tpu.dot_dimension_numbers<[1], [0], [0], [1], [0, 0, 1, 1], [], []>} : vector<32x1024xbf16>, vector<1024x8xbf16>, vector<32x8xf32> -> vector<32x8xf32>
    %c0_93 = arith.constant 0 : index
    %c0_94 = arith.constant 0 : index
    %204 = vector.load %arg8[%c0_93, %c0_94] : memref<1x8xf32, #tpu.memory_space<vmem>>, vector<1x8xf32>
    %205 = vector.broadcast %204 : vector<1x8xf32> to vector<32x8xf32>
    %206 = arith.addf %203, %205 : vector<32x8xf32>
    %207 = arith.addf %0, %206 : vector<32x8xf32>
    %208 = arith.truncf %207 : vector<32x8xf32> to vector<32x8xbf16>
    %c0_95 = arith.constant 0 : index
    %c0_96 = arith.constant 0 : index
    %209 = vector.load %arg9[%c0_95, %c0_96] : memref<8x128xbf16, #tpu.memory_space<vmem>>, vector<8x128xbf16>
    %cst_97 = arith.constant dense<0.000000e+00> : vector<32x128xf32>
    %210 = tpu.matmul %208, %209, %cst_97 {dimension_numbers = #tpu.dot_dimension_numbers<[1], [0], [0], [1], [0, 0, 1, 1], [], []>} : vector<32x8xbf16>, vector<8x128xbf16>, vector<32x128xf32> -> vector<32x128xf32>
    %c0_98 = arith.constant 0 : index
    %c0_99 = arith.constant 0 : index
    %211 = vector.load %arg10[%c0_98, %c0_99] : memref<1x128xf32, #tpu.memory_space<vmem>>, vector<1x128xf32>
    %212 = vector.broadcast %211 : vector<1x128xf32> to vector<32x128xf32>
    %213 = arith.addf %210, %212 : vector<32x128xf32>
    %cst_100 = arith.constant 0.000000e+00 : f32
    %214 = vector.broadcast %cst_100 : f32 to vector<32x128xf32>
    %215 = arith.maximumf %213, %214 : vector<32x128xf32>
    %216 = arith.truncf %215 : vector<32x128xf32> to vector<32x128xbf16>
    %c0_101 = arith.constant 0 : index
    %c0_102 = arith.constant 0 : index
    %217 = vector.load %arg11[%c0_101, %c0_102] : memref<128x128xbf16, #tpu.memory_space<vmem>>, vector<128x128xbf16>
    %cst_103 = arith.constant dense<0.000000e+00> : vector<32x128xf32>
    %218 = tpu.matmul %216, %217, %cst_103 {dimension_numbers = #tpu.dot_dimension_numbers<[1], [0], [0], [1], [0, 0, 1, 1], [], []>} : vector<32x128xbf16>, vector<128x128xbf16>, vector<32x128xf32> -> vector<32x128xf32>
    %c0_104 = arith.constant 0 : index
    %c0_105 = arith.constant 0 : index
    %219 = vector.load %arg12[%c0_104, %c0_105] : memref<1x128xf32, #tpu.memory_space<vmem>>, vector<1x128xf32>
    %220 = vector.broadcast %219 : vector<1x128xf32> to vector<32x128xf32>
    %221 = arith.addf %218, %220 : vector<32x128xf32>
    %cst_106 = arith.constant 0.000000e+00 : f32
    %222 = vector.broadcast %cst_106 : f32 to vector<32x128xf32>
    %223 = arith.maximumf %221, %222 : vector<32x128xf32>
    %224 = arith.truncf %223 : vector<32x128xf32> to vector<32x128xbf16>
    %c0_107 = arith.constant 0 : index
    %c0_108 = arith.constant 0 : index
    %225 = vector.load %arg13[%c0_107, %c0_108] : memref<128x128xbf16, #tpu.memory_space<vmem>>, vector<128x128xbf16>
    %cst_109 = arith.constant dense<0.000000e+00> : vector<32x128xf32>
    %226 = tpu.matmul %224, %225, %cst_109 {dimension_numbers = #tpu.dot_dimension_numbers<[1], [0], [0], [1], [0, 0, 1, 1], [], []>} : vector<32x128xbf16>, vector<128x128xbf16>, vector<32x128xf32> -> vector<32x128xf32>
    %c0_110 = arith.constant 0 : index
    %c0_111 = arith.constant 0 : index
    %227 = vector.load %arg14[%c0_110, %c0_111] : memref<1x128xf32, #tpu.memory_space<vmem>>, vector<1x128xf32>
    %228 = vector.broadcast %227 : vector<1x128xf32> to vector<32x128xf32>
    %229 = arith.addf %226, %228 : vector<32x128xf32>
    %cst_112 = arith.constant 0.000000e+00 : f32
    %230 = vector.broadcast %cst_112 : f32 to vector<32x128xf32>
    %231 = arith.maximumf %229, %230 : vector<32x128xf32>
    %232 = arith.truncf %231 : vector<32x128xf32> to vector<32x128xbf16>
    %c0_113 = arith.constant 0 : index
    %c0_114 = arith.constant 0 : index
    %233 = vector.load %arg15[%c0_113, %c0_114] : memref<128x8xbf16, #tpu.memory_space<vmem>>, vector<128x8xbf16>
    %cst_115 = arith.constant dense<0.000000e+00> : vector<32x8xf32>
    %234 = tpu.matmul %232, %233, %cst_115 {dimension_numbers = #tpu.dot_dimension_numbers<[1], [0], [0], [1], [0, 0, 1, 1], [], []>} : vector<32x128xbf16>, vector<128x8xbf16>, vector<32x8xf32> -> vector<32x8xf32>
    %c0_116 = arith.constant 0 : index
    %c0_117 = arith.constant 0 : index
    %235 = vector.load %arg16[%c0_116, %c0_117] : memref<1x8xf32, #tpu.memory_space<vmem>>, vector<1x8xf32>
    %236 = vector.broadcast %235 : vector<1x8xf32> to vector<32x8xf32>
    %237 = arith.addf %234, %236 : vector<32x8xf32>
    %238 = arith.addf %207, %237 : vector<32x8xf32>
    %c0_118 = arith.constant 0 : index
    %c0_119 = arith.constant 0 : index
    %239 = vector.load %arg17[%c0_118, %c0_119] : memref<32x8xf32, #tpu.memory_space<vmem>>, vector<32x8xf32>
    tpu.vector_store %arg17[%c0_118, %c0_119], %238 {strides = array<i32>} : memref<32x8xf32, #tpu.memory_space<vmem>>, vector<32x8xf32>,
    return
  }
  func.func @transform_0(%arg0: i32) -> (i32, i32) {
    %c0_i32 = arith.constant 0 : i32
    %c0_i32_0 = arith.constant 0 : i32
    return %arg0, %c0_i32 : i32, i32
  }
  func.func @transform_1(%arg0: i32) -> (i32, i32) {
    %c0_i32 = arith.constant 0 : i32
    %c0_i32_0 = arith.constant 0 : i32
    %c0_i32_1 = arith.constant 0 : i32
    return %c0_i32, %c0_i32_0 : i32, i32
  }
  func.func @transform_2(%arg0: i32) -> (i32, i32) {
    %c0_i32 = arith.constant 0 : i32
    %c0_i32_0 = arith.constant 0 : i32
    %c0_i32_1 = arith.constant 0 : i32
    return %c0_i32, %c0_i32_0 : i32, i32
  }
  func.func @transform_3(%arg0: i32) -> (i32, i32) {
    %c0_i32 = arith.constant 0 : i32
    %c0_i32_0 = arith.constant 0 : i32
    return %arg0, %c0_i32 : i32, i32
  }
  func.func @transform_4(%arg0: i32) -> (i32, i32) {
    %c0_i32 = arith.constant 0 : i32
    %c0_i32_0 = arith.constant 0 : i32
    %c0_i32_1 = arith.constant 0 : i32
    return %c0_i32, %c0_i32_0 : i32, i32
  }
  func.func @transform_5(%arg0: i32) -> (i32, i32) {
    %c0_i32 = arith.constant 0 : i32
    %c0_i32_0 = arith.constant 0 : i32
    %c0_i32_1 = arith.constant 0 : i32
    return %c0_i32, %c0_i32_0 : i32, i32
  }
  func.func @transform_6(%arg0: i32) -> (i32, i32) {
    %c0_i32 = arith.constant 0 : i32
    %c0_i32_0 = arith.constant 0 : i32
    %c0_i32_1 = arith.constant 0 : i32
    return %c0_i32, %c0_i32_0 : i32, i32
  }
  func.func @transform_7(%arg0: i32) -> (i32, i32) {
    %c0_i32 = arith.constant 0 : i32
    %c0_i32_0 = arith.constant 0 : i32
    %c0_i32_1 = arith.constant 0 : i32
    return %c0_i32, %c0_i32_0 : i32, i32
  }
  func.func @transform_8(%arg0: i32) -> (i32, i32) {
    %c0_i32 = arith.constant 0 : i32
    %c0_i32_0 = arith.constant 0 : i32
    %c0_i32_1 = arith.constant 0 : i32
    return %c0_i32, %c0_i32_0 : i32, i32
  }
  func.func @transform_9(%arg0: i32) -> (i32, i32) {
    %c0_i32 = arith.constant 0 : i32
    %c0_i32_0 = arith.constant 0 : i32
    %c0_i32_1 = arith.constant 0 : i32
    return %c0_i32, %c0_i32_0 : i32, i32
  }
  func.func @transform_10(%arg0: i32) -> (i32, i32) {
    %c0_i32 = arith.constant 0 : i32
    %c0_i32_0 = arith.constant 0 : i32
    %c0_i32_1 = arith.constant 0 : i32
    return %c0_i32, %c0_i32_0 : i32, i32
  }
  func.func @transform_11(%arg0: i32) -> (i32, i32) {
    %c0_i32 = arith.constant 0 : i32
    %c0_i32_0 = arith.constant 0 : i32
    %c0_i32_1 = arith.constant 0 : i32
    return %c0_i32, %c0_i32_0 : i32, i32
  }
  func.func @transform_12(%arg0: i32) -> (i32, i32) {
    %c0_i32 = arith.constant 0 : i32
    %c0_i32_0 = arith.constant 0 : i32
    %c0_i32_1 = arith.constant 0 : i32
    return %c0_i32, %c0_i32_0 : i32, i32
  }
  func.func @transform_13(%arg0: i32) -> (i32, i32) {
    %c0_i32 = arith.constant 0 : i32
    %c0_i32_0 = arith.constant 0 : i32
    %c0_i32_1 = arith.constant 0 : i32
    return %c0_i32, %c0_i32_0 : i32, i32
  }
  func.func @transform_14(%arg0: i32) -> (i32, i32) {
    %c0_i32 = arith.constant 0 : i32
    %c0_i32_0 = arith.constant 0 : i32
    %c0_i32_1 = arith.constant 0 : i32
    return %c0_i32, %c0_i32_0 : i32, i32
  }
  func.func @transform_15(%arg0: i32) -> (i32, i32) {
    %c0_i32 = arith.constant 0 : i32
    %c0_i32_0 = arith.constant 0 : i32
    %c0_i32_1 = arith.constant 0 : i32
    return %c0_i32, %c0_i32_0 : i32, i32
  }
  func.func @transform_16(%arg0: i32) -> (i32, i32) {
    %c0_i32 = arith.constant 0 : i32
    %c0_i32_0 = arith.constant 0 : i32
    return %arg0, %c0_i32 : i32, i32
  }
}

</mosaic_0001>

<llo_original>
// kernel: tpu_custom_call.1
$region0: #{tpu_custom_call.1}
  #allocation0 [shape = 'u32[]', space=smem, size = 0x4, offset = 0x4, fixed_abs, tag = 'smem constant byte address 0x4 - core index']
  #allocation1 [shape = 'u32[72,128]{1,0:T(1,128)}', space=vmem, size = 0x9000, scoped, tag = 'internal scratch']
  #allocation2 [shape = 'bf16[32,1024]{1,0:T(8,128)(2,1)}', space=vmem, size = 0x10000, scoped, tag = 'scratch operand']
  %s0 = inlined_call_operand.vmem [shape: f32[64,8], index: 0, kind: input, shape index: {}]
  %s1 = inlined_call_operand.vmem [shape: bf16[1024,64], index: 1, kind: input, shape index: {}]
  %s2 = inlined_call_operand.vmem [shape: bf16[64,1024], index: 2, kind: input, shape index: {}]
  %s3 = inlined_call_operand.vmem [shape: s32[64,8], index: 3, kind: input, shape index: {}]
  %s4 = inlined_call_operand.vmem [shape: bf16[8,1024], index: 4, kind: input, shape index: {}]
  %s5 = inlined_call_operand.vmem [shape: f32[1,1024], index: 5, kind: input, shape index: {}]
  %s6 = inlined_call_operand.vmem [shape: bf16[1024,8], index: 6, kind: input, shape index: {}]
  %s7 = inlined_call_operand.vmem [shape: f32[1,8], index: 7, kind: input, shape index: {}]
  %s8 = inlined_call_operand.vmem [shape: bf16[8,128], index: 8, kind: input, shape index: {}]
  %s9 = inlined_call_operand.vmem [shape: f32[1,128], index: 9, kind: input, shape index: {}]
  %s10 = inlined_call_operand.vmem [shape: bf16[128,128], index: 10, kind: input, shape index: {}]
  %s11 = inlined_call_operand.vmem [shape: f32[1,128], index: 11, kind: input, shape index: {}]
  %s12 = inlined_call_operand.vmem [shape: bf16[128,128], index: 12, kind: input, shape index: {}]
  %s13 = inlined_call_operand.vmem [shape: f32[1,128], index: 13, kind: input, shape index: {}]
  %s14 = inlined_call_operand.vmem [shape: bf16[128,8], index: 14, kind: input, shape index: {}]
  %s15 = inlined_call_operand.vmem [shape: f32[1,8], index: 15, kind: input, shape index: {}]
  %s16 = inlined_call_operand.vmem [shape: f32[64,8], index: 16, kind: output, shape index: {}]
  %s17 = sld [smem:[#allocation0]]
  $region97: #{tpu_custom_call.1} parent=0
    _
  %s19 = ssub.s32 1, %s17
  %s20 = scalar_select 0, %s19, %s17
  loop: start=0, step=1, limit=4
  $region2: #{tpu_custom_call.1} parent=0 // loop_pre_header
    _
  $region3: #{tpu_custom_call.1} parent=0 // loop_header
    %s22 = sphi 0, %s26
    %p23 = scmp.ge.s32.totalorder %s22, 4
    %s32 = sphi 0, %s34
    %s35 = sphi 0, %s32
    %s36 = sphi 0, %s35
    %s52 = sphi 0, %s36
    %s56 = sphi 0, %s56
    %s58 = sphi 0, %s56
    %s59 = sphi 0, %s58
    %s73 = sphi 0, %s59
    %s77 = sphi 0, %s77
    %s79 = sphi 0, %s77
    %s80 = sphi 0, %s79
    %s94 = sphi 0, %s80
    %s100 = sphi 0, %s102
    %s103 = sphi 0, %s100
    %s104 = sphi 0, %s103
    %s120 = sphi 0, %s104
    %s124 = sphi 0, %s124
    %s126 = sphi 0, %s124
    %s127 = sphi 0, %s126
    %s141 = sphi 0, %s127
    %s145 = sphi 0, %s145
    %s147 = sphi 0, %s145
    %s148 = sphi 0, %s147
    %s162 = sphi 0, %s148
    %s166 = sphi 0, %s166
    %s168 = sphi 0, %s166
    %s169 = sphi 0, %s168
    %s183 = sphi 0, %s169
    %s187 = sphi 0, %s187
    %s189 = sphi 0, %s187
    %s190 = sphi 0, %s189
    %s204 = sphi 0, %s190
    %s208 = sphi 0, %s208
    %s210 = sphi 0, %s208
    %s211 = sphi 0, %s210
    %s225 = sphi 0, %s211
    %s229 = sphi 0, %s229
    %s231 = sphi 0, %s229
    %s232 = sphi 0, %s231
    %s246 = sphi 0, %s232
    %s250 = sphi 0, %s250
    %s252 = sphi 0, %s250
    %s253 = sphi 0, %s252
    %s267 = sphi 0, %s253
    %s271 = sphi 0, %s271
    %s273 = sphi 0, %s271
    %s274 = sphi 0, %s273
    %s288 = sphi 0, %s274
    %s292 = sphi 0, %s292
    %s294 = sphi 0, %s292
    %s295 = sphi 0, %s294
    %s309 = sphi 0, %s295
    %s313 = sphi 0, %s313
    %s315 = sphi 0, %s313
    %s316 = sphi 0, %s315
    %s330 = sphi 0, %s316
    %s334 = sphi 0, %s334
    %s336 = sphi 0, %s334
    %s337 = sphi 0, %s336
    %s351 = sphi 0, %s337
    %s355 = sphi 0, %s355
    %s357 = sphi 0, %s355
    %s358 = sphi 0, %s357
    %s372 = sphi 0, %s358
    %s378 = sphi 0, %s380
    %s381 = sphi 0, %s378
    %s382 = sphi 0, %s381
    %s398 = sphi 0, %s382
  $region4: #{tpu_custom_call.1} parent=0 // loop_header_branch
    %25 = sbr.rel (%p23) target = $region8
  $region5: #{tpu_custom_call.1} parent=0 // loop_body
    %s27 = ssub.s32 %s22, 1
    %s28 = ssub.s32 %s22, 2
    %s29 = sadd.s32 %s22, 1
    %s30 = ssub.s32 %s22, %s29
    %p31 = scmp.eq.s32.totalorder %s30, 0
    %s33 = sadd.s32 %s32, 1
    %s34 = scalar_select %p31, %s32, %s33
    %p37 = pneg %p31
    %p38 = scmp.eq.s32.totalorder %s22, 1
    %p39 = por %p37, %p38
    %p40 = scmp.ne.s32.totalorder %s32, %s35
    %p41 = scmp.eq.s32.totalorder %s22, 0
    %p42 = por %p40, %p41
    %p43 = scmp.ne.s32.totalorder %s32, %s35
    %p44 = scmp.eq.s32.totalorder %s27, 1
    %p45 = por %p43, %p44
    %p46 = scmp.ne.s32.totalorder %s35, %s36
    %p47 = scmp.eq.s32.totalorder %s27, 0
    %p48 = por %p46, %p47
    %p49 = scmp.ne.s32.totalorder %s35, %s36
    %p50 = scmp.eq.s32.totalorder %s28, 1
    %p51 = por %p49, %p50
    %p53 = scmp.ne.s32.totalorder %s36, %s52
    %p54 = scmp.eq.s32.totalorder %s28, 0
    %p55 = por %p53, %p54
    %s57 = sadd.s32 %s56, 1
    %p60 = scmp.eq.s32.totalorder %s22, 1
    %p61 = scmp.ne.s32.totalorder %s56, %s58
    %p62 = scmp.eq.s32.totalorder %s22, 0
    %p63 = por %p61, %p62
    %p64 = scmp.ne.s32.totalorder %s56, %s58
    %p65 = scmp.eq.s32.totalorder %s27, 1
    %p66 = por %p64, %p65
    %p67 = scmp.ne.s32.totalorder %s58, %s59
    %p68 = scmp.eq.s32.totalorder %s27, 0
    %p69 = por %p67, %p68
    %p70 = scmp.ne.s32.totalorder %s58, %s59
    %p71 = scmp.eq.s32.totalorder %s28, 1
    %p72 = por %p70, %p71
    %p74 = scmp.ne.s32.totalorder %s59, %s73
    %p75 = scmp.eq.s32.totalorder %s28, 0
    %p76 = por %p74, %p75
    %s78 = sadd.s32 %s77, 1
    %p81 = scmp.eq.s32.totalorder %s22, 1
    %p82 = scmp.ne.s32.totalorder %s77, %s79
    %p83 = scmp.eq.s32.totalorder %s22, 0
    %p84 = por %p82, %p83
    %p85 = scmp.ne.s32.totalorder %s77, %s79
    %p86 = scmp.eq.s32.totalorder %s27, 1
    %p87 = por %p85, %p86
    %p88 = scmp.ne.s32.totalorder %s79, %s80
    %p89 = scmp.eq.s32.totalorder %s27, 0
    %p90 = por %p88, %p89
    %p91 = scmp.ne.s32.totalorder %s79, %s80
    %p92 = scmp.eq.s32.totalorder %s28, 1
    %p93 = por %p91, %p92
    %p95 = scmp.ne.s32.totalorder %s80, %s94
    %p96 = scmp.eq.s32.totalorder %s28, 0
    %p97 = por %p95, %p96
    %s98 = ssub.s32 %s22, %s29
    %p99 = scmp.eq.s32.totalorder %s98, 0
    %s101 = sadd.s32 %s100, 1
    %s102 = scalar_select %p99, %s100, %s101
    %p105 = pneg %p99
    %p106 = scmp.eq.s32.totalorder %s22, 1
    %p107 = por %p105, %p106
    %p108 = scmp.ne.s32.totalorder %s100, %s103
    %p109 = scmp.eq.s32.totalorder %s22, 0
    %p110 = por %p108, %p109
    %p111 = scmp.ne.s32.totalorder %s100, %s103
    %p112 = scmp.eq.s32.totalorder %s27, 1
    %p113 = por %p111, %p112
    %p114 = scmp.ne.s32.totalorder %s103, %s104
    %p115 = scmp.eq.s32.totalorder %s27, 0
    %p116 = por %p114, %p115
    %p117 = scmp.ne.s32.totalorder %s103, %s104
    %p118 = scmp.eq.s32.totalorder %s28, 1
    %p119 = por %p117, %p118
    %p121 = scmp.ne.s32.totalorder %s104, %s120
    %p122 = scmp.eq.s32.totalorder %s28, 0
    %p123 = por %p121, %p122
    %s125 = sadd.s32 %s124, 1
    %p128 = scmp.eq.s32.totalorder %s22, 1
    %p129 = scmp.ne.s32.totalorder %s124, %s126
    %p130 = scmp.eq.s32.totalorder %s22, 0
    %p131 = por %p129, %p130
    %p132 = scmp.ne.s32.totalorder %s124, %s126
    %p133 = scmp.eq.s32.totalorder %s27, 1
    %p134 = por %p132, %p133
    %p135 = scmp.ne.s32.totalorder %s126, %s127
    %p136 = scmp.eq.s32.totalorder %s27, 0
    %p137 = por %p135, %p136
    %p138 = scmp.ne.s32.totalorder %s126, %s127
    %p139 = scmp.eq.s32.totalorder %s28, 1
    %p140 = por %p138, %p139
    %p142 = scmp.ne.s32.totalorder %s127, %s141
    %p143 = scmp.eq.s32.totalorder %s28, 0
    %p144 = por %p142, %p143
    %s146 = sadd.s32 %s145, 1
    %p149 = scmp.eq.s32.totalorder %s22, 1
    %p150 = scmp.ne.s32.totalorder %s145, %s147
    %p151 = scmp.eq.s32.totalorder %s22, 0
    %p152 = por %p150, %p151
    %p153 = scmp.ne.s32.totalorder %s145, %s147
    %p154 = scmp.eq.s32.totalorder %s27, 1
    %p155 = por %p153, %p154
    %p156 = scmp.ne.s32.totalorder %s147, %s148
    %p157 = scmp.eq.s32.totalorder %s27, 0
    %p158 = por %p156, %p157
    %p159 = scmp.ne.s32.totalorder %s147, %s148
    %p160 = scmp.eq.s32.totalorder %s28, 1
    %p161 = por %p159, %p160
    %p163 = scmp.ne.s32.totalorder %s148, %s162
    %p164 = scmp.eq.s32.totalorder %s28, 0
    %p165 = por %p163, %p164
    %s167 = sadd.s32 %s166, 1
    %p170 = scmp.eq.s32.totalorder %s22, 1
    %p171 = scmp.ne.s32.totalorder %s166, %s168
    %p172 = scmp.eq.s32.totalorder %s22, 0
    %p173 = por %p171, %p172
    %p174 = scmp.ne.s32.totalorder %s166, %s168
    %p175 = scmp.eq.s32.totalorder %s27, 1
    %p176 = por %p174, %p175
    %p177 = scmp.ne.s32.totalorder %s168, %s169
    %p178 = scmp.eq.s32.totalorder %s27, 0
    %p179 = por %p177, %p178
    %p180 = scmp.ne.s32.totalorder %s168, %s169
    %p181 = scmp.eq.s32.totalorder %s28, 1
    %p182 = por %p180, %p181
    %p184 = scmp.ne.s32.totalorder %s169, %s183
    %p185 = scmp.eq.s32.totalorder %s28, 0
    %p186 = por %p184, %p185
    %s188 = sadd.s32 %s187, 1
    %p191 = scmp.eq.s32.totalorder %s22, 1
    %p192 = scmp.ne.s32.totalorder %s187, %s189
    %p193 = scmp.eq.s32.totalorder %s22, 0
    %p194 = por %p192, %p193
    %p195 = scmp.ne.s32.totalorder %s187, %s189
    %p196 = scmp.eq.s32.totalorder %s27, 1
    %p197 = por %p195, %p196
    %p198 = scmp.ne.s32.totalorder %s189, %s190
    %p199 = scmp.eq.s32.totalorder %s27, 0
    %p200 = por %p198, %p199
    %p201 = scmp.ne.s32.totalorder %s189, %s190
    %p202 = scmp.eq.s32.totalorder %s28, 1
    %p203 = por %p201, %p202
    %p205 = scmp.ne.s32.totalorder %s190, %s204
    %p206 = scmp.eq.s32.totalorder %s28, 0
    %p207 = por %p205, %p206
    %s209 = sadd.s32 %s208, 1
    %p212 = scmp.eq.s32.totalorder %s22, 1
    %p213 = scmp.ne.s32.totalorder %s208, %s210
    %p214 = scmp.eq.s32.totalorder %s22, 0
    %p215 = por %p213, %p214
    %p216 = scmp.ne.s32.totalorder %s208, %s210
    %p217 = scmp.eq.s32.totalorder %s27, 1
    %p218 = por %p216, %p217
    %p219 = scmp.ne.s32.totalorder %s210, %s211
    %p220 = scmp.eq.s32.totalorder %s27, 0
    %p221 = por %p219, %p220
    %p222 = scmp.ne.s32.totalorder %s210, %s211
    %p223 = scmp.eq.s32.totalorder %s28, 1
    %p224 = por %p222, %p223
    %p226 = scmp.ne.s32.totalorder %s211, %s225
    %p227 = scmp.eq.s32.totalorder %s28, 0
    %p228 = por %p226, %p227
    %s230 = sadd.s32 %s229, 1
    %p233 = scmp.eq.s32.totalorder %s22, 1
    %p234 = scmp.ne.s32.totalorder %s229, %s231
    %p235 = scmp.eq.s32.totalorder %s22, 0
    %p236 = por %p234, %p235
    %p237 = scmp.ne.s32.totalorder %s229, %s231
    %p238 = scmp.eq.s32.totalorder %s27, 1
    %p239 = por %p237, %p238
    %p240 = scmp.ne.s32.totalorder %s231, %s232
    %p241 = scmp.eq.s32.totalorder %s27, 0
    %p242 = por %p240, %p241
    %p243 = scmp.ne.s32.totalorder %s231, %s232
    %p244 = scmp.eq.s32.totalorder %s28, 1
    %p245 = por %p243, %p244
    %p247 = scmp.ne.s32.totalorder %s232, %s246
    %p248 = scmp.eq.s32.totalorder %s28, 0
    %p249 = por %p247, %p248
    %s251 = sadd.s32 %s250, 1
    %p254 = scmp.eq.s32.totalorder %s22, 1
    %p255 = scmp.ne.s32.totalorder %s250, %s252
    %p256 = scmp.eq.s32.totalorder %s22, 0
    %p257 = por %p255, %p256
    %p258 = scmp.ne.s32.totalorder %s250, %s252
    %p259 = scmp.eq.s32.totalorder %s27, 1
    %p260 = por %p258, %p259
    %p261 = scmp.ne.s32.totalorder %s252, %s253
    %p262 = scmp.eq.s32.totalorder %s27, 0
    %p263 = por %p261, %p262
    %p264 = scmp.ne.s32.totalorder %s252, %s253
    %p265 = scmp.eq.s32.totalorder %s28, 1
    %p266 = por %p264, %p265
    %p268 = scmp.ne.s32.totalorder %s253, %s267
    %p269 = scmp.eq.s32.totalorder %s28, 0
    %p270 = por %p268, %p269
    %s272 = sadd.s32 %s271, 1
    %p275 = scmp.eq.s32.totalorder %s22, 1
    %p276 = scmp.ne.s32.totalorder %s271, %s273
    %p277 = scmp.eq.s32.totalorder %s22, 0
    %p278 = por %p276, %p277
    %p279 = scmp.ne.s32.totalorder %s271, %s273
    %p280 = scmp.eq.s32.totalorder %s27, 1
    %p281 = por %p279, %p280
    %p282 = scmp.ne.s32.totalorder %s273, %s274
    %p283 = scmp.eq.s32.totalorder %s27, 0
    %p284 = por %p282, %p283
    %p285 = scmp.ne.s32.totalorder %s273, %s274
    %p286 = scmp.eq.s32.totalorder %s28, 1
    %p287 = por %p285, %p286
    %p289 = scmp.ne.s32.totalorder %s274, %s288
    %p290 = scmp.eq.s32.totalorder %s28, 0
    %p291 = por %p289, %p290
    %s293 = sadd.s32 %s292, 1
    %p296 = scmp.eq.s32.totalorder %s22, 1
    %p297 = scmp.ne.s32.totalorder %s292, %s294
    %p298 = scmp.eq.s32.totalorder %s22, 0
    %p299 = por %p297, %p298
    %p300 = scmp.ne.s32.totalorder %s292, %s294
    %p301 = scmp.eq.s32.totalorder %s27, 1
    %p302 = por %p300, %p301
    %p303 = scmp.ne.s32.totalorder %s294, %s295
    %p304 = scmp.eq.s32.totalorder %s27, 0
    %p305 = por %p303, %p304
    %p306 = scmp.ne.s32.totalorder %s294, %s295
    %p307 = scmp.eq.s32.totalorder %s28, 1
    %p308 = por %p306, %p307
    %p310 = scmp.ne.s32.totalorder %s295, %s309
    %p311 = scmp.eq.s32.totalorder %s28, 0
    %p312 = por %p310, %p311
    %s314 = sadd.s32 %s313, 1
    %p317 = scmp.eq.s32.totalorder %s22, 1
    %p318 = scmp.ne.s32.totalorder %s313, %s315
    %p319 = scmp.eq.s32.totalorder %s22, 0
    %p320 = por %p318, %p319
    %p321 = scmp.ne.s32.totalorder %s313, %s315
    %p322 = scmp.eq.s32.totalorder %s27, 1
    %p323 = por %p321, %p322
    %p324 = scmp.ne.s32.totalorder %s315, %s316
    %p325 = scmp.eq.s32.totalorder %s27, 0
    %p326 = por %p324, %p325
    %p327 = scmp.ne.s32.totalorder %s315, %s316
    %p328 = scmp.eq.s32.totalorder %s28, 1
    %p329 = por %p327, %p328
    %p331 = scmp.ne.s32.totalorder %s316, %s330
    %p332 = scmp.eq.s32.totalorder %s28, 0
    %p333 = por %p331, %p332
    %s335 = sadd.s32 %s334, 1
    %p338 = scmp.eq.s32.totalorder %s22, 1
    %p339 = scmp.ne.s32.totalorder %s334, %s336
    %p340 = scmp.eq.s32.totalorder %s22, 0
    %p341 = por %p339, %p340
    %p342 = scmp.ne.s32.totalorder %s334, %s336
    %p343 = scmp.eq.s32.totalorder %s27, 1
    %p344 = por %p342, %p343
    %p345 = scmp.ne.s32.totalorder %s336, %s337
    %p346 = scmp.eq.s32.totalorder %s27, 0
    %p347 = por %p345, %p346
    %p348 = scmp.ne.s32.totalorder %s336, %s337
    %p349 = scmp.eq.s32.totalorder %s28, 1
    %p350 = por %p348, %p349
    %p352 = scmp.ne.s32.totalorder %s337, %s351
    %p353 = scmp.eq.s32.totalorder %s28, 0
    %p354 = por %p352, %p353
    %s356 = sadd.s32 %s355, 1
    %p359 = scmp.eq.s32.totalorder %s22, 1
    %p360 = scmp.ne.s32.totalorder %s355, %s357
    %p361 = scmp.eq.s32.totalorder %s22, 0
    %p362 = por %p360, %p361
    %p363 = scmp.ne.s32.totalorder %s355, %s357
    %p364 = scmp.eq.s32.totalorder %s27, 1
    %p365 = por %p363, %p364
    %p366 = scmp.ne.s32.totalorder %s357, %s358
    %p367 = scmp.eq.s32.totalorder %s27, 0
    %p368 = por %p366, %p367
    %p369 = scmp.ne.s32.totalorder %s357, %s358
    %p370 = scmp.eq.s32.totalorder %s28, 1
    %p371 = por %p369, %p370
    %p373 = scmp.ne.s32.totalorder %s358, %s372
    %p374 = scmp.eq.s32.totalorder %s28, 0
    %p375 = por %p373, %p374
    %s376 = ssub.s32 %s22, %s29
    %p377 = scmp.eq.s32.totalorder %s376, 0
    %s379 = sadd.s32 %s378, 1
    %s380 = scalar_select %p377, %s378, %s379
    %p383 = pneg %p377
    %p384 = scmp.eq.s32.totalorder %s22, 1
    %p385 = por %p383, %p384
    %p386 = scmp.ne.s32.totalorder %s378, %s381
    %p387 = scmp.eq.s32.totalorder %s22, 0
    %p388 = por %p386, %p387
    %p389 = scmp.ne.s32.totalorder %s378, %s381
    %p390 = scmp.eq.s32.totalorder %s27, 1
    %p391 = por %p389, %p390
    %p392 = scmp.ne.s32.totalorder %s381, %s382
    %p393 = scmp.eq.s32.totalorder %s27, 0
    %p394 = por %p392, %p393
    %p395 = scmp.ne.s32.totalorder %s381, %s382
    %p396 = scmp.eq.s32.totalorder %s28, 1
    %p397 = por %p395, %p396
    %p399 = scmp.ne.s32.totalorder %s382, %s398
    %p400 = scmp.eq.s32.totalorder %s28, 0
    %p401 = por %p399, %p400
    %p402 = scmp.le.s32.totalorder 1, %s22
    %p403 = scmp.lt.s32.totalorder %s22, 3
    %p404 = pnand %p402, %p403
    %p405 = pneg %p404
    // Predicated region
    $region9: #{tpu_custom_call.1} parent=5 // pred_check
      _
    $region10: #{tpu_custom_call.1} parent=5 // pred_check_branch
      %407 = sbr.rel (%p404) target = $region12
    $region11: #{tpu_custom_call.1} parent=5 // pred_region
      %s408 = ssub.s32 %s22, 1
      // Predicated region
      $region13: #{tpu_custom_call.1} parent=11 // pred_check
        %p409 = pneg %p69
      $region14: #{tpu_custom_call.1} parent=11 // pred_check_branch
        %411 = sbr.rel (%p409) target = $region16
      $region15: #{tpu_custom_call.1} parent=11 // pred_region
        _
      $region16: #{tpu_custom_call.1} parent=11 // pred_fallthru
        _
      // Predicated region
      $region17: #{tpu_custom_call.1} parent=11 // pred_check
        %p412 = pneg %p90
      $region18: #{tpu_custom_call.1} parent=11 // pred_check_branch
        %414 = sbr.rel (%p412) target = $region20
      $region19: #{tpu_custom_call.1} parent=11 // pred_region
        _
      $region20: #{tpu_custom_call.1} parent=11 // pred_fallthru
        _
      // Predicated region
      $region21: #{tpu_custom_call.1} parent=11 // pred_check
        %p415 = pneg %p137
      $region22: #{tpu_custom_call.1} parent=11 // pred_check_branch
        %417 = sbr.rel (%p415) target = $region24
      $region23: #{tpu_custom_call.1} parent=11 // pred_region
        _
      $region24: #{tpu_custom_call.1} parent=11 // pred_fallthru
        _
      // Predicated region
      $region25: #{tpu_custom_call.1} parent=11 // pred_check
        %p418 = pneg %p158
      $region26: #{tpu_custom_call.1} parent=11 // pred_check_branch
        %420 = sbr.rel (%p418) target = $region28
      $region27: #{tpu_custom_call.1} parent=11 // pred_region
        _
      $region28: #{tpu_custom_call.1} parent=11 // pred_fallthru
        _
      // Predicated region
      $region29: #{tpu_custom_call.1} parent=11 // pred_check
        %p421 = pneg %p179
      $region30: #{tpu_custom_call.1} parent=11 // pred_check_branch
        %423 = sbr.rel (%p421) target = $region32
      $region31: #{tpu_custom_call.1} parent=11 // pred_region
        _
      $region32: #{tpu_custom_call.1} parent=11 // pred_fallthru
        _
      // Predicated region
      $region33: #{tpu_custom_call.1} parent=11 // pred_check
        %p424 = pneg %p200
      $region34: #{tpu_custom_call.1} parent=11 // pred_check_branch
        %426 = sbr.rel (%p424) target = $region36
      $region35: #{tpu_custom_call.1} parent=11 // pred_region
        _
      $region36: #{tpu_custom_call.1} parent=11 // pred_fallthru
        _
      // Predicated region
      $region37: #{tpu_custom_call.1} parent=11 // pred_check
        %p427 = pneg %p221
      $region38: #{tpu_custom_call.1} parent=11 // pred_check_branch
        %429 = sbr.rel (%p427) target = $region40
      $region39: #{tpu_custom_call.1} parent=11 // pred_region
        _
      $region40: #{tpu_custom_call.1} parent=11 // pred_fallthru
        _
      // Predicated region
      $region41: #{tpu_custom_call.1} parent=11 // pred_check
        %p430 = pneg %p242
      $region42: #{tpu_custom_call.1} parent=11 // pred_check_branch
        %432 = sbr.rel (%p430) target = $region44
      $region43: #{tpu_custom_call.1} parent=11 // pred_region
        _
      $region44: #{tpu_custom_call.1} parent=11 // pred_fallthru
        _
      // Predicated region
      $region45: #{tpu_custom_call.1} parent=11 // pred_check
        %p433 = pneg %p263
      $region46: #{tpu_custom_call.1} parent=11 // pred_check_branch
        %435 = sbr.rel (%p433) target = $region48
      $region47: #{tpu_custom_call.1} parent=11 // pred_region
        _
      $region48: #{tpu_custom_call.1} parent=11 // pred_fallthru
        _
      // Predicated region
      $region49: #{tpu_custom_call.1} parent=11 // pred_check
        %p436 = pneg %p284
      $region50: #{tpu_custom_call.1} parent=11 // pred_check_branch
        %438 = sbr.rel (%p436) target = $region52
      $region51: #{tpu_custom_call.1} parent=11 // pred_region
        _
      $region52: #{tpu_custom_call.1} parent=11 // pred_fallthru
        _
      // Predicated region
      $region53: #{tpu_custom_call.1} parent=11 // pred_check
        %p439 = pneg %p305
      $region54: #{tpu_custom_call.1} parent=11 // pred_check_branch
        %441 = sbr.rel (%p439) target = $region56
      $region55: #{tpu_custom_call.1} parent=11 // pred_region
        _
      $region56: #{tpu_custom_call.1} parent=11 // pred_fallthru
        _
      // Predicated region
      $region57: #{tpu_custom_call.1} parent=11 // pred_check
        %p442 = pneg %p326
      $region58: #{tpu_custom_call.1} parent=11 // pred_check_branch
        %444 = sbr.rel (%p442) target = $region60
      $region59: #{tpu_custom_call.1} parent=11 // pred_region
        _
      $region60: #{tpu_custom_call.1} parent=11 // pred_fallthru
        _
      // Predicated region
      $region61: #{tpu_custom_call.1} parent=11 // pred_check
        %p445 = pneg %p347
      $region62: #{tpu_custom_call.1} parent=11 // pred_check_branch
        %447 = sbr.rel (%p445) target = $region64
      $region63: #{tpu_custom_call.1} parent=11 // pred_region
        _
      $region64: #{tpu_custom_call.1} parent=11 // pred_fallthru
        _
      // Predicated region
      $region65: #{tpu_custom_call.1} parent=11 // pred_check
        %p448 = pneg %p368
      $region66: #{tpu_custom_call.1} parent=11 // pred_check_branch
        %450 = sbr.rel (%p448) target = $region68
      $region67: #{tpu_custom_call.1} parent=11 // pred_region
        _
      $region68: #{tpu_custom_call.1} parent=11 // pred_fallthru
        _
    $region12: #{tpu_custom_call.1} parent=5 // pred_fallthru
      _
    %p451 = scmp.lt.s32.totalorder %s22, 2
    // Predicated region
    $region69: #{tpu_custom_call.1} parent=5 // pred_check
      %p452 = pneg %p451
    $region70: #{tpu_custom_call.1} parent=5 // pred_check_branch
      %454 = sbr.rel (%p452) target = $region72
    $region71: #{tpu_custom_call.1} parent=5 // pred_region
      // Predicated region
      $region73: #{tpu_custom_call.1} parent=71 // pred_check
        %p455 = pneg %p42
      $region74: #{tpu_custom_call.1} parent=71 // pred_check_branch
        %457 = sbr.rel (%p455) target = $region76
      $region75: #{tpu_custom_call.1} parent=71 // pred_region
        %s458 = smul.u32 4, %s22
        %p459 = scmp.lt.s32.totalorder %s458, 7
        %s460 = scalar_select %p459, %s458, 7
        %s461 = smul.addr %s460, 8
        %s462 = scalar_lea.vmem %s0, %s461
        %s463 = smul.u32 4, %s22
      $region76: #{tpu_custom_call.1} parent=71 // pred_fallthru
        _
      // Predicated region
      $region77: #{tpu_custom_call.1} parent=71 // pred_check
        %p464 = pneg %p110
      $region78: #{tpu_custom_call.1} parent=71 // pred_check_branch
        %466 = sbr.rel (%p464) target = $region80
      $region79: #{tpu_custom_call.1} parent=71 // pred_region
        %s467 = smul.u32 4, %s22
        %p468 = scmp.lt.s32.totalorder %s467, 7
        %s469 = scalar_select %p468, %s467, 7
        %s470 = smul.addr %s469, 8
        %s471 = scalar_lea.vmem %s3, %s470
        %s472 = smul.u32 4, %s22
      $region80: #{tpu_custom_call.1} parent=71 // pred_fallthru
        _
    $region72: #{tpu_custom_call.1} parent=5 // pred_fallthru
      _
    %p473 = scmp.le.s32.totalorder 1, %s22
    %p474 = scmp.lt.s32.totalorder %s22, 3
    %p475 = pnand %p473, %p474
    %p476 = pneg %p475
    // Predicated region
    $region81: #{tpu_custom_call.1} parent=5 // pred_check
      _
    $region82: #{tpu_custom_call.1} parent=5 // pred_check_branch
      %478 = sbr.rel (%p475) target = $region84
    $region83: #{tpu_custom_call.1} parent=5 // pred_region
      %s479 = ssub.s32 %s22, 1
      %s480 = smul.u32 4, %s27
      %p481 = scmp.lt.s32.totalorder %s480, 7
      %s482 = scalar_select %p481, %s480, 7
      %s483 = smul.addr %s482, 8
      %s484 = scalar_lea.vmem %s0, %s483
      %p485 = pneg %p48
      %p486 = pneg %p45
      %p487 = pneg %p69
      %p488 = pneg %p66
      %p489 = pneg %p90
      %p490 = pneg %p87
      %s491 = smul.u32 4, %s27
      %p492 = scmp.lt.s32.totalorder %s491, 7
      %s493 = scalar_select %p492, %s491, 7
      %s494 = smul.addr %s493, 8
      %s495 = scalar_lea.vmem %s3, %s494
      %p496 = pneg %p116
      %p497 = pneg %p113
      %p498 = pneg %p137
      %p499 = pneg %p134
      %p500 = pneg %p158
      %p501 = pneg %p155
      %p502 = pneg %p179
      %p503 = pneg %p176
      %p504 = pneg %p200
      %p505 = pneg %p197
      %p506 = pneg %p221
      %p507 = pneg %p218
      %p508 = pneg %p242
      %p509 = pneg %p239
      %p510 = pneg %p263
      %p511 = pneg %p260
      %p512 = pneg %p284
      %p513 = pneg %p281
      %p514 = pneg %p305
      %p515 = pneg %p302
      %p516 = pneg %p326
      %p517 = pneg %p323
      %p518 = pneg %p347
      %p519 = pneg %p344
      %p520 = pneg %p368
      %p521 = pneg %p365
      %p522 = pneg %p394
      %p523 = pneg %p391
      %s524 = smul.u32 4, %s27
      %p525 = scmp.lt.s32.totalorder %s524, 7
      %s526 = scalar_select %p525, %s524, 7
      %s527 = smul.addr %s526, 8
      %s528 = scalar_lea.vmem %s16, %s527
      %s529 = smul.u32 4, %s27
      %p530 = scmp.lt.s32.totalorder %s529, 7
      %s531 = scalar_select %p530, %s529, 7
      %s532 = smul.addr %s531, 8
      %s533 = scalar_lea.vmem %s0, %s532
      %s534 = smul.u32 4, %s27
      %s535 = smul.u32 4, %s27
      %p536 = scmp.lt.s32.totalorder %s535, 7
      %s537 = scalar_select %p536, %s535, 7
      %s538 = smul.addr %s537, 8
      %s539 = scalar_lea.vmem %s3, %s538
      %s540 = smul.u32 4, %s27
      %s541 = smul.u32 4, %s27
      %p542 = scmp.lt.s32.totalorder %s541, 7
      %s543 = scalar_select %p542, %s541, 7
      %s544 = smul.addr %s543, 8
      %s545 = scalar_lea.vmem %s16, %s544
      %s546 = smul.u32 4, %s27
      %v548 = vld [vmem:[%s533] sm:$0xff]
      %v549 = vld [vmem:[%s533 + $0x8] sm:$0xff]
      %v550 = vld [vmem:[%s533 + $0x10] sm:$0xff]
      %v551 = vld [vmem:[%s533 + $0x18] sm:$0xff]
      %v552 = vpack.c.bf16 %v549, %v548
      %v553 = vpack.c.bf16 %v551, %v550
      %v554 = vlaneseq
      %v555 = vand.u32 %v554, 127
      %v556 = vld [vmem:[%s539] sm:$0xff]
      %v557 = vld [vmem:[%s539 + $0x8] sm:$0xff]
      %v558 = vld [vmem:[%s539 + $0x10] sm:$0xff]
      %v559 = vld [vmem:[%s539 + $0x18] sm:$0xff]
      %560 = vset.pattern.permute.xlu0 0
      %561 = vperm.xlu0 %560, %v556
      %v562 = vpop.permute.xlu0 %561
      %563 = vset.pattern.permute.xlu0 0
      %564 = vperm.xlu0 %563, %v557
      %v565 = vpop.permute.xlu0 %564
      %566 = vset.pattern.permute.xlu0 0
      %567 = vperm.xlu0 %566, %v558
      %v568 = vpop.permute.xlu0 %567
      %569 = vset.pattern.permute.xlu0 0
      %570 = vperm.xlu0 %569, %v559
      %v571 = vpop.permute.xlu0 %570
      %vm572 = vcmp.eq.s32.totalorder %v555, %v562
      %vm573 = vcmp.eq.s32.totalorder %v555, %v565
      %vm574 = vcmp.eq.s32.totalorder %v555, %v568
      %vm575 = vcmp.eq.s32.totalorder %v555, %v571
      %576 = vset.pattern.permute.xlu0 1
      %577 = vperm.xlu0 %576, %v556
      %v578 = vpop.permute.xlu0 %577
      %579 = vset.pattern.permute.xlu0 1
      %580 = vperm.xlu0 %579, %v557
      %v581 = vpop.permute.xlu0 %580
      %582 = vset.pattern.permute.xlu0 1
      %583 = vperm.xlu0 %582, %v558
      %v584 = vpop.permute.xlu0 %583
      %585 = vset.pattern.permute.xlu0 1
      %586 = vperm.xlu0 %585, %v559
      %v587 = vpop.permute.xlu0 %586
      %vm588 = vcmp.eq.s32.totalorder %v555, %v578
      %vm589 = vcmp.eq.s32.totalorder %v555, %v581
      %vm590 = vcmp.eq.s32.totalorder %v555, %v584
      %vm591 = vcmp.eq.s32.totalorder %v555, %v587
      %vm592 = vmor %vm572, %vm588
      %vm593 = vmor %vm573, %vm589
      %vm594 = vmor %vm574, %vm590
      %vm595 = vmor %vm575, %vm591
      %596 = vset.pattern.permute.xlu0 2
      %597 = vperm.xlu0 %596, %v556
      %v598 = vpop.permute.xlu0 %597
      %599 = vset.pattern.permute.xlu0 2
      %600 = vperm.xlu0 %599, %v557
      %v601 = vpop.permute.xlu0 %600
      %602 = vset.pattern.permute.xlu0 2
      %603 = vperm.xlu0 %602, %v558
      %v604 = vpop.permute.xlu0 %603
      %605 = vset.pattern.permute.xlu0 2
      %606 = vperm.xlu0 %605, %v559
      %v607 = vpop.permute.xlu0 %606
      %vm608 = vcmp.eq.s32.totalorder %v555, %v598
      %vm609 = vcmp.eq.s32.totalorder %v555, %v601
      %vm610 = vcmp.eq.s32.totalorder %v555, %v604
      %vm611 = vcmp.eq.s32.totalorder %v555, %v607
      %vm612 = vmor %vm592, %vm608
      %vm613 = vmor %vm593, %vm609
      %vm614 = vmor %vm594, %vm610
      %vm615 = vmor %vm595, %vm611
      %616 = vset.pattern.permute.xlu0 3
      %617 = vperm.xlu0 %616, %v556
      %v618 = vpop.permute.xlu0 %617
      %619 = vset.pattern.permute.xlu0 3
      %620 = vperm.xlu0 %619, %v557
      %v621 = vpop.permute.xlu0 %620
      %622 = vset.pattern.permute.xlu0 3
      %623 = vperm.xlu0 %622, %v558
      %v624 = vpop.permute.xlu0 %623
      %625 = vset.pattern.permute.xlu0 3
      %626 = vperm.xlu0 %625, %v559
      %v627 = vpop.permute.xlu0 %626
      %vm628 = vcmp.eq.s32.totalorder %v555, %v618
      %vm629 = vcmp.eq.s32.totalorder %v555, %v621
      %vm630 = vcmp.eq.s32.totalorder %v555, %v624
      %vm631 = vcmp.eq.s32.totalorder %v555, %v627
      %vm632 = vmor %vm612, %vm628
      %vm633 = vmor %vm613, %vm629
      %vm634 = vmor %vm614, %vm630
      %vm635 = vmor %vm615, %vm631
      %636 = vset.pattern.permute.xlu0 4
      %637 = vperm.xlu0 %636, %v556
      %v638 = vpop.permute.xlu0 %637
      %639 = vset.pattern.permute.xlu0 4
      %640 = vperm.xlu0 %639, %v557
      %v641 = vpop.permute.xlu0 %640
      %642 = vset.pattern.permute.xlu0 4
      %643 = vperm.xlu0 %642, %v558
      %v644 = vpop.permute.xlu0 %643
      %645 = vset.pattern.permute.xlu0 4
      %646 = vperm.xlu0 %645, %v559
      %v647 = vpop.permute.xlu0 %646
      %vm648 = vcmp.eq.s32.totalorder %v555, %v638
      %vm649 = vcmp.eq.s32.totalorder %v555, %v641
      %vm650 = vcmp.eq.s32.totalorder %v555, %v644
      %vm651 = vcmp.eq.s32.totalorder %v555, %v647
      %vm652 = vmor %vm632, %vm648
      %vm653 = vmor %vm633, %vm649
      %vm654 = vmor %vm634, %vm650
      %vm655 = vmor %vm635, %vm651
      %656 = vset.pattern.permute.xlu0 5
      %657 = vperm.xlu0 %656, %v556
      %v658 = vpop.permute.xlu0 %657
      %659 = vset.pattern.permute.xlu0 5
      %660 = vperm.xlu0 %659, %v557
      %v661 = vpop.permute.xlu0 %660
      %662 = vset.pattern.permute.xlu0 5
      %663 = vperm.xlu0 %662, %v558
      %v664 = vpop.permute.xlu0 %663
      %665 = vset.pattern.permute.xlu0 5
      %666 = vperm.xlu0 %665, %v559
      %v667 = vpop.permute.xlu0 %666
      %vm668 = vcmp.eq.s32.totalorder %v555, %v658
      %vm669 = vcmp.eq.s32.totalorder %v555, %v661
      %vm670 = vcmp.eq.s32.totalorder %v555, %v664
      %vm671 = vcmp.eq.s32.totalorder %v555, %v667
      %vm672 = vmor %vm652, %vm668
      %vm673 = vmor %vm653, %vm669
      %vm674 = vmor %vm654, %vm670
      %vm675 = vmor %vm655, %vm671
      %676 = vset.pattern.permute.xlu0 6
      %677 = vperm.xlu0 %676, %v556
      %v678 = vpop.permute.xlu0 %677
      %679 = vset.pattern.permute.xlu0 6
      %680 = vperm.xlu0 %679, %v557
      %v681 = vpop.permute.xlu0 %680
      %682 = vset.pattern.permute.xlu0 6
      %683 = vperm.xlu0 %682, %v558
      %v684 = vpop.permute.xlu0 %683
      %685 = vset.pattern.permute.xlu0 6
      %686 = vperm.xlu0 %685, %v559
      %v687 = vpop.permute.xlu0 %686
      %vm688 = vcmp.eq.s32.totalorder %v555, %v678
      %vm689 = vcmp.eq.s32.totalorder %v555, %v681
      %vm690 = vcmp.eq.s32.totalorder %v555, %v684
      %vm691 = vcmp.eq.s32.totalorder %v555, %v687
      %vm692 = vmor %vm672, %vm688
      %vm693 = vmor %vm673, %vm689
      %vm694 = vmor %vm674, %vm690
      %vm695 = vmor %vm675, %vm691
      %696 = vset.pattern.permute.xlu0 7
      %697 = vperm.xlu0 %696, %v556
      %v698 = vpop.permute.xlu0 %697
      %699 = vset.pattern.permute.xlu0 7
      %700 = vperm.xlu0 %699, %v557
      %v701 = vpop.permute.xlu0 %700
      %702 = vset.pattern.permute.xlu0 7
      %703 = vperm.xlu0 %702, %v558
      %v704 = vpop.permute.xlu0 %703
      %705 = vset.pattern.permute.xlu0 7
      %706 = vperm.xlu0 %705, %v559
      %v707 = vpop.permute.xlu0 %706
      %vm708 = vcmp.eq.s32.totalorder %v555, %v698
      %vm709 = vcmp.eq.s32.totalorder %v555, %v701
      %vm710 = vcmp.eq.s32.totalorder %v555, %v704
      %vm711 = vcmp.eq.s32.totalorder %v555, %v707
      %vm712 = vmor %vm692, %vm708
      %vm713 = vmor %vm693, %vm709
      %vm714 = vmor %vm694, %vm710
      %vm715 = vmor %vm695, %vm711
      %v716 = vld [vmem:[%s4] sm:$0xff]
      %v717 = vld [vmem:[%s4 + $0x8] sm:$0xff]
      %v718 = vld [vmem:[%s4 + $0x10] sm:$0xff]
      %v719 = vld [vmem:[%s4 + $0x18] sm:$0xff]
      %v720 = vld [vmem:[%s5] sm:$0xff]
      %v722 = vperm.slane %v720, 0
      %v723 = vperm.slane %v720, 1
      %v724 = vperm.slane %v720, 2
      %v725 = vperm.slane %v720, 3
      %v726 = vperm.slane %v720, 4
      %v727 = vperm.slane %v720, 5
      %v728 = vperm.slane %v720, 6
      %v729 = vperm.slane %v720, 7
      %v742 = vunpack.c.l.b16 %v716
      %v743 = vunpack.c.h.b16 %v716
      %v744 = vunpack.c.l.b16 %v717
      %v745 = vunpack.c.h.b16 %v717
      %v746 = vunpack.c.l.b16 %v718
      %v747 = vunpack.c.h.b16 %v718
      %v748 = vunpack.c.l.b16 %v719
      %v749 = vunpack.c.h.b16 %v719
      %v750 = vpack.c.b16 %v742, %v742
      %v751 = vpack.c.b16 %v743, %v743
      %v752 = vpack.c.b16 %v744, %v744
      %v753 = vpack.c.b16 %v745, %v745
      %v754 = vpack.c.b16 %v746, %v746
      %v755 = vpack.c.b16 %v747, %v747
      %v756 = vpack.c.b16 %v748, %v748
      %v757 = vpack.c.b16 %v749, %v749
      %vm758 = vcmask 64512
      %v760 = vsel %vm758, %v552, 0
      %v763 = vsel %vm758, %v553, 0
      %vm765 = vcmask 1043456
      %v767 = vsel %vm765, %v750, 0
      %v770 = vsel %vm765, %v751, 0
      %v773 = vsel %vm765, %v752, 0
      %v776 = vsel %vm765, %v753, 0
      %v779 = vsel %vm765, %v754, 0
      %v782 = vsel %vm765, %v755, 0
      %v785 = vsel %vm765, %v756, 0
      %v788 = vsel %vm765, %v757, 0
      %790 = vmatpush.bf16.msra.mxu0 0
      %791 = vmatpush.bf16.msra.mxu0 0
      %792 = vmatpush.bf16.msra.mxu0 0
      %793 = vmatpush.bf16.msra.mxu0 0
      %794 = vmatpush.bf16.msra.mxu0 0
      %795 = vmatpush.bf16.msra.mxu0 0
      %796 = vmatpush.bf16.msra.mxu0 0
      %797 = vmatpush.bf16.msra.mxu0 %v767
      %798 = vmatmul.bf16.gmra.mxu0 %v760
      %v799 = vpop.f32.mrf.mxu0
      %v800 = vadd.f32 %v722, %v799
      %v801 = vpop.f32.mrf.mxu0
      %v802 = vadd.f32 %v722, %v801
      %803 = vmatmul.bf16.gmra.mxu0 %v763
      %v804 = vpop.f32.mrf.mxu0
      %v805 = vadd.f32 %v722, %v804
      %v806 = vpop.f32.mrf.mxu0
      %v807 = vadd.f32 %v722, %v806
      %808 = vdwg.mxu0
      %809 = vmatpush.bf16.msra.mxu0 0
      %810 = vmatpush.bf16.msra.mxu0 0
      %811 = vmatpush.bf16.msra.mxu0 0
      %812 = vmatpush.bf16.msra.mxu0 0
      %813 = vmatpush.bf16.msra.mxu0 0
      %814 = vmatpush.bf16.msra.mxu0 0
      %815 = vmatpush.bf16.msra.mxu0 0
      %816 = vmatpush.bf16.msra.mxu0 %v770
      %817 = vmatmul.bf16.gmra.mxu0 %v760
      %v818 = vpop.f32.mrf.mxu0
      %v819 = vadd.f32 %v723, %v818
      %v820 = vpop.f32.mrf.mxu0
      %v821 = vadd.f32 %v723, %v820
      %822 = vmatmul.bf16.gmra.mxu0 %v763
      %v823 = vpop.f32.mrf.mxu0
      %v824 = vadd.f32 %v723, %v823
      %v825 = vpop.f32.mrf.mxu0
      %v826 = vadd.f32 %v723, %v825
      %827 = vdwg.mxu0
      %828 = vmatpush.bf16.msra.mxu0 0
      %829 = vmatpush.bf16.msra.mxu0 0
      %830 = vmatpush.bf16.msra.mxu0 0
      %831 = vmatpush.bf16.msra.mxu0 0
      %832 = vmatpush.bf16.msra.mxu0 0
      %833 = vmatpush.bf16.msra.mxu0 0
      %834 = vmatpush.bf16.msra.mxu0 0
      %835 = vmatpush.bf16.msra.mxu0 %v773
      %836 = vmatmul.bf16.gmra.mxu0 %v760
      %v837 = vpop.f32.mrf.mxu0
      %v838 = vadd.f32 %v724, %v837
      %v839 = vpop.f32.mrf.mxu0
      %v840 = vadd.f32 %v724, %v839
      %841 = vmatmul.bf16.gmra.mxu0 %v763
      %v842 = vpop.f32.mrf.mxu0
      %v843 = vadd.f32 %v724, %v842
      %v844 = vpop.f32.mrf.mxu0
      %v845 = vadd.f32 %v724, %v844
      %846 = vdwg.mxu0
      %847 = vmatpush.bf16.msra.mxu0 0
      %848 = vmatpush.bf16.msra.mxu0 0
      %849 = vmatpush.bf16.msra.mxu0 0
      %850 = vmatpush.bf16.msra.mxu0 0
      %851 = vmatpush.bf16.msra.mxu0 0
      %852 = vmatpush.bf16.msra.mxu0 0
      %853 = vmatpush.bf16.msra.mxu0 0
      %854 = vmatpush.bf16.msra.mxu0 %v776
      %855 = vmatmul.bf16.gmra.mxu0 %v760
      %v856 = vpop.f32.mrf.mxu0
      %v857 = vadd.f32 %v725, %v856
      %v858 = vpop.f32.mrf.mxu0
      %v859 = vadd.f32 %v725, %v858
      %860 = vmatmul.bf16.gmra.mxu0 %v763
      %v861 = vpop.f32.mrf.mxu0
      %v862 = vadd.f32 %v725, %v861
      %v863 = vpop.f32.mrf.mxu0
      %v864 = vadd.f32 %v725, %v863
      %865 = vdwg.mxu0
      %866 = vmatpush.bf16.msra.mxu0 0
      %867 = vmatpush.bf16.msra.mxu0 0
      %868 = vmatpush.bf16.msra.mxu0 0
      %869 = vmatpush.bf16.msra.mxu0 0
      %870 = vmatpush.bf16.msra.mxu0 0
      %871 = vmatpush.bf16.msra.mxu0 0
      %872 = vmatpush.bf16.msra.mxu0 0
      %873 = vmatpush.bf16.msra.mxu0 %v779
      %874 = vmatmul.bf16.gmra.mxu0 %v760
      %v875 = vpop.f32.mrf.mxu0
      %v876 = vadd.f32 %v726, %v875
      %v877 = vpop.f32.mrf.mxu0
      %v878 = vadd.f32 %v726, %v877
      %879 = vmatmul.bf16.gmra.mxu0 %v763
      %v880 = vpop.f32.mrf.mxu0
      %v881 = vadd.f32 %v726, %v880
      %v882 = vpop.f32.mrf.mxu0
      %v883 = vadd.f32 %v726, %v882
      %884 = vdwg.mxu0
      %885 = vmatpush.bf16.msra.mxu0 0
      %886 = vmatpush.bf16.msra.mxu0 0
      %887 = vmatpush.bf16.msra.mxu0 0
      %888 = vmatpush.bf16.msra.mxu0 0
      %889 = vmatpush.bf16.msra.mxu0 0
      %890 = vmatpush.bf16.msra.mxu0 0
      %891 = vmatpush.bf16.msra.mxu0 0
      %892 = vmatpush.bf16.msra.mxu0 %v782
      %893 = vmatmul.bf16.gmra.mxu0 %v760
      %v894 = vpop.f32.mrf.mxu0
      %v895 = vadd.f32 %v727, %v894
      %v896 = vpop.f32.mrf.mxu0
      %v897 = vadd.f32 %v727, %v896
      %898 = vmatmul.bf16.gmra.mxu0 %v763
      %v899 = vpop.f32.mrf.mxu0
      %v900 = vadd.f32 %v727, %v899
      %v901 = vpop.f32.mrf.mxu0
      %v902 = vadd.f32 %v727, %v901
      %903 = vdwg.mxu0
      %904 = vmatpush.bf16.msra.mxu0 0
      %905 = vmatpush.bf16.msra.mxu0 0
      %906 = vmatpush.bf16.msra.mxu0 0
      %907 = vmatpush.bf16.msra.mxu0 0
      %908 = vmatpush.bf16.msra.mxu0 0
      %909 = vmatpush.bf16.msra.mxu0 0
      %910 = vmatpush.bf16.msra.mxu0 0
      %911 = vmatpush.bf16.msra.mxu0 %v785
      %912 = vmatmul.bf16.gmra.mxu0 %v760
      %v913 = vpop.f32.mrf.mxu0
      %v914 = vadd.f32 %v728, %v913
      %v915 = vpop.f32.mrf.mxu0
      %v916 = vadd.f32 %v728, %v915
      %917 = vmatmul.bf16.gmra.mxu0 %v763
      %v918 = vpop.f32.mrf.mxu0
      %v919 = vadd.f32 %v728, %v918
      %v920 = vpop.f32.mrf.mxu0
      %v921 = vadd.f32 %v728, %v920
      %922 = vdwg.mxu0
      %923 = vmatpush.bf16.msra.mxu0 0
      %924 = vmatpush.bf16.msra.mxu0 0
      %925 = vmatpush.bf16.msra.mxu0 0
      %926 = vmatpush.bf16.msra.mxu0 0
      %927 = vmatpush.bf16.msra.mxu0 0
      %928 = vmatpush.bf16.msra.mxu0 0
      %929 = vmatpush.bf16.msra.mxu0 0
      %930 = vmatpush.bf16.msra.mxu0 %v788
      %931 = vmatmul.bf16.gmra.mxu0 %v760
      %v932 = vpop.f32.mrf.mxu0
      %v933 = vadd.f32 %v729, %v932
      %v934 = vpop.f32.mrf.mxu0
      %v935 = vadd.f32 %v729, %v934
      %936 = vmatmul.bf16.gmra.mxu0 %v763
      %v937 = vpop.f32.mrf.mxu0
      %v938 = vadd.f32 %v729, %v937
      %v939 = vpop.f32.mrf.mxu0
      %v940 = vadd.f32 %v729, %v939
      %941 = vdwg.mxu0
      %v942 = vpack.c.bf16 %v819, %v800
      %v943 = vpack.c.bf16 %v857, %v838
      %v944 = vpack.c.bf16 %v895, %v876
      %v945 = vpack.c.bf16 %v933, %v914
      %v946 = vpack.c.bf16 %v821, %v802
      %v947 = vpack.c.bf16 %v859, %v840
      %v948 = vpack.c.bf16 %v897, %v878
      %v949 = vpack.c.bf16 %v935, %v916
      %v950 = vpack.c.bf16 %v824, %v805
      %v951 = vpack.c.bf16 %v862, %v843
      %v952 = vpack.c.bf16 %v900, %v881
      %v953 = vpack.c.bf16 %v938, %v919
      %v954 = vpack.c.bf16 %v826, %v807
      %v955 = vpack.c.bf16 %v864, %v845
      %v956 = vpack.c.bf16 %v902, %v883
      %v957 = vpack.c.bf16 %v940, %v921
      %v958 = vld [vmem:[%s1] sm:$0xf]
      %v959 = vld [vmem:[%s1 + $0x4] sm:$0xf]
      %v960 = vld [vmem:[%s1 + $0x8] sm:$0xf]
      %v961 = vld [vmem:[%s1 + $0xc] sm:$0xf]
      %v962 = vld [vmem:[%s1 + $0x10] sm:$0xf]
      %v963 = vld [vmem:[%s1 + $0x14] sm:$0xf]
      %v964 = vld [vmem:[%s1 + $0x18] sm:$0xf]
      %v965 = vld [vmem:[%s1 + $0x1c] sm:$0xf]
      %v966 = vld [vmem:[%s1 + $0x20] sm:$0xf]
      %v967 = vld [vmem:[%s1 + $0x24] sm:$0xf]
      %v968 = vld [vmem:[%s1 + $0x28] sm:$0xf]
      %v969 = vld [vmem:[%s1 + $0x2c] sm:$0xf]
      %v970 = vld [vmem:[%s1 + $0x30] sm:$0xf]
      %v971 = vld [vmem:[%s1 + $0x34] sm:$0xf]
      %v972 = vld [vmem:[%s1 + $0x38] sm:$0xf]
      %v973 = vld [vmem:[%s1 + $0x3c] sm:$0xf]
      %v978 = vunpack.c.l.b16 %v942
      %v979 = vunpack.c.l.b16 %v946
      %v980 = vunpack.c.l.b16 %v950
      %v981 = vunpack.c.l.b16 %v954
      %v982 = vpack.c.b16 %v979, %v978
      %v983 = vpack.c.b16 %v981, %v980
      %v1002 = vunpack.c.l.b16 %v958
      %v1003 = vunpack.c.l.b16 %v959
      %v1004 = vunpack.c.l.b16 %v960
      %v1005 = vunpack.c.l.b16 %v961
      %v1006 = vunpack.c.l.b16 %v962
      %v1007 = vunpack.c.l.b16 %v963
      %v1008 = vunpack.c.l.b16 %v964
      %v1009 = vunpack.c.l.b16 %v965
      %v1010 = vunpack.c.l.b16 %v966
      %v1011 = vunpack.c.l.b16 %v967
      %v1012 = vunpack.c.l.b16 %v968
      %v1013 = vunpack.c.l.b16 %v969
      %v1014 = vunpack.c.l.b16 %v970
      %v1015 = vunpack.c.l.b16 %v971
      %v1016 = vunpack.c.l.b16 %v972
      %v1017 = vunpack.c.l.b16 %v973
      %v1018 = vpack.c.b16 %v1003, %v1002
      %v1019 = vpack.c.b16 %v1005, %v1004
      %v1020 = vpack.c.b16 %v1007, %v1006
      %v1021 = vpack.c.b16 %v1009, %v1008
      %v1022 = vpack.c.b16 %v1011, %v1010
      %v1023 = vpack.c.b16 %v1013, %v1012
      %v1024 = vpack.c.b16 %v1015, %v1014
      %v1025 = vpack.c.b16 %v1017, %v1016
      %1034 = vmatpush.bf16.msra.mxu0 %v1025
      %1035 = vmatpush.bf16.msra.mxu0 %v1024
      %1036 = vmatpush.bf16.msra.mxu0 %v1023
      %1037 = vmatpush.bf16.msra.mxu0 %v1022
      %1038 = vmatpush.bf16.msra.mxu0 %v1021
      %1039 = vmatpush.bf16.msra.mxu0 %v1020
      %1040 = vmatpush.bf16.msra.mxu0 %v1019
      %1041 = vmatpush.bf16.msra.mxu0 %v1018
      %1042 = vmatmul.bf16.gmra.mxu0 %v982
      %v1043 = vpop.f32.mrf.mxu0
      %v1044 = vadd.f32 0.0, %v1043
      %v1045 = vpop.f32.mrf.mxu0
      %v1046 = vadd.f32 0.0, %v1045
      %1047 = vmatmul.bf16.gmra.mxu0 %v983
      %v1048 = vpop.f32.mrf.mxu0
      %v1049 = vadd.f32 0.0, %v1048
      %v1050 = vpop.f32.mrf.mxu0
      %v1051 = vadd.f32 0.0, %v1050
      %1052 = vdwg.mxu0
      %v1053 = vsel %vm712, %v1044, -1e+30
      %v1054 = vsel %vm713, %v1046, -1e+30
      %v1055 = vsel %vm714, %v1049, -1e+30
      %v1056 = vsel %vm715, %v1051, -1e+30
      %vm1057 = vcmask 523264
      %v1058 = vsel %vm1057, %v1053, -inf
      %1059 = vmax.xlane.f32.xlu0 %v1058
      %v1060 = vpop.xlane.xlu0 %1059
      %v1061 = vsel %vm1057, %v1054, -inf
      %1062 = vmax.xlane.f32.xlu0 %v1061
      %v1063 = vpop.xlane.xlu0 %1062
      %v1064 = vsel %vm1057, %v1055, -inf
      %1065 = vmax.xlane.f32.xlu0 %v1064
      %v1066 = vpop.xlane.xlu0 %1065
      %v1067 = vsel %vm1057, %v1056, -inf
      %1068 = vmax.xlane.f32.xlu0 %v1067
      %v1069 = vpop.xlane.xlu0 %1068
      %v1070 = vsub.f32 %v1053, %v1060
      %v1071 = vsub.f32 %v1054, %v1063
      %v1072 = vsub.f32 %v1055, %v1066
      %v1073 = vsub.f32 %v1056, %v1069
      %v1074 = vmul.f32 %v1070, 1.442695
      %v1075 = vpow.pop %v1074
      %v1076 = vmul.f32 %v1071, 1.442695
      %v1077 = vpow.pop %v1076
      %v1078 = vmul.f32 %v1072, 1.442695
      %v1079 = vpow.pop %v1078
      %v1080 = vmul.f32 %v1073, 1.442695
      %v1081 = vpow.pop %v1080
      %v1082 = vsel %vm1057, %v1075, 0.0
      %1083 = vadd.xlane.f32.xlu0 %v1082
      %v1084 = vpop.xlane.xlu0 %1083
      %v1085 = vsel %vm1057, %v1077, 0.0
      %1086 = vadd.xlane.f32.xlu0 %v1085
      %v1087 = vpop.xlane.xlu0 %1086
      %v1088 = vsel %vm1057, %v1079, 0.0
      %1089 = vadd.xlane.f32.xlu0 %v1088
      %v1090 = vpop.xlane.xlu0 %1089
      %v1091 = vsel %vm1057, %v1081, 0.0
      %1092 = vadd.xlane.f32.xlu0 %v1091
      %v1093 = vpop.xlane.xlu0 %1092
      %v1094 = vrcp.pop %v1084
      %v1095 = vrcp.pop %v1087
      %v1096 = vrcp.pop %v1090
      %v1097 = vrcp.pop %v1093
      %v1098 = vmul.f32 %v1075, %v1094
      %v1099 = vmul.f32 %v1077, %v1095
      %v1100 = vmul.f32 %v1079, %v1096
      %v1101 = vmul.f32 %v1081, %v1097
      %v1102 = vpack.c.bf16 %v1099, %v1098
      %v1103 = vpack.c.bf16 %v1101, %v1100
      %v1104 = vld [vmem:[%s2] sm:$0xf]
      %v1105 = vld [vmem:[%s2 + $0x20] sm:$0xf]
      %v1106 = vld [vmem:[%s2 + $0x40] sm:$0xf]
      %v1107 = vld [vmem:[%s2 + $0x60] sm:$0xf]
      %v1108 = vld [vmem:[%s2 + $0x80] sm:$0xf]
      %v1109 = vld [vmem:[%s2 + $0xa0] sm:$0xf]
      %v1110 = vld [vmem:[%s2 + $0xc0] sm:$0xf]
      %v1111 = vld [vmem:[%s2 + $0xe0] sm:$0xf]
      %v1120 = vunpack.c.l.b16 %v1104
      %v1121 = vunpack.c.l.b16 %v1105
      %v1122 = vunpack.c.l.b16 %v1106
      %v1123 = vunpack.c.l.b16 %v1107
      %v1124 = vunpack.c.l.b16 %v1108
      %v1125 = vunpack.c.l.b16 %v1109
      %v1126 = vunpack.c.l.b16 %v1110
      %v1127 = vunpack.c.l.b16 %v1111
      %v1128 = vpack.c.b16 %v1121, %v1120
      %v1129 = vpack.c.b16 %v1123, %v1122
      %v1130 = vpack.c.b16 %v1125, %v1124
      %v1131 = vpack.c.b16 %v1127, %v1126
      %v1137 = vsel %vm1057, %v1102, 0
      %v1140 = vsel %vm1057, %v1103, 0
      %1142 = vmatpush.bf16.msra.mxu0 0
      %1143 = vmatpush.bf16.msra.mxu0 0
      %1144 = vmatpush.bf16.msra.mxu0 0
      %1145 = vmatpush.bf16.msra.mxu0 0
      %1146 = vmatpush.bf16.msra.mxu0 %v1131
      %1147 = vmatpush.bf16.msra.mxu0 %v1130
      %1148 = vmatpush.bf16.msra.mxu0 %v1129
      %1149 = vmatpush.bf16.msra.mxu0 %v1128
      %1150 = vmatmul.bf16.gmra.mxu0 %v1137
      %v1151 = vpop.f32.mrf.mxu0
      %v1152 = vadd.f32 0.0, %v1151
      %v1153 = vpop.f32.mrf.mxu0
      %v1154 = vadd.f32 0.0, %v1153
      %1155 = vmatmul.bf16.gmra.mxu0 %v1140
      %v1156 = vpop.f32.mrf.mxu0
      %v1157 = vadd.f32 0.0, %v1156
      %v1158 = vpop.f32.mrf.mxu0
      %v1159 = vadd.f32 0.0, %v1158
      %1160 = vdwg.mxu0
      %v1161 = vpack.c.bf16 %v1152, %v1152
      %v1162 = vpack.c.bf16 %v1154, %v1154
      %v1163 = vpack.c.bf16 %v1157, %v1157
      %v1164 = vpack.c.bf16 %v1159, %v1159
      %1165 = vst [vmem:[#allocation2] sm:$0xf] %v1161
      %1166 = vst [vmem:[#allocation2 + $0x20] sm:$0xf] %v1162
      %1167 = vst [vmem:[#allocation2 + $0x40] sm:$0xf] %v1163
      %1168 = vst [vmem:[#allocation2 + $0x60] sm:$0xf] %v1164
      %v1169 = vld [vmem:[%s1 + $0x40] sm:$0xf]
      %v1170 = vld [vmem:[%s1 + $0x44] sm:$0xf]
      %v1171 = vld [vmem:[%s1 + $0x48] sm:$0xf]
      %v1172 = vld [vmem:[%s1 + $0x4c] sm:$0xf]
      %v1173 = vld [vmem:[%s1 + $0x50] sm:$0xf]
      %v1174 = vld [vmem:[%s1 + $0x54] sm:$0xf]
      %v1175 = vld [vmem:[%s1 + $0x58] sm:$0xf]
      %v1176 = vld [vmem:[%s1 + $0x5c] sm:$0xf]
      %v1177 = vld [vmem:[%s1 + $0x60] sm:$0xf]
      %v1178 = vld [vmem:[%s1 + $0x64] sm:$0xf]
      %v1179 = vld [vmem:[%s1 + $0x68] sm:$0xf]
      %v1180 = vld [vmem:[%s1 + $0x6c] sm:$0xf]
      %v1181 = vld [vmem:[%s1 + $0x70] sm:$0xf]
      %v1182 = vld [vmem:[%s1 + $0x74] sm:$0xf]
      %v1183 = vld [vmem:[%s1 + $0x78] sm:$0xf]
      %v1184 = vld [vmem:[%s1 + $0x7c] sm:$0xf]
      %v1185 = vunpack.c.h.b16 %v942
      %v1186 = vunpack.c.h.b16 %v946
      %v1187 = vunpack.c.h.b16 %v950
      %v1188 = vunpack.c.h.b16 %v954
      %v1189 = vpack.c.b16 %v1186, %v1185
      %v1190 = vpack.c.b16 %v1188, %v1187
      %v1209 = vunpack.c.l.b16 %v1169
      %v1210 = vunpack.c.l.b16 %v1170
      %v1211 = vunpack.c.l.b16 %v1171
      %v1212 = vunpack.c.l.b16 %v1172
      %v1213 = vunpack.c.l.b16 %v1173
      %v1214 = vunpack.c.l.b16 %v1174
      %v1215 = vunpack.c.l.b16 %v1175
      %v1216 = vunpack.c.l.b16 %v1176
      %v1217 = vunpack.c.l.b16 %v1177
      %v1218 = vunpack.c.l.b16 %v1178
      %v1219 = vunpack.c.l.b16 %v1179
      %v1220 = vunpack.c.l.b16 %v1180
      %v1221 = vunpack.c.l.b16 %v1181
      %v1222 = vunpack.c.l.b16 %v1182
      %v1223 = vunpack.c.l.b16 %v1183
      %v1224 = vunpack.c.l.b16 %v1184
      %v1225 = vpack.c.b16 %v1210, %v1209
      %v1226 = vpack.c.b16 %v1212, %v1211
      %v1227 = vpack.c.b16 %v1214, %v1213
      %v1228 = vpack.c.b16 %v1216, %v1215
      %v1229 = vpack.c.b16 %v1218, %v1217
      %v1230 = vpack.c.b16 %v1220, %v1219
      %v1231 = vpack.c.b16 %v1222, %v1221
      %v1232 = vpack.c.b16 %v1224, %v1223
      %1241 = vmatpush.bf16.msra.mxu0 %v1232
      %1242 = vmatpush.bf16.msra.mxu0 %v1231
      %1243 = vmatpush.bf16.msra.mxu0 %v1230
      %1244 = vmatpush.bf16.msra.mxu0 %v1229
      %1245 = vmatpush.bf16.msra.mxu0 %v1228
      %1246 = vmatpush.bf16.msra.mxu0 %v1227
      %1247 = vmatpush.bf16.msra.mxu0 %v1226
      %1248 = vmatpush.bf16.msra.mxu0 %v1225
      %1249 = vmatmul.bf16.gmra.mxu0 %v1189
      %v1250 = vpop.f32.mrf.mxu0
      %v1251 = vadd.f32 0.0, %v1250
      %v1252 = vpop.f32.mrf.mxu0
      %v1253 = vadd.f32 0.0, %v1252
      %1254 = vmatmul.bf16.gmra.mxu0 %v1190
      %v1255 = vpop.f32.mrf.mxu0
      %v1256 = vadd.f32 0.0, %v1255
      %v1257 = vpop.f32.mrf.mxu0
      %v1258 = vadd.f32 0.0, %v1257
      %1259 = vdwg.mxu0
      %v1260 = vsel %vm712, %v1251, -1e+30
      %v1261 = vsel %vm713, %v1253, -1e+30
      %v1262 = vsel %vm714, %v1256, -1e+30
      %v1263 = vsel %vm715, %v1258, -1e+30
      %v1264 = vsel %vm1057, %v1260, -inf
      %1265 = vmax.xlane.f32.xlu0 %v1264
      %v1266 = vpop.xlane.xlu0 %1265
      %v1267 = vsel %vm1057, %v1261, -inf
      %1268 = vmax.xlane.f32.xlu0 %v1267
      %v1269 = vpop.xlane.xlu0 %1268
      %v1270 = vsel %vm1057, %v1262, -inf
      %1271 = vmax.xlane.f32.xlu0 %v1270
      %v1272 = vpop.xlane.xlu0 %1271
      %v1273 = vsel %vm1057, %v1263, -inf
      %1274 = vmax.xlane.f32.xlu0 %v1273
      %v1275 = vpop.xlane.xlu0 %1274
      %v1276 = vsub.f32 %v1260, %v1266
      %v1277 = vsub.f32 %v1261, %v1269
      %v1278 = vsub.f32 %v1262, %v1272
      %v1279 = vsub.f32 %v1263, %v1275
      %v1280 = vmul.f32 %v1276, 1.442695
      %v1281 = vpow.pop %v1280
      %v1282 = vmul.f32 %v1277, 1.442695
      %v1283 = vpow.pop %v1282
      %v1284 = vmul.f32 %v1278, 1.442695
      %v1285 = vpow.pop %v1284
      %v1286 = vmul.f32 %v1279, 1.442695
      %v1287 = vpow.pop %v1286
      %v1288 = vsel %vm1057, %v1281, 0.0
      %1289 = vadd.xlane.f32.xlu0 %v1288
      %v1290 = vpop.xlane.xlu0 %1289
      %v1291 = vsel %vm1057, %v1283, 0.0
      %1292 = vadd.xlane.f32.xlu0 %v1291
      %v1293 = vpop.xlane.xlu0 %1292
      %v1294 = vsel %vm1057, %v1285, 0.0
      %1295 = vadd.xlane.f32.xlu0 %v1294
      %v1296 = vpop.xlane.xlu0 %1295
      %v1297 = vsel %vm1057, %v1287, 0.0
      %1298 = vadd.xlane.f32.xlu0 %v1297
      %v1299 = vpop.xlane.xlu0 %1298
      %v1300 = vrcp.pop %v1290
      %v1301 = vrcp.pop %v1293
      %v1302 = vrcp.pop %v1296
      %v1303 = vrcp.pop %v1299
      %v1304 = vmul.f32 %v1281, %v1300
      %v1305 = vmul.f32 %v1283, %v1301
      %v1306 = vmul.f32 %v1285, %v1302
      %v1307 = vmul.f32 %v1287, %v1303
      %v1308 = vpack.c.bf16 %v1305, %v1304
      %v1309 = vpack.c.bf16 %v1307, %v1306
      %v1310 = vld [vmem:[%s2 + $0x4] sm:$0xf]
      %v1311 = vld [vmem:[%s2 + $0x24] sm:$0xf]
      %v1312 = vld [vmem:[%s2 + $0x44] sm:$0xf]
      %v1313 = vld [vmem:[%s2 + $0x64] sm:$0xf]
      %v1314 = vld [vmem:[%s2 + $0x84] sm:$0xf]
      %v1315 = vld [vmem:[%s2 + $0xa4] sm:$0xf]
      %v1316 = vld [vmem:[%s2 + $0xc4] sm:$0xf]
      %v1317 = vld [vmem:[%s2 + $0xe4] sm:$0xf]
      %v1326 = vunpack.c.l.b16 %v1310
      %v1327 = vunpack.c.l.b16 %v1311
      %v1328 = vunpack.c.l.b16 %v1312
      %v1329 = vunpack.c.l.b16 %v1313
      %v1330 = vunpack.c.l.b16 %v1314
      %v1331 = vunpack.c.l.b16 %v1315
      %v1332 = vunpack.c.l.b16 %v1316
      %v1333 = vunpack.c.l.b16 %v1317
      %v1334 = vpack.c.b16 %v1327, %v1326
      %v1335 = vpack.c.b16 %v1329, %v1328
      %v1336 = vpack.c.b16 %v1331, %v1330
      %v1337 = vpack.c.b16 %v1333, %v1332
      %v1343 = vsel %vm1057, %v1308, 0
      %v1346 = vsel %vm1057, %v1309, 0
      %1348 = vmatpush.bf16.msra.mxu0 0
      %1349 = vmatpush.bf16.msra.mxu0 0
      %1350 = vmatpush.bf16.msra.mxu0 0
      %1351 = vmatpush.bf16.msra.mxu0 0
      %1352 = vmatpush.bf16.msra.mxu0 %v1337
      %1353 = vmatpush.bf16.msra.mxu0 %v1336
      %1354 = vmatpush.bf16.msra.mxu0 %v1335
      %1355 = vmatpush.bf16.msra.mxu0 %v1334
      %1356 = vmatmul.bf16.gmra.mxu0 %v1343
      %v1357 = vpop.f32.mrf.mxu0
      %v1358 = vadd.f32 0.0, %v1357
      %v1359 = vpop.f32.mrf.mxu0
      %v1360 = vadd.f32 0.0, %v1359
      %1361 = vmatmul.bf16.gmra.mxu0 %v1346
      %v1362 = vpop.f32.mrf.mxu0
      %v1363 = vadd.f32 0.0, %v1362
      %v1364 = vpop.f32.mrf.mxu0
      %v1365 = vadd.f32 0.0, %v1364
      %1366 = vdwg.mxu0
      %v1367 = vpack.c.bf16 %v1358, %v1358
      %v1368 = vpack.c.bf16 %v1360, %v1360
      %v1369 = vpack.c.bf16 %v1363, %v1363
      %v1370 = vpack.c.bf16 %v1365, %v1365
      %1371 = vst [vmem:[#allocation2 + $0x4] sm:$0xf] %v1367
      %1372 = vst [vmem:[#allocation2 + $0x24] sm:$0xf] %v1368
      %1373 = vst [vmem:[#allocation2 + $0x44] sm:$0xf] %v1369
      %1374 = vst [vmem:[#allocation2 + $0x64] sm:$0xf] %v1370
      %v1375 = vld [vmem:[%s1 + $0x80] sm:$0xf]
      %v1376 = vld [vmem:[%s1 + $0x84] sm:$0xf]
      %v1377 = vld [vmem:[%s1 + $0x88] sm:$0xf]
      %v1378 = vld [vmem:[%s1 + $0x8c] sm:$0xf]
      %v1379 = vld [vmem:[%s1 + $0x90] sm:$0xf]
      %v1380 = vld [vmem:[%s1 + $0x94] sm:$0xf]
      %v1381 = vld [vmem:[%s1 + $0x98] sm:$0xf]
      %v1382 = vld [vmem:[%s1 + $0x9c] sm:$0xf]
      %v1383 = vld [vmem:[%s1 + $0xa0] sm:$0xf]
      %v1384 = vld [vmem:[%s1 + $0xa4] sm:$0xf]
      %v1385 = vld [vmem:[%s1 + $0xa8] sm:$0xf]
      %v1386 = vld [vmem:[%s1 + $0xac] sm:$0xf]
      %v1387 = vld [vmem:[%s1 + $0xb0] sm:$0xf]
      %v1388 = vld [vmem:[%s1 + $0xb4] sm:$0xf]
      %v1389 = vld [vmem:[%s1 + $0xb8] sm:$0xf]
      %v1390 = vld [vmem:[%s1 + $0xbc] sm:$0xf]
      %v1395 = vunpack.c.l.b16 %v943
      %v1396 = vunpack.c.l.b16 %v947
      %v1397 = vunpack.c.l.b16 %v951
      %v1398 = vunpack.c.l.b16 %v955
      %v1399 = vpack.c.b16 %v1396, %v1395
      %v1400 = vpack.c.b16 %v1398, %v1397
      %v1419 = vunpack.c.l.b16 %v1375
      %v1420 = vunpack.c.l.b16 %v1376
      %v1421 = vunpack.c.l.b16 %v1377
      %v1422 = vunpack.c.l.b16 %v1378
      %v1423 = vunpack.c.l.b16 %v1379
      %v1424 = vunpack.c.l.b16 %v1380
      %v1425 = vunpack.c.l.b16 %v1381
      %v1426 = vunpack.c.l.b16 %v1382
      %v1427 = vunpack.c.l.b16 %v1383
      %v1428 = vunpack.c.l.b16 %v1384
      %v1429 = vunpack.c.l.b16 %v1385
      %v1430 = vunpack.c.l.b16 %v1386
      %v1431 = vunpack.c.l.b16 %v1387
      %v1432 = vunpack.c.l.b16 %v1388
      %v1433 = vunpack.c.l.b16 %v1389
      %v1434 = vunpack.c.l.b16 %v1390
      %v1435 = vpack.c.b16 %v1420, %v1419
      %v1436 = vpack.c.b16 %v1422, %v1421
      %v1437 = vpack.c.b16 %v1424, %v1423
      %v1438 = vpack.c.b16 %v1426, %v1425
      %v1439 = vpack.c.b16 %v1428, %v1427
      %v1440 = vpack.c.b16 %v1430, %v1429
      %v1441 = vpack.c.b16 %v1432, %v1431
      %v1442 = vpack.c.b16 %v1434, %v1433
      %1451 = vmatpush.bf16.msra.mxu0 %v1442
      %1452 = vmatpush.bf16.msra.mxu0 %v1441
      %1453 = vmatpush.bf16.msra.mxu0 %v1440
      %1454 = vmatpush.bf16.msra.mxu0 %v1439
      %1455 = vmatpush.bf16.msra.mxu0 %v1438
      %1456 = vmatpush.bf16.msra.mxu0 %v1437
      %1457 = vmatpush.bf16.msra.mxu0 %v1436
      %1458 = vmatpush.bf16.msra.mxu0 %v1435
      %1459 = vmatmul.bf16.gmra.mxu0 %v1399
      %v1460 = vpop.f32.mrf.mxu0
      %v1461 = vadd.f32 0.0, %v1460
      %v1462 = vpop.f32.mrf.mxu0
      %v1463 = vadd.f32 0.0, %v1462
      %1464 = vmatmul.bf16.gmra.mxu0 %v1400
      %v1465 = vpop.f32.mrf.mxu0
      %v1466 = vadd.f32 0.0, %v1465
      %v1467 = vpop.f32.mrf.mxu0
      %v1468 = vadd.f32 0.0, %v1467
      %1469 = vdwg.mxu0
      %v1470 = vsel %vm712, %v1461, -1e+30
      %v1471 = vsel %vm713, %v1463, -1e+30
      %v1472 = vsel %vm714, %v1466, -1e+30
      %v1473 = vsel %vm715, %v1468, -1e+30
      %v1474 = vsel %vm1057, %v1470, -inf
      %1475 = vmax.xlane.f32.xlu0 %v1474
      %v1476 = vpop.xlane.xlu0 %1475
      %v1477 = vsel %vm1057, %v1471, -inf
      %1478 = vmax.xlane.f32.xlu0 %v1477
      %v1479 = vpop.xlane.xlu0 %1478
      %v1480 = vsel %vm1057, %v1472, -inf
      %1481 = vmax.xlane.f32.xlu0 %v1480
      %v1482 = vpop.xlane.xlu0 %1481
      %v1483 = vsel %vm1057, %v1473, -inf
      %1484 = vmax.xlane.f32.xlu0 %v1483
      %v1485 = vpop.xlane.xlu0 %1484
      %v1486 = vsub.f32 %v1470, %v1476
      %v1487 = vsub.f32 %v1471, %v1479
      %v1488 = vsub.f32 %v1472, %v1482
      %v1489 = vsub.f32 %v1473, %v1485
      %v1490 = vmul.f32 %v1486, 1.442695
      %v1491 = vpow.pop %v1490
      %v1492 = vmul.f32 %v1487, 1.442695
      %v1493 = vpow.pop %v1492
      %v1494 = vmul.f32 %v1488, 1.442695
      %v1495 = vpow.pop %v1494
      %v1496 = vmul.f32 %v1489, 1.442695
      %v1497 = vpow.pop %v1496
      %v1498 = vsel %vm1057, %v1491, 0.0
      %1499 = vadd.xlane.f32.xlu0 %v1498
      %v1500 = vpop.xlane.xlu0 %1499
      %v1501 = vsel %vm1057, %v1493, 0.0
      %1502 = vadd.xlane.f32.xlu0 %v1501
      %v1503 = vpop.xlane.xlu0 %1502
      %v1504 = vsel %vm1057, %v1495, 0.0
      %1505 = vadd.xlane.f32.xlu0 %v1504
      %v1506 = vpop.xlane.xlu0 %1505
      %v1507 = vsel %vm1057, %v1497, 0.0
      %1508 = vadd.xlane.f32.xlu0 %v1507
      %v1509 = vpop.xlane.xlu0 %1508
      %v1510 = vrcp.pop %v1500
      %v1511 = vrcp.pop %v1503
      %v1512 = vrcp.pop %v1506
      %v1513 = vrcp.pop %v1509
      %v1514 = vmul.f32 %v1491, %v1510
      %v1515 = vmul.f32 %v1493, %v1511
      %v1516 = vmul.f32 %v1495, %v1512
      %v1517 = vmul.f32 %v1497, %v1513
      %v1518 = vpack.c.bf16 %v1515, %v1514
      %v1519 = vpack.c.bf16 %v1517, %v1516
      %v1520 = vld [vmem:[%s2 + $0x8] sm:$0xf]
      %v1521 = vld [vmem:[%s2 + $0x28] sm:$0xf]
      %v1522 = vld [vmem:[%s2 + $0x48] sm:$0xf]
      %v1523 = vld [vmem:[%s2 + $0x68] sm:$0xf]
      %v1524 = vld [vmem:[%s2 + $0x88] sm:$0xf]
      %v1525 = vld [vmem:[%s2 + $0xa8] sm:$0xf]
      %v1526 = vld [vmem:[%s2 + $0xc8] sm:$0xf]
      %v1527 = vld [vmem:[%s2 + $0xe8] sm:$0xf]
      %v1536 = vunpack.c.l.b16 %v1520
      %v1537 = vunpack.c.l.b16 %v1521
      %v1538 = vunpack.c.l.b16 %v1522
      %v1539 = vunpack.c.l.b16 %v1523
      %v1540 = vunpack.c.l.b16 %v1524
      %v1541 = vunpack.c.l.b16 %v1525
      %v1542 = vunpack.c.l.b16 %v1526
      %v1543 = vunpack.c.l.b16 %v1527
      %v1544 = vpack.c.b16 %v1537, %v1536
      %v1545 = vpack.c.b16 %v1539, %v1538
      %v1546 = vpack.c.b16 %v1541, %v1540
      %v1547 = vpack.c.b16 %v1543, %v1542
      %v1553 = vsel %vm1057, %v1518, 0
      %v1556 = vsel %vm1057, %v1519, 0
      %1558 = vmatpush.bf16.msra.mxu0 0
      %1559 = vmatpush.bf16.msra.mxu0 0
      %1560 = vmatpush.bf16.msra.mxu0 0
      %1561 = vmatpush.bf16.msra.mxu0 0
      %1562 = vmatpush.bf16.msra.mxu0 %v1547
      %1563 = vmatpush.bf16.msra.mxu0 %v1546
      %1564 = vmatpush.bf16.msra.mxu0 %v1545
      %1565 = vmatpush.bf16.msra.mxu0 %v1544
      %1566 = vmatmul.bf16.gmra.mxu0 %v1553
      %v1567 = vpop.f32.mrf.mxu0
      %v1568 = vadd.f32 0.0, %v1567
      %v1569 = vpop.f32.mrf.mxu0
      %v1570 = vadd.f32 0.0, %v1569
      %1571 = vmatmul.bf16.gmra.mxu0 %v1556
      %v1572 = vpop.f32.mrf.mxu0
      %v1573 = vadd.f32 0.0, %v1572
      %v1574 = vpop.f32.mrf.mxu0
      %v1575 = vadd.f32 0.0, %v1574
      %1576 = vdwg.mxu0
      %v1577 = vpack.c.bf16 %v1568, %v1568
      %v1578 = vpack.c.bf16 %v1570, %v1570
      %v1579 = vpack.c.bf16 %v1573, %v1573
      %v1580 = vpack.c.bf16 %v1575, %v1575
      %1581 = vst [vmem:[#allocation2 + $0x8] sm:$0xf] %v1577
      %1582 = vst [vmem:[#allocation2 + $0x28] sm:$0xf] %v1578
      %1583 = vst [vmem:[#allocation2 + $0x48] sm:$0xf] %v1579
      %1584 = vst [vmem:[#allocation2 + $0x68] sm:$0xf] %v1580
      %v1585 = vld [vmem:[%s1 + $0xc0] sm:$0xf]
      %v1586 = vld [vmem:[%s1 + $0xc4] sm:$0xf]
      %v1587 = vld [vmem:[%s1 + $0xc8] sm:$0xf]
      %v1588 = vld [vmem:[%s1 + $0xcc] sm:$0xf]
      %v1589 = vld [vmem:[%s1 + $0xd0] sm:$0xf]
      %v1590 = vld [vmem:[%s1 + $0xd4] sm:$0xf]
      %v1591 = vld [vmem:[%s1 + $0xd8] sm:$0xf]
      %v1592 = vld [vmem:[%s1 + $0xdc] sm:$0xf]
      %v1593 = vld [vmem:[%s1 + $0xe0] sm:$0xf]
      %v1594 = vld [vmem:[%s1 + $0xe4] sm:$0xf]
      %v1595 = vld [vmem:[%s1 + $0xe8] sm:$0xf]
      %v1596 = vld [vmem:[%s1 + $0xec] sm:$0xf]
      %v1597 = vld [vmem:[%s1 + $0xf0] sm:$0xf]
      %v1598 = vld [vmem:[%s1 + $0xf4] sm:$0xf]
      %v1599 = vld [vmem:[%s1 + $0xf8] sm:$0xf]
      %v1600 = vld [vmem:[%s1 + $0xfc] sm:$0xf]
      %v1601 = vunpack.c.h.b16 %v943
      %v1602 = vunpack.c.h.b16 %v947
      %v1603 = vunpack.c.h.b16 %v951
      %v1604 = vunpack.c.h.b16 %v955
      %v1605 = vpack.c.b16 %v1602, %v1601
      %v1606 = vpack.c.b16 %v1604, %v1603
      %v1625 = vunpack.c.l.b16 %v1585
      %v1626 = vunpack.c.l.b16 %v1586
      %v1627 = vunpack.c.l.b16 %v1587
      %v1628 = vunpack.c.l.b16 %v1588
      %v1629 = vunpack.c.l.b16 %v1589
      %v1630 = vunpack.c.l.b16 %v1590
      %v1631 = vunpack.c.l.b16 %v1591
      %v1632 = vunpack.c.l.b16 %v1592
      %v1633 = vunpack.c.l.b16 %v1593
      %v1634 = vunpack.c.l.b16 %v1594
      %v1635 = vunpack.c.l.b16 %v1595
      %v1636 = vunpack.c.l.b16 %v1596
      %v1637 = vunpack.c.l.b16 %v1597
      %v1638 = vunpack.c.l.b16 %v1598
      %v1639 = vunpack.c.l.b16 %v1599
      %v1640 = vunpack.c.l.b16 %v1600
      %v1641 = vpack.c.b16 %v1626, %v1625
      %v1642 = vpack.c.b16 %v1628, %v1627
      %v1643 = vpack.c.b16 %v1630, %v1629
      %v1644 = vpack.c.b16 %v1632, %v1631
      %v1645 = vpack.c.b16 %v1634, %v1633
      %v1646 = vpack.c.b16 %v1636, %v1635
      %v1647 = vpack.c.b16 %v1638, %v1637
      %v1648 = vpack.c.b16 %v1640, %v1639
      %1657 = vmatpush.bf16.msra.mxu0 %v1648
      %1658 = vmatpush.bf16.msra.mxu0 %v1647
      %1659 = vmatpush.bf16.msra.mxu0 %v1646
      %1660 = vmatpush.bf16.msra.mxu0 %v1645
      %1661 = vmatpush.bf16.msra.mxu0 %v1644
      %1662 = vmatpush.bf16.msra.mxu0 %v1643
      %1663 = vmatpush.bf16.msra.mxu0 %v1642
      %1664 = vmatpush.bf16.msra.mxu0 %v1641
      %1665 = vmatmul.bf16.gmra.mxu0 %v1605
      %v1666 = vpop.f32.mrf.mxu0
      %v1667 = vadd.f32 0.0, %v1666
      %v1668 = vpop.f32.mrf.mxu0
      %v1669 = vadd.f32 0.0, %v1668
      %1670 = vmatmul.bf16.gmra.mxu0 %v1606
      %v1671 = vpop.f32.mrf.mxu0
      %v1672 = vadd.f32 0.0, %v1671
      %v1673 = vpop.f32.mrf.mxu0
      %v1674 = vadd.f32 0.0, %v1673
      %1675 = vdwg.mxu0
      %v1676 = vsel %vm712, %v1667, -1e+30
      %v1677 = vsel %vm713, %v1669, -1e+30
      %v1678 = vsel %vm714, %v1672, -1e+30
      %v1679 = vsel %vm715, %v1674, -1e+30
      %v1680 = vsel %vm1057, %v1676, -inf
      %1681 = vmax.xlane.f32.xlu0 %v1680
      %v1682 = vpop.xlane.xlu0 %1681
      %v1683 = vsel %vm1057, %v1677, -inf
      %1684 = vmax.xlane.f32.xlu0 %v1683
      %v1685 = vpop.xlane.xlu0 %1684
      %v1686 = vsel %vm1057, %v1678, -inf
      %1687 = vmax.xlane.f32.xlu0 %v1686
      %v1688 = vpop.xlane.xlu0 %1687
      %v1689 = vsel %vm1057, %v1679, -inf
      %1690 = vmax.xlane.f32.xlu0 %v1689
      %v1691 = vpop.xlane.xlu0 %1690
      %v1692 = vsub.f32 %v1676, %v1682
      %v1693 = vsub.f32 %v1677, %v1685
      %v1694 = vsub.f32 %v1678, %v1688
      %v1695 = vsub.f32 %v1679, %v1691
      %v1696 = vmul.f32 %v1692, 1.442695
      %v1697 = vpow.pop %v1696
      %v1698 = vmul.f32 %v1693, 1.442695
      %v1699 = vpow.pop %v1698
      %v1700 = vmul.f32 %v1694, 1.442695
      %v1701 = vpow.pop %v1700
      %v1702 = vmul.f32 %v1695, 1.442695
      %v1703 = vpow.pop %v1702
      %v1704 = vsel %vm1057, %v1697, 0.0
      %1705 = vadd.xlane.f32.xlu0 %v1704
      %v1706 = vpop.xlane.xlu0 %1705
      %v1707 = vsel %vm1057, %v1699, 0.0
      %1708 = vadd.xlane.f32.xlu0 %v1707
      %v1709 = vpop.xlane.xlu0 %1708
      %v1710 = vsel %vm1057, %v1701, 0.0
      %1711 = vadd.xlane.f32.xlu0 %v1710
      %v1712 = vpop.xlane.xlu0 %1711
      %v1713 = vsel %vm1057, %v1703, 0.0
      %1714 = vadd.xlane.f32.xlu0 %v1713
      %v1715 = vpop.xlane.xlu0 %1714
      %v1716 = vrcp.pop %v1706
      %v1717 = vrcp.pop %v1709
      %v1718 = vrcp.pop %v1712
      %v1719 = vrcp.pop %v1715
      %v1720 = vmul.f32 %v1697, %v1716
      %v1721 = vmul.f32 %v1699, %v1717
      %v1722 = vmul.f32 %v1701, %v1718
      %v1723 = vmul.f32 %v1703, %v1719
      %v1724 = vpack.c.bf16 %v1721, %v1720
      %v1725 = vpack.c.bf16 %v1723, %v1722
      %v1726 = vld [vmem:[%s2 + $0xc] sm:$0xf]
      %v1727 = vld [vmem:[%s2 + $0x2c] sm:$0xf]
      %v1728 = vld [vmem:[%s2 + $0x4c] sm:$0xf]
      %v1729 = vld [vmem:[%s2 + $0x6c] sm:$0xf]
      %v1730 = vld [vmem:[%s2 + $0x8c] sm:$0xf]
      %v1731 = vld [vmem:[%s2 + $0xac] sm:$0xf]
      %v1732 = vld [vmem:[%s2 + $0xcc] sm:$0xf]
      %v1733 = vld [vmem:[%s2 + $0xec] sm:$0xf]
      %v1742 = vunpack.c.l.b16 %v1726
      %v1743 = vunpack.c.l.b16 %v1727
      %v1744 = vunpack.c.l.b16 %v1728
      %v1745 = vunpack.c.l.b16 %v1729
      %v1746 = vunpack.c.l.b16 %v1730
      %v1747 = vunpack.c.l.b16 %v1731
      %v1748 = vunpack.c.l.b16 %v1732
      %v1749 = vunpack.c.l.b16 %v1733
      %v1750 = vpack.c.b16 %v1743, %v1742
      %v1751 = vpack.c.b16 %v1745, %v1744
      %v1752 = vpack.c.b16 %v1747, %v1746
      %v1753 = vpack.c.b16 %v1749, %v1748
      %v1759 = vsel %vm1057, %v1724, 0
      %v1762 = vsel %vm1057, %v1725, 0
      %1764 = vmatpush.bf16.msra.mxu0 0
      %1765 = vmatpush.bf16.msra.mxu0 0
      %1766 = vmatpush.bf16.msra.mxu0 0
      %1767 = vmatpush.bf16.msra.mxu0 0
      %1768 = vmatpush.bf16.msra.mxu0 %v1753
      %1769 = vmatpush.bf16.msra.mxu0 %v1752
      %1770 = vmatpush.bf16.msra.mxu0 %v1751
      %1771 = vmatpush.bf16.msra.mxu0 %v1750
      %1772 = vmatmul.bf16.gmra.mxu0 %v1759
      %v1773 = vpop.f32.mrf.mxu0
      %v1774 = vadd.f32 0.0, %v1773
      %v1775 = vpop.f32.mrf.mxu0
      %v1776 = vadd.f32 0.0, %v1775
      %1777 = vmatmul.bf16.gmra.mxu0 %v1762
      %v1778 = vpop.f32.mrf.mxu0
      %v1779 = vadd.f32 0.0, %v1778
      %v1780 = vpop.f32.mrf.mxu0
      %v1781 = vadd.f32 0.0, %v1780
      %1782 = vdwg.mxu0
      %v1783 = vpack.c.bf16 %v1774, %v1774
      %v1784 = vpack.c.bf16 %v1776, %v1776
      %v1785 = vpack.c.bf16 %v1779, %v1779
      %v1786 = vpack.c.bf16 %v1781, %v1781
      %1787 = vst [vmem:[#allocation2 + $0xc] sm:$0xf] %v1783
      %1788 = vst [vmem:[#allocation2 + $0x2c] sm:$0xf] %v1784
      %1789 = vst [vmem:[#allocation2 + $0x4c] sm:$0xf] %v1785
      %1790 = vst [vmem:[#allocation2 + $0x6c] sm:$0xf] %v1786
      %v1791 = vld [vmem:[%s1 + $0x100] sm:$0xf]
      %v1792 = vld [vmem:[%s1 + $0x104] sm:$0xf]
      %v1793 = vld [vmem:[%s1 + $0x108] sm:$0xf]
      %v1794 = vld [vmem:[%s1 + $0x10c] sm:$0xf]
      %v1795 = vld [vmem:[%s1 + $0x110] sm:$0xf]
      %v1796 = vld [vmem:[%s1 + $0x114] sm:$0xf]
      %v1797 = vld [vmem:[%s1 + $0x118] sm:$0xf]
      %v1798 = vld [vmem:[%s1 + $0x11c] sm:$0xf]
      %v1799 = vld [vmem:[%s1 + $0x120] sm:$0xf]
      %v1800 = vld [vmem:[%s1 + $0x124] sm:$0xf]
      %v1801 = vld [vmem:[%s1 + $0x128] sm:$0xf]
      %v1802 = vld [vmem:[%s1 + $0x12c] sm:$0xf]
      %v1803 = vld [vmem:[%s1 + $0x130] sm:$0xf]
      %v1804 = vld [vmem:[%s1 + $0x134] sm:$0xf]
      %v1805 = vld [vmem:[%s1 + $0x138] sm:$0xf]
      %v1806 = vld [vmem:[%s1 + $0x13c] sm:$0xf]
      %v1811 = vunpack.c.l.b16 %v944
      %v1812 = vunpack.c.l.b16 %v948
      %v1813 = vunpack.c.l.b16 %v952
      %v1814 = vunpack.c.l.b16 %v956
      %v1815 = vpack.c.b16 %v1812, %v1811
      %v1816 = vpack.c.b16 %v1814, %v1813
      %v1835 = vunpack.c.l.b16 %v1791
      %v1836 = vunpack.c.l.b16 %v1792
      %v1837 = vunpack.c.l.b16 %v1793
      %v1838 = vunpack.c.l.b16 %v1794
      %v1839 = vunpack.c.l.b16 %v1795
      %v1840 = vunpack.c.l.b16 %v1796
      %v1841 = vunpack.c.l.b16 %v1797
      %v1842 = vunpack.c.l.b16 %v1798
      %v1843 = vunpack.c.l.b16 %v1799
      %v1844 = vunpack.c.l.b16 %v1800
      %v1845 = vunpack.c.l.b16 %v1801
      %v1846 = vunpack.c.l.b16 %v1802
      %v1847 = vunpack.c.l.b16 %v1803
      %v1848 = vunpack.c.l.b16 %v1804
      %v1849 = vunpack.c.l.b16 %v1805
      %v1850 = vunpack.c.l.b16 %v1806
      %v1851 = vpack.c.b16 %v1836, %v1835
      %v1852 = vpack.c.b16 %v1838, %v1837
      %v1853 = vpack.c.b16 %v1840, %v1839
      %v1854 = vpack.c.b16 %v1842, %v1841
      %v1855 = vpack.c.b16 %v1844, %v1843
      %v1856 = vpack.c.b16 %v1846, %v1845
      %v1857 = vpack.c.b16 %v1848, %v1847
      %v1858 = vpack.c.b16 %v1850, %v1849
      %1867 = vmatpush.bf16.msra.mxu0 %v1858
      %1868 = vmatpush.bf16.msra.mxu0 %v1857
      %1869 = vmatpush.bf16.msra.mxu0 %v1856
      %1870 = vmatpush.bf16.msra.mxu0 %v1855
      %1871 = vmatpush.bf16.msra.mxu0 %v1854
      %1872 = vmatpush.bf16.msra.mxu0 %v1853
      %1873 = vmatpush.bf16.msra.mxu0 %v1852
      %1874 = vmatpush.bf16.msra.mxu0 %v1851
      %1875 = vmatmul.bf16.gmra.mxu0 %v1815
      %v1876 = vpop.f32.mrf.mxu0
      %v1877 = vadd.f32 0.0, %v1876
      %v1878 = vpop.f32.mrf.mxu0
      %v1879 = vadd.f32 0.0, %v1878
      %1880 = vmatmul.bf16.gmra.mxu0 %v1816
      %v1881 = vpop.f32.mrf.mxu0
      %v1882 = vadd.f32 0.0, %v1881
      %v1883 = vpop.f32.mrf.mxu0
      %v1884 = vadd.f32 0.0, %v1883
      %1885 = vdwg.mxu0
      %v1886 = vsel %vm712, %v1877, -1e+30
      %v1887 = vsel %vm713, %v1879, -1e+30
      %v1888 = vsel %vm714, %v1882, -1e+30
      %v1889 = vsel %vm715, %v1884, -1e+30
      %v1890 = vsel %vm1057, %v1886, -inf
      %1891 = vmax.xlane.f32.xlu0 %v1890
      %v1892 = vpop.xlane.xlu0 %1891
      %v1893 = vsel %vm1057, %v1887, -inf
      %1894 = vmax.xlane.f32.xlu0 %v1893
      %v1895 = vpop.xlane.xlu0 %1894
      %v1896 = vsel %vm1057, %v1888, -inf
      %1897 = vmax.xlane.f32.xlu0 %v1896
      %v1898 = vpop.xlane.xlu0 %1897
      %v1899 = vsel %vm1057, %v1889, -inf
      %1900 = vmax.xlane.f32.xlu0 %v1899
      %v1901 = vpop.xlane.xlu0 %1900
      %v1902 = vsub.f32 %v1886, %v1892
      %v1903 = vsub.f32 %v1887, %v1895
      %v1904 = vsub.f32 %v1888, %v1898
      %v1905 = vsub.f32 %v1889, %v1901
      %v1906 = vmul.f32 %v1902, 1.442695
      %v1907 = vpow.pop %v1906
      %v1908 = vmul.f32 %v1903, 1.442695
      %v1909 = vpow.pop %v1908
      %v1910 = vmul.f32 %v1904, 1.442695
      %v1911 = vpow.pop %v1910
      %v1912 = vmul.f32 %v1905, 1.442695
      %v1913 = vpow.pop %v1912
      %v1914 = vsel %vm1057, %v1907, 0.0
      %1915 = vadd.xlane.f32.xlu0 %v1914
      %v1916 = vpop.xlane.xlu0 %1915
      %v1917 = vsel %vm1057, %v1909, 0.0
      %1918 = vadd.xlane.f32.xlu0 %v1917
      %v1919 = vpop.xlane.xlu0 %1918
      %v1920 = vsel %vm1057, %v1911, 0.0
      %1921 = vadd.xlane.f32.xlu0 %v1920
      %v1922 = vpop.xlane.xlu0 %1921
      %v1923 = vsel %vm1057, %v1913, 0.0
      %1924 = vadd.xlane.f32.xlu0 %v1923
      %v1925 = vpop.xlane.xlu0 %1924
      %v1926 = vrcp.pop %v1916
      %v1927 = vrcp.pop %v1919
      %v1928 = vrcp.pop %v1922
      %v1929 = vrcp.pop %v1925
      %v1930 = vmul.f32 %v1907, %v1926
      %v1931 = vmul.f32 %v1909, %v1927
      %v1932 = vmul.f32 %v1911, %v1928
      %v1933 = vmul.f32 %v1913, %v1929
      %v1934 = vpack.c.bf16 %v1931, %v1930
      %v1935 = vpack.c.bf16 %v1933, %v1932
      %v1936 = vld [vmem:[%s2 + $0x10] sm:$0xf]
      %v1937 = vld [vmem:[%s2 + $0x30] sm:$0xf]
      %v1938 = vld [vmem:[%s2 + $0x50] sm:$0xf]
      %v1939 = vld [vmem:[%s2 + $0x70] sm:$0xf]
      %v1940 = vld [vmem:[%s2 + $0x90] sm:$0xf]
      %v1941 = vld [vmem:[%s2 + $0xb0] sm:$0xf]
      %v1942 = vld [vmem:[%s2 + $0xd0] sm:$0xf]
      %v1943 = vld [vmem:[%s2 + $0xf0] sm:$0xf]
      %v1952 = vunpack.c.l.b16 %v1936
      %v1953 = vunpack.c.l.b16 %v1937
      %v1954 = vunpack.c.l.b16 %v1938
      %v1955 = vunpack.c.l.b16 %v1939
      %v1956 = vunpack.c.l.b16 %v1940
      %v1957 = vunpack.c.l.b16 %v1941
      %v1958 = vunpack.c.l.b16 %v1942
      %v1959 = vunpack.c.l.b16 %v1943
      %v1960 = vpack.c.b16 %v1953, %v1952
      %v1961 = vpack.c.b16 %v1955, %v1954
      %v1962 = vpack.c.b16 %v1957, %v1956
      %v1963 = vpack.c.b16 %v1959, %v1958
      %v1969 = vsel %vm1057, %v1934, 0
      %v1972 = vsel %vm1057, %v1935, 0
      %1974 = vmatpush.bf16.msra.mxu0 0
      %1975 = vmatpush.bf16.msra.mxu0 0
      %1976 = vmatpush.bf16.msra.mxu0 0
      %1977 = vmatpush.bf16.msra.mxu0 0
      %1978 = vmatpush.bf16.msra.mxu0 %v1963
      %1979 = vmatpush.bf16.msra.mxu0 %v1962
      %1980 = vmatpush.bf16.msra.mxu0 %v1961
      %1981 = vmatpush.bf16.msra.mxu0 %v1960
      %1982 = vmatmul.bf16.gmra.mxu0 %v1969
      %v1983 = vpop.f32.mrf.mxu0
      %v1984 = vadd.f32 0.0, %v1983
      %v1985 = vpop.f32.mrf.mxu0
      %v1986 = vadd.f32 0.0, %v1985
      %1987 = vmatmul.bf16.gmra.mxu0 %v1972
      %v1988 = vpop.f32.mrf.mxu0
      %v1989 = vadd.f32 0.0, %v1988
      %v1990 = vpop.f32.mrf.mxu0
      %v1991 = vadd.f32 0.0, %v1990
      %1992 = vdwg.mxu0
      %v1993 = vpack.c.bf16 %v1984, %v1984
      %v1994 = vpack.c.bf16 %v1986, %v1986
      %v1995 = vpack.c.bf16 %v1989, %v1989
      %v1996 = vpack.c.bf16 %v1991, %v1991
      %1997 = vst [vmem:[#allocation2 + $0x10] sm:$0xf] %v1993
      %1998 = vst [vmem:[#allocation2 + $0x30] sm:$0xf] %v1994
      %1999 = vst [vmem:[#allocation2 + $0x50] sm:$0xf] %v1995
      %2000 = vst [vmem:[#allocation2 + $0x70] sm:$0xf] %v1996
      %v2001 = vld [vmem:[%s1 + $0x140] sm:$0xf]
      %v2002 = vld [vmem:[%s1 + $0x144] sm:$0xf]
      %v2003 = vld [vmem:[%s1 + $0x148] sm:$0xf]
      %v2004 = vld [vmem:[%s1 + $0x14c] sm:$0xf]
      %v2005 = vld [vmem:[%s1 + $0x150] sm:$0xf]
      %v2006 = vld [vmem:[%s1 + $0x154] sm:$0xf]
      %v2007 = vld [vmem:[%s1 + $0x158] sm:$0xf]
      %v2008 = vld [vmem:[%s1 + $0x15c] sm:$0xf]
      %v2009 = vld [vmem:[%s1 + $0x160] sm:$0xf]
      %v2010 = vld [vmem:[%s1 + $0x164] sm:$0xf]
      %v2011 = vld [vmem:[%s1 + $0x168] sm:$0xf]
      %v2012 = vld [vmem:[%s1 + $0x16c] sm:$0xf]
      %v2013 = vld [vmem:[%s1 + $0x170] sm:$0xf]
      %v2014 = vld [vmem:[%s1 + $0x174] sm:$0xf]
      %v2015 = vld [vmem:[%s1 + $0x178] sm:$0xf]
      %v2016 = vld [vmem:[%s1 + $0x17c] sm:$0xf]
      %v2017 = vunpack.c.h.b16 %v944
      %v2018 = vunpack.c.h.b16 %v948
      %v2019 = vunpack.c.h.b16 %v952
      %v2020 = vunpack.c.h.b16 %v956
      %v2021 = vpack.c.b16 %v2018, %v2017
      %v2022 = vpack.c.b16 %v2020, %v2019
      %v2041 = vunpack.c.l.b16 %v2001
      %v2042 = vunpack.c.l.b16 %v2002
      %v2043 = vunpack.c.l.b16 %v2003
      %v2044 = vunpack.c.l.b16 %v2004
      %v2045 = vunpack.c.l.b16 %v2005
      %v2046 = vunpack.c.l.b16 %v2006
      %v2047 = vunpack.c.l.b16 %v2007
      %v2048 = vunpack.c.l.b16 %v2008
      %v2049 = vunpack.c.l.b16 %v2009
      %v2050 = vunpack.c.l.b16 %v2010
      %v2051 = vunpack.c.l.b16 %v2011
      %v2052 = vunpack.c.l.b16 %v2012
      %v2053 = vunpack.c.l.b16 %v2013
      %v2054 = vunpack.c.l.b16 %v2014
      %v2055 = vunpack.c.l.b16 %v2015
      %v2056 = vunpack.c.l.b16 %v2016
      %v2057 = vpack.c.b16 %v2042, %v2041
      %v2058 = vpack.c.b16 %v2044, %v2043
      %v2059 = vpack.c.b16 %v2046, %v2045
      %v2060 = vpack.c.b16 %v2048, %v2047
      %v2061 = vpack.c.b16 %v2050, %v2049
      %v2062 = vpack.c.b16 %v2052, %v2051
      %v2063 = vpack.c.b16 %v2054, %v2053
      %v2064 = vpack.c.b16 %v2056, %v2055
      %2073 = vmatpush.bf16.msra.mxu0 %v2064
      %2074 = vmatpush.bf16.msra.mxu0 %v2063
      %2075 = vmatpush.bf16.msra.mxu0 %v2062
      %2076 = vmatpush.bf16.msra.mxu0 %v2061
      %2077 = vmatpush.bf16.msra.mxu0 %v2060
      %2078 = vmatpush.bf16.msra.mxu0 %v2059
      %2079 = vmatpush.bf16.msra.mxu0 %v2058
      %2080 = vmatpush.bf16.msra.mxu0 %v2057
      %2081 = vmatmul.bf16.gmra.mxu0 %v2021
      %v2082 = vpop.f32.mrf.mxu0
      %v2083 = vadd.f32 0.0, %v2082
      %v2084 = vpop.f32.mrf.mxu0
      %v2085 = vadd.f32 0.0, %v2084
      %2086 = vmatmul.bf16.gmra.mxu0 %v2022
      %v2087 = vpop.f32.mrf.mxu0
      %v2088 = vadd.f32 0.0, %v2087
      %v2089 = vpop.f32.mrf.mxu0
      %v2090 = vadd.f32 0.0, %v2089
      %2091 = vdwg.mxu0
      %v2092 = vsel %vm712, %v2083, -1e+30
      %v2093 = vsel %vm713, %v2085, -1e+30
      %v2094 = vsel %vm714, %v2088, -1e+30
      %v2095 = vsel %vm715, %v2090, -1e+30
      %v2096 = vsel %vm1057, %v2092, -inf
      %2097 = vmax.xlane.f32.xlu0 %v2096
      %v2098 = vpop.xlane.xlu0 %2097
      %v2099 = vsel %vm1057, %v2093, -inf
      %2100 = vmax.xlane.f32.xlu0 %v2099
      %v2101 = vpop.xlane.xlu0 %2100
      %v2102 = vsel %vm1057, %v2094, -inf
      %2103 = vmax.xlane.f32.xlu0 %v2102
      %v2104 = vpop.xlane.xlu0 %2103
      %v2105 = vsel %vm1057, %v2095, -inf
      %2106 = vmax.xlane.f32.xlu0 %v2105
      %v2107 = vpop.xlane.xlu0 %2106
      %v2108 = vsub.f32 %v2092, %v2098
      %v2109 = vsub.f32 %v2093, %v2101
      %v2110 = vsub.f32 %v2094, %v2104
      %v2111 = vsub.f32 %v2095, %v2107
      %v2112 = vmul.f32 %v2108, 1.442695
      %v2113 = vpow.pop %v2112
      %v2114 = vmul.f32 %v2109, 1.442695
      %v2115 = vpow.pop %v2114
      %v2116 = vmul.f32 %v2110, 1.442695
      %v2117 = vpow.pop %v2116
      %v2118 = vmul.f32 %v2111, 1.442695
      %v2119 = vpow.pop %v2118
      %v2120 = vsel %vm1057, %v2113, 0.0
      %2121 = vadd.xlane.f32.xlu0 %v2120
      %v2122 = vpop.xlane.xlu0 %2121
      %v2123 = vsel %vm1057, %v2115, 0.0
      %2124 = vadd.xlane.f32.xlu0 %v2123
      %v2125 = vpop.xlane.xlu0 %2124
      %v2126 = vsel %vm1057, %v2117, 0.0
      %2127 = vadd.xlane.f32.xlu0 %v2126
      %v2128 = vpop.xlane.xlu0 %2127
      %v2129 = vsel %vm1057, %v2119, 0.0
      %2130 = vadd.xlane.f32.xlu0 %v2129
      %v2131 = vpop.xlane.xlu0 %2130
      %v2132 = vrcp.pop %v2122
      %v2133 = vrcp.pop %v2125
      %v2134 = vrcp.pop %v2128
      %v2135 = vrcp.pop %v2131
      %v2136 = vmul.f32 %v2113, %v2132
      %v2137 = vmul.f32 %v2115, %v2133
      %v2138 = vmul.f32 %v2117, %v2134
      %v2139 = vmul.f32 %v2119, %v2135
      %v2140 = vpack.c.bf16 %v2137, %v2136
      %v2141 = vpack.c.bf16 %v2139, %v2138
      %v2142 = vld [vmem:[%s2 + $0x14] sm:$0xf]
      %v2143 = vld [vmem:[%s2 + $0x34] sm:$0xf]
      %v2144 = vld [vmem:[%s2 + $0x54] sm:$0xf]
      %v2145 = vld [vmem:[%s2 + $0x74] sm:$0xf]
      %v2146 = vld [vmem:[%s2 + $0x94] sm:$0xf]
      %v2147 = vld [vmem:[%s2 + $0xb4] sm:$0xf]
      %v2148 = vld [vmem:[%s2 + $0xd4] sm:$0xf]
      %v2149 = vld [vmem:[%s2 + $0xf4] sm:$0xf]
      %v2158 = vunpack.c.l.b16 %v2142
      %v2159 = vunpack.c.l.b16 %v2143
      %v2160 = vunpack.c.l.b16 %v2144
      %v2161 = vunpack.c.l.b16 %v2145
      %v2162 = vunpack.c.l.b16 %v2146
      %v2163 = vunpack.c.l.b16 %v2147
      %v2164 = vunpack.c.l.b16 %v2148
      %v2165 = vunpack.c.l.b16 %v2149
      %v2166 = vpack.c.b16 %v2159, %v2158
      %v2167 = vpack.c.b16 %v2161, %v2160
      %v2168 = vpack.c.b16 %v2163, %v2162
      %v2169 = vpack.c.b16 %v2165, %v2164
      %v2175 = vsel %vm1057, %v2140, 0
      %v2178 = vsel %vm1057, %v2141, 0
      %2180 = vmatpush.bf16.msra.mxu0 0
      %2181 = vmatpush.bf16.msra.mxu0 0
      %2182 = vmatpush.bf16.msra.mxu0 0
      %2183 = vmatpush.bf16.msra.mxu0 0
      %2184 = vmatpush.bf16.msra.mxu0 %v2169
      %2185 = vmatpush.bf16.msra.mxu0 %v2168
      %2186 = vmatpush.bf16.msra.mxu0 %v2167
      %2187 = vmatpush.bf16.msra.mxu0 %v2166
      %2188 = vmatmul.bf16.gmra.mxu0 %v2175
      %v2189 = vpop.f32.mrf.mxu0
      %v2190 = vadd.f32 0.0, %v2189
      %v2191 = vpop.f32.mrf.mxu0
      %v2192 = vadd.f32 0.0, %v2191
      %2193 = vmatmul.bf16.gmra.mxu0 %v2178
      %v2194 = vpop.f32.mrf.mxu0
      %v2195 = vadd.f32 0.0, %v2194
      %v2196 = vpop.f32.mrf.mxu0
      %v2197 = vadd.f32 0.0, %v2196
      %2198 = vdwg.mxu0
      %v2199 = vpack.c.bf16 %v2190, %v2190
      %v2200 = vpack.c.bf16 %v2192, %v2192
      %v2201 = vpack.c.bf16 %v2195, %v2195
      %v2202 = vpack.c.bf16 %v2197, %v2197
      %2203 = vst [vmem:[#allocation2 + $0x14] sm:$0xf] %v2199
      %2204 = vst [vmem:[#allocation2 + $0x34] sm:$0xf] %v2200
      %2205 = vst [vmem:[#allocation2 + $0x54] sm:$0xf] %v2201
      %2206 = vst [vmem:[#allocation2 + $0x74] sm:$0xf] %v2202
      %v2207 = vld [vmem:[%s1 + $0x180] sm:$0xf]
      %v2208 = vld [vmem:[%s1 + $0x184] sm:$0xf]
      %v2209 = vld [vmem:[%s1 + $0x188] sm:$0xf]
      %v2210 = vld [vmem:[%s1 + $0x18c] sm:$0xf]
      %v2211 = vld [vmem:[%s1 + $0x190] sm:$0xf]
      %v2212 = vld [vmem:[%s1 + $0x194] sm:$0xf]
      %v2213 = vld [vmem:[%s1 + $0x198] sm:$0xf]
      %v2214 = vld [vmem:[%s1 + $0x19c] sm:$0xf]
      %v2215 = vld [vmem:[%s1 + $0x1a0] sm:$0xf]
      %v2216 = vld [vmem:[%s1 + $0x1a4] sm:$0xf]
      %v2217 = vld [vmem:[%s1 + $0x1a8] sm:$0xf]
      %v2218 = vld [vmem:[%s1 + $0x1ac] sm:$0xf]
      %v2219 = vld [vmem:[%s1 + $0x1b0] sm:$0xf]
      %v2220 = vld [vmem:[%s1 + $0x1b4] sm:$0xf]
      %v2221 = vld [vmem:[%s1 + $0x1b8] sm:$0xf]
      %v2222 = vld [vmem:[%s1 + $0x1bc] sm:$0xf]
      %v2227 = vunpack.c.l.b16 %v945
      %v2228 = vunpack.c.l.b16 %v949
      %v2229 = vunpack.c.l.b16 %v953
      %v2230 = vunpack.c.l.b16 %v957
      %v2231 = vpack.c.b16 %v2228, %v2227
      %v2232 = vpack.c.b16 %v2230, %v2229
      %v2251 = vunpack.c.l.b16 %v2207
      %v2252 = vunpack.c.l.b16 %v2208
      %v2253 = vunpack.c.l.b16 %v2209
      %v2254 = vunpack.c.l.b16 %v2210
      %v2255 = vunpack.c.l.b16 %v2211
      %v2256 = vunpack.c.l.b16 %v2212
      %v2257 = vunpack.c.l.b16 %v2213
      %v2258 = vunpack.c.l.b16 %v2214
      %v2259 = vunpack.c.l.b16 %v2215
      %v2260 = vunpack.c.l.b16 %v2216
      %v2261 = vunpack.c.l.b16 %v2217
      %v2262 = vunpack.c.l.b16 %v2218
      %v2263 = vunpack.c.l.b16 %v2219
      %v2264 = vunpack.c.l.b16 %v2220
      %v2265 = vunpack.c.l.b16 %v2221
      %v2266 = vunpack.c.l.b16 %v2222
      %v2267 = vpack.c.b16 %v2252, %v2251
      %v2268 = vpack.c.b16 %v2254, %v2253
      %v2269 = vpack.c.b16 %v2256, %v2255
      %v2270 = vpack.c.b16 %v2258, %v2257
      %v2271 = vpack.c.b16 %v2260, %v2259
      %v2272 = vpack.c.b16 %v2262, %v2261
      %v2273 = vpack.c.b16 %v2264, %v2263
      %v2274 = vpack.c.b16 %v2266, %v2265
      %2283 = vmatpush.bf16.msra.mxu0 %v2274
      %2284 = vmatpush.bf16.msra.mxu0 %v2273
      %2285 = vmatpush.bf16.msra.mxu0 %v2272
      %2286 = vmatpush.bf16.msra.mxu0 %v2271
      %2287 = vmatpush.bf16.msra.mxu0 %v2270
      %2288 = vmatpush.bf16.msra.mxu0 %v2269
      %2289 = vmatpush.bf16.msra.mxu0 %v2268
      %2290 = vmatpush.bf16.msra.mxu0 %v2267
      %2291 = vmatmul.bf16.gmra.mxu0 %v2231
      %v2292 = vpop.f32.mrf.mxu0
      %v2293 = vadd.f32 0.0, %v2292
      %v2294 = vpop.f32.mrf.mxu0
      %v2295 = vadd.f32 0.0, %v2294
      %2296 = vmatmul.bf16.gmra.mxu0 %v2232
      %v2297 = vpop.f32.mrf.mxu0
      %v2298 = vadd.f32 0.0, %v2297
      %v2299 = vpop.f32.mrf.mxu0
      %v2300 = vadd.f32 0.0, %v2299
      %2301 = vdwg.mxu0
      %v2302 = vsel %vm712, %v2293, -1e+30
      %v2303 = vsel %vm713, %v2295, -1e+30
      %v2304 = vsel %vm714, %v2298, -1e+30
      %v2305 = vsel %vm715, %v2300, -1e+30
      %v2306 = vsel %vm1057, %v2302, -inf
      %2307 = vmax.xlane.f32.xlu0 %v2306
      %v2308 = vpop.xlane.xlu0 %2307
      %v2309 = vsel %vm1057, %v2303, -inf
      %2310 = vmax.xlane.f32.xlu0 %v2309
      %v2311 = vpop.xlane.xlu0 %2310
      %v2312 = vsel %vm1057, %v2304, -inf
      %2313 = vmax.xlane.f32.xlu0 %v2312
      %v2314 = vpop.xlane.xlu0 %2313
      %v2315 = vsel %vm1057, %v2305, -inf
      %2316 = vmax.xlane.f32.xlu0 %v2315
      %v2317 = vpop.xlane.xlu0 %2316
      %v2318 = vsub.f32 %v2302, %v2308
      %v2319 = vsub.f32 %v2303, %v2311
      %v2320 = vsub.f32 %v2304, %v2314
      %v2321 = vsub.f32 %v2305, %v2317
      %v2322 = vmul.f32 %v2318, 1.442695
      %v2323 = vpow.pop %v2322
      %v2324 = vmul.f32 %v2319, 1.442695
      %v2325 = vpow.pop %v2324
      %v2326 = vmul.f32 %v2320, 1.442695
      %v2327 = vpow.pop %v2326
      %v2328 = vmul.f32 %v2321, 1.442695
      %v2329 = vpow.pop %v2328
      %v2330 = vsel %vm1057, %v2323, 0.0
      %2331 = vadd.xlane.f32.xlu0 %v2330
      %v2332 = vpop.xlane.xlu0 %2331
      %v2333 = vsel %vm1057, %v2325, 0.0
      %2334 = vadd.xlane.f32.xlu0 %v2333
      %v2335 = vpop.xlane.xlu0 %2334
      %v2336 = vsel %vm1057, %v2327, 0.0
      %2337 = vadd.xlane.f32.xlu0 %v2336
      %v2338 = vpop.xlane.xlu0 %2337
      %v2339 = vsel %vm1057, %v2329, 0.0
      %2340 = vadd.xlane.f32.xlu0 %v2339
      %v2341 = vpop.xlane.xlu0 %2340
      %v2342 = vrcp.pop %v2332
      %v2343 = vrcp.pop %v2335
      %v2344 = vrcp.pop %v2338
      %v2345 = vrcp.pop %v2341
      %v2346 = vmul.f32 %v2323, %v2342
      %v2347 = vmul.f32 %v2325, %v2343
      %v2348 = vmul.f32 %v2327, %v2344
      %v2349 = vmul.f32 %v2329, %v2345
      %v2350 = vpack.c.bf16 %v2347, %v2346
      %v2351 = vpack.c.bf16 %v2349, %v2348
      %v2352 = vld [vmem:[%s2 + $0x18] sm:$0xf]
      %v2353 = vld [vmem:[%s2 + $0x38] sm:$0xf]
      %v2354 = vld [vmem:[%s2 + $0x58] sm:$0xf]
      %v2355 = vld [vmem:[%s2 + $0x78] sm:$0xf]
      %v2356 = vld [vmem:[%s2 + $0x98] sm:$0xf]
      %v2357 = vld [vmem:[%s2 + $0xb8] sm:$0xf]
      %v2358 = vld [vmem:[%s2 + $0xd8] sm:$0xf]
      %v2359 = vld [vmem:[%s2 + $0xf8] sm:$0xf]
      %v2368 = vunpack.c.l.b16 %v2352
      %v2369 = vunpack.c.l.b16 %v2353
      %v2370 = vunpack.c.l.b16 %v2354
      %v2371 = vunpack.c.l.b16 %v2355
      %v2372 = vunpack.c.l.b16 %v2356
      %v2373 = vunpack.c.l.b16 %v2357
      %v2374 = vunpack.c.l.b16 %v2358
      %v2375 = vunpack.c.l.b16 %v2359
      %v2376 = vpack.c.b16 %v2369, %v2368
      %v2377 = vpack.c.b16 %v2371, %v2370
      %v2378 = vpack.c.b16 %v2373, %v2372
      %v2379 = vpack.c.b16 %v2375, %v2374
      %v2385 = vsel %vm1057, %v2350, 0
      %v2388 = vsel %vm1057, %v2351, 0
      %2390 = vmatpush.bf16.msra.mxu0 0
      %2391 = vmatpush.bf16.msra.mxu0 0
      %2392 = vmatpush.bf16.msra.mxu0 0
      %2393 = vmatpush.bf16.msra.mxu0 0
      %2394 = vmatpush.bf16.msra.mxu0 %v2379
      %2395 = vmatpush.bf16.msra.mxu0 %v2378
      %2396 = vmatpush.bf16.msra.mxu0 %v2377
      %2397 = vmatpush.bf16.msra.mxu0 %v2376
      %2398 = vmatmul.bf16.gmra.mxu0 %v2385
      %v2399 = vpop.f32.mrf.mxu0
      %v2400 = vadd.f32 0.0, %v2399
      %v2401 = vpop.f32.mrf.mxu0
      %v2402 = vadd.f32 0.0, %v2401
      %2403 = vmatmul.bf16.gmra.mxu0 %v2388
      %v2404 = vpop.f32.mrf.mxu0
      %v2405 = vadd.f32 0.0, %v2404
      %v2406 = vpop.f32.mrf.mxu0
      %v2407 = vadd.f32 0.0, %v2406
      %2408 = vdwg.mxu0
      %v2409 = vpack.c.bf16 %v2400, %v2400
      %v2410 = vpack.c.bf16 %v2402, %v2402
      %v2411 = vpack.c.bf16 %v2405, %v2405
      %v2412 = vpack.c.bf16 %v2407, %v2407
      %2413 = vst [vmem:[#allocation2 + $0x18] sm:$0xf] %v2409
      %2414 = vst [vmem:[#allocation2 + $0x38] sm:$0xf] %v2410
      %2415 = vst [vmem:[#allocation2 + $0x58] sm:$0xf] %v2411
      %2416 = vst [vmem:[#allocation2 + $0x78] sm:$0xf] %v2412
      %v2417 = vld [vmem:[%s1 + $0x1c0] sm:$0xf]
      %v2418 = vld [vmem:[%s1 + $0x1c4] sm:$0xf]
      %v2419 = vld [vmem:[%s1 + $0x1c8] sm:$0xf]
      %v2420 = vld [vmem:[%s1 + $0x1cc] sm:$0xf]
      %v2421 = vld [vmem:[%s1 + $0x1d0] sm:$0xf]
      %v2422 = vld [vmem:[%s1 + $0x1d4] sm:$0xf]
      %v2423 = vld [vmem:[%s1 + $0x1d8] sm:$0xf]
      %v2424 = vld [vmem:[%s1 + $0x1dc] sm:$0xf]
      %v2425 = vld [vmem:[%s1 + $0x1e0] sm:$0xf]
      %v2426 = vld [vmem:[%s1 + $0x1e4] sm:$0xf]
      %v2427 = vld [vmem:[%s1 + $0x1e8] sm:$0xf]
      %v2428 = vld [vmem:[%s1 + $0x1ec] sm:$0xf]
      %v2429 = vld [vmem:[%s1 + $0x1f0] sm:$0xf]
      %v2430 = vld [vmem:[%s1 + $0x1f4] sm:$0xf]
      %v2431 = vld [vmem:[%s1 + $0x1f8] sm:$0xf]
      %v2432 = vld [vmem:[%s1 + $0x1fc] sm:$0xf]
      %v2433 = vunpack.c.h.b16 %v945
      %v2434 = vunpack.c.h.b16 %v949
      %v2435 = vunpack.c.h.b16 %v953
      %v2436 = vunpack.c.h.b16 %v957
      %v2437 = vpack.c.b16 %v2434, %v2433
      %v2438 = vpack.c.b16 %v2436, %v2435
      %v2457 = vunpack.c.l.b16 %v2417
      %v2458 = vunpack.c.l.b16 %v2418
      %v2459 = vunpack.c.l.b16 %v2419
      %v2460 = vunpack.c.l.b16 %v2420
      %v2461 = vunpack.c.l.b16 %v2421
      %v2462 = vunpack.c.l.b16 %v2422
      %v2463 = vunpack.c.l.b16 %v2423
      %v2464 = vunpack.c.l.b16 %v2424
      %v2465 = vunpack.c.l.b16 %v2425
      %v2466 = vunpack.c.l.b16 %v2426
      %v2467 = vunpack.c.l.b16 %v2427
      %v2468 = vunpack.c.l.b16 %v2428
      %v2469 = vunpack.c.l.b16 %v2429
      %v2470 = vunpack.c.l.b16 %v2430
      %v2471 = vunpack.c.l.b16 %v2431
      %v2472 = vunpack.c.l.b16 %v2432
      %v2473 = vpack.c.b16 %v2458, %v2457
      %v2474 = vpack.c.b16 %v2460, %v2459
      %v2475 = vpack.c.b16 %v2462, %v2461
      %v2476 = vpack.c.b16 %v2464, %v2463
      %v2477 = vpack.c.b16 %v2466, %v2465
      %v2478 = vpack.c.b16 %v2468, %v2467
      %v2479 = vpack.c.b16 %v2470, %v2469
      %v2480 = vpack.c.b16 %v2472, %v2471
      %2489 = vmatpush.bf16.msra.mxu0 %v2480
      %2490 = vmatpush.bf16.msra.mxu0 %v2479
      %2491 = vmatpush.bf16.msra.mxu0 %v2478
      %2492 = vmatpush.bf16.msra.mxu0 %v2477
      %2493 = vmatpush.bf16.msra.mxu0 %v2476
      %2494 = vmatpush.bf16.msra.mxu0 %v2475
      %2495 = vmatpush.bf16.msra.mxu0 %v2474
      %2496 = vmatpush.bf16.msra.mxu0 %v2473
      %2497 = vmatmul.bf16.gmra.mxu0 %v2437
      %v2498 = vpop.f32.mrf.mxu0
      %v2499 = vadd.f32 0.0, %v2498
      %v2500 = vpop.f32.mrf.mxu0
      %v2501 = vadd.f32 0.0, %v2500
      %2502 = vmatmul.bf16.gmra.mxu0 %v2438
      %v2503 = vpop.f32.mrf.mxu0
      %v2504 = vadd.f32 0.0, %v2503
      %v2505 = vpop.f32.mrf.mxu0
      %v2506 = vadd.f32 0.0, %v2505
      %2507 = vdwg.mxu0
      %v2508 = vsel %vm712, %v2499, -1e+30
      %v2509 = vsel %vm713, %v2501, -1e+30
      %v2510 = vsel %vm714, %v2504, -1e+30
      %v2511 = vsel %vm715, %v2506, -1e+30
      %v2512 = vsel %vm1057, %v2508, -inf
      %2513 = vmax.xlane.f32.xlu0 %v2512
      %v2514 = vpop.xlane.xlu0 %2513
      %v2515 = vsel %vm1057, %v2509, -inf
      %2516 = vmax.xlane.f32.xlu0 %v2515
      %v2517 = vpop.xlane.xlu0 %2516
      %v2518 = vsel %vm1057, %v2510, -inf
      %2519 = vmax.xlane.f32.xlu0 %v2518
      %v2520 = vpop.xlane.xlu0 %2519
      %v2521 = vsel %vm1057, %v2511, -inf
      %2522 = vmax.xlane.f32.xlu0 %v2521
      %v2523 = vpop.xlane.xlu0 %2522
      %v2524 = vsub.f32 %v2508, %v2514
      %v2525 = vsub.f32 %v2509, %v2517
      %v2526 = vsub.f32 %v2510, %v2520
      %v2527 = vsub.f32 %v2511, %v2523
      %v2528 = vmul.f32 %v2524, 1.442695
      %v2529 = vpow.pop %v2528
      %v2530 = vmul.f32 %v2525, 1.442695
      %v2531 = vpow.pop %v2530
      %v2532 = vmul.f32 %v2526, 1.442695
      %v2533 = vpow.pop %v2532
      %v2534 = vmul.f32 %v2527, 1.442695
      %v2535 = vpow.pop %v2534
      %v2536 = vsel %vm1057, %v2529, 0.0
      %2537 = vadd.xlane.f32.xlu0 %v2536
      %v2538 = vpop.xlane.xlu0 %2537
      %v2539 = vsel %vm1057, %v2531, 0.0
      %2540 = vadd.xlane.f32.xlu0 %v2539
      %v2541 = vpop.xlane.xlu0 %2540
      %v2542 = vsel %vm1057, %v2533, 0.0
      %2543 = vadd.xlane.f32.xlu0 %v2542
      %v2544 = vpop.xlane.xlu0 %2543
      %v2545 = vsel %vm1057, %v2535, 0.0
      %2546 = vadd.xlane.f32.xlu0 %v2545
      %v2547 = vpop.xlane.xlu0 %2546
      %v2548 = vrcp.pop %v2538
      %v2549 = vrcp.pop %v2541
      %v2550 = vrcp.pop %v2544
      %v2551 = vrcp.pop %v2547
      %v2552 = vmul.f32 %v2529, %v2548
      %v2553 = vmul.f32 %v2531, %v2549
      %v2554 = vmul.f32 %v2533, %v2550
      %v2555 = vmul.f32 %v2535, %v2551
      %v2556 = vpack.c.bf16 %v2553, %v2552
      %v2557 = vpack.c.bf16 %v2555, %v2554
      %v2558 = vld [vmem:[%s2 + $0x1c] sm:$0xf]
      %v2559 = vld [vmem:[%s2 + $0x3c] sm:$0xf]
      %v2560 = vld [vmem:[%s2 + $0x5c] sm:$0xf]
      %v2561 = vld [vmem:[%s2 + $0x7c] sm:$0xf]
      %v2562 = vld [vmem:[%s2 + $0x9c] sm:$0xf]
      %v2563 = vld [vmem:[%s2 + $0xbc] sm:$0xf]
      %v2564 = vld [vmem:[%s2 + $0xdc] sm:$0xf]
      %v2565 = vld [vmem:[%s2 + $0xfc] sm:$0xf]
      %v2574 = vunpack.c.l.b16 %v2558
      %v2575 = vunpack.c.l.b16 %v2559
      %v2576 = vunpack.c.l.b16 %v2560
      %v2577 = vunpack.c.l.b16 %v2561
      %v2578 = vunpack.c.l.b16 %v2562
      %v2579 = vunpack.c.l.b16 %v2563
      %v2580 = vunpack.c.l.b16 %v2564
      %v2581 = vunpack.c.l.b16 %v2565
      %v2582 = vpack.c.b16 %v2575, %v2574
      %v2583 = vpack.c.b16 %v2577, %v2576
      %v2584 = vpack.c.b16 %v2579, %v2578
      %v2585 = vpack.c.b16 %v2581, %v2580
      %v2591 = vsel %vm1057, %v2556, 0
      %v2594 = vsel %vm1057, %v2557, 0
      %2596 = vmatpush.bf16.msra.mxu0 0
      %2597 = vmatpush.bf16.msra.mxu0 0
      %2598 = vmatpush.bf16.msra.mxu0 0
      %2599 = vmatpush.bf16.msra.mxu0 0
      %2600 = vmatpush.bf16.msra.mxu0 %v2585
      %2601 = vmatpush.bf16.msra.mxu0 %v2584
      %2602 = vmatpush.bf16.msra.mxu0 %v2583
      %2603 = vmatpush.bf16.msra.mxu0 %v2582
      %2604 = vmatmul.bf16.gmra.mxu0 %v2591
      %v2605 = vpop.f32.mrf.mxu0
      %v2606 = vadd.f32 0.0, %v2605
      %v2607 = vpop.f32.mrf.mxu0
      %v2608 = vadd.f32 0.0, %v2607
      %2609 = vmatmul.bf16.gmra.mxu0 %v2594
      %v2610 = vpop.f32.mrf.mxu0
      %v2611 = vadd.f32 0.0, %v2610
      %v2612 = vpop.f32.mrf.mxu0
      %v2613 = vadd.f32 0.0, %v2612
      %2614 = vdwg.mxu0
      %v2615 = vpack.c.bf16 %v2606, %v2606
      %v2616 = vpack.c.bf16 %v2608, %v2608
      %v2617 = vpack.c.bf16 %v2611, %v2611
      %v2618 = vpack.c.bf16 %v2613, %v2613
      %2619 = vst [vmem:[#allocation2 + $0x1c] sm:$0xf] %v2615
      %2620 = vst [vmem:[#allocation2 + $0x3c] sm:$0xf] %v2616
      %2621 = vst [vmem:[#allocation2 + $0x5c] sm:$0xf] %v2617
      %2622 = vst [vmem:[#allocation2 + $0x7c] sm:$0xf] %v2618
      %v2623 = vld [vmem:[#allocation2] sm:$0xff]
      %v2624 = vld [vmem:[#allocation2 + $0x8] sm:$0xff]
      %v2625 = vld [vmem:[#allocation2 + $0x10] sm:$0xff]
      %v2626 = vld [vmem:[#allocation2 + $0x18] sm:$0xff]
      %v2627 = vld [vmem:[#allocation2 + $0x20] sm:$0xff]
      %v2628 = vld [vmem:[#allocation2 + $0x28] sm:$0xff]
      %v2629 = vld [vmem:[#allocation2 + $0x30] sm:$0xff]
      %v2630 = vld [vmem:[#allocation2 + $0x38] sm:$0xff]
      %v2631 = vld [vmem:[#allocation2 + $0x40] sm:$0xff]
      %v2632 = vld [vmem:[#allocation2 + $0x48] sm:$0xff]
      %v2633 = vld [vmem:[#allocation2 + $0x50] sm:$0xff]
      %v2634 = vld [vmem:[#allocation2 + $0x58] sm:$0xff]
      %v2635 = vld [vmem:[#allocation2 + $0x60] sm:$0xff]
      %v2636 = vld [vmem:[#allocation2 + $0x68] sm:$0xff]
      %v2637 = vld [vmem:[#allocation2 + $0x70] sm:$0xff]
      %v2638 = vld [vmem:[#allocation2 + $0x78] sm:$0xff]
      %v2639 = vld [vmem:[%s6] sm:$0xf]
      %v2640 = vld [vmem:[%s6 + $0x4] sm:$0xf]
      %v2641 = vld [vmem:[%s6 + $0x8] sm:$0xf]
      %v2642 = vld [vmem:[%s6 + $0xc] sm:$0xf]
      %v2643 = vld [vmem:[%s6 + $0x10] sm:$0xf]
      %v2644 = vld [vmem:[%s6 + $0x14] sm:$0xf]
      %v2645 = vld [vmem:[%s6 + $0x18] sm:$0xf]
      %v2646 = vld [vmem:[%s6 + $0x1c] sm:$0xf]
      %v2647 = vld [vmem:[%s6 + $0x20] sm:$0xf]
      %v2648 = vld [vmem:[%s6 + $0x24] sm:$0xf]
      %v2649 = vld [vmem:[%s6 + $0x28] sm:$0xf]
      %v2650 = vld [vmem:[%s6 + $0x2c] sm:$0xf]
      %v2651 = vld [vmem:[%s6 + $0x30] sm:$0xf]
      %v2652 = vld [vmem:[%s6 + $0x34] sm:$0xf]
      %v2653 = vld [vmem:[%s6 + $0x38] sm:$0xf]
      %v2654 = vld [vmem:[%s6 + $0x3c] sm:$0xf]
      %v2655 = vld [vmem:[%s6 + $0x40] sm:$0xf]
      %v2656 = vld [vmem:[%s6 + $0x44] sm:$0xf]
      %v2657 = vld [vmem:[%s6 + $0x48] sm:$0xf]
      %v2658 = vld [vmem:[%s6 + $0x4c] sm:$0xf]
      %v2659 = vld [vmem:[%s6 + $0x50] sm:$0xf]
      %v2660 = vld [vmem:[%s6 + $0x54] sm:$0xf]
      %v2661 = vld [vmem:[%s6 + $0x58] sm:$0xf]
      %v2662 = vld [vmem:[%s6 + $0x5c] sm:$0xf]
      %v2663 = vld [vmem:[%s6 + $0x60] sm:$0xf]
      %v2664 = vld [vmem:[%s6 + $0x64] sm:$0xf]
      %v2665 = vld [vmem:[%s6 + $0x68] sm:$0xf]
      %v2666 = vld [vmem:[%s6 + $0x6c] sm:$0xf]
      %v2667 = vld [vmem:[%s6 + $0x70] sm:$0xf]
      %v2668 = vld [vmem:[%s6 + $0x74] sm:$0xf]
      %v2669 = vld [vmem:[%s6 + $0x78] sm:$0xf]
      %v2670 = vld [vmem:[%s6 + $0x7c] sm:$0xf]
      %v2671 = vld [vmem:[%s6 + $0x80] sm:$0xf]
      %v2672 = vld [vmem:[%s6 + $0x84] sm:$0xf]
      %v2673 = vld [vmem:[%s6 + $0x88] sm:$0xf]
      %v2674 = vld [vmem:[%s6 + $0x8c] sm:$0xf]
      %v2675 = vld [vmem:[%s6 + $0x90] sm:$0xf]
      %v2676 = vld [vmem:[%s6 + $0x94] sm:$0xf]
      %v2677 = vld [vmem:[%s6 + $0x98] sm:$0xf]
      %v2678 = vld [vmem:[%s6 + $0x9c] sm:$0xf]
      %v2679 = vld [vmem:[%s6 + $0xa0] sm:$0xf]
      %v2680 = vld [vmem:[%s6 + $0xa4] sm:$0xf]
      %v2681 = vld [vmem:[%s6 + $0xa8] sm:$0xf]
      %v2682 = vld [vmem:[%s6 + $0xac] sm:$0xf]
      %v2683 = vld [vmem:[%s6 + $0xb0] sm:$0xf]
      %v2684 = vld [vmem:[%s6 + $0xb4] sm:$0xf]
      %v2685 = vld [vmem:[%s6 + $0xb8] sm:$0xf]
      %v2686 = vld [vmem:[%s6 + $0xbc] sm:$0xf]
      %v2687 = vld [vmem:[%s6 + $0xc0] sm:$0xf]
      %v2688 = vld [vmem:[%s6 + $0xc4] sm:$0xf]
      %v2689 = vld [vmem:[%s6 + $0xc8] sm:$0xf]
      %v2690 = vld [vmem:[%s6 + $0xcc] sm:$0xf]
      %v2691 = vld [vmem:[%s6 + $0xd0] sm:$0xf]
      %v2692 = vld [vmem:[%s6 + $0xd4] sm:$0xf]
      %v2693 = vld [vmem:[%s6 + $0xd8] sm:$0xf]
      %v2694 = vld [vmem:[%s6 + $0xdc] sm:$0xf]
      %v2695 = vld [vmem:[%s6 + $0xe0] sm:$0xf]
      %v2696 = vld [vmem:[%s6 + $0xe4] sm:$0xf]
      %v2697 = vld [vmem:[%s6 + $0xe8] sm:$0xf]
      %v2698 = vld [vmem:[%s6 + $0xec] sm:$0xf]
      %v2699 = vld [vmem:[%s6 + $0xf0] sm:$0xf]
      %v2700 = vld [vmem:[%s6 + $0xf4] sm:$0xf]
      %v2701 = vld [vmem:[%s6 + $0xf8] sm:$0xf]
      %v2702 = vld [vmem:[%s6 + $0xfc] sm:$0xf]
      %v2703 = vld [vmem:[%s6 + $0x100] sm:$0xf]
      %v2704 = vld [vmem:[%s6 + $0x104] sm:$0xf]
      %v2705 = vld [vmem:[%s6 + $0x108] sm:$0xf]
      %v2706 = vld [vmem:[%s6 + $0x10c] sm:$0xf]
      %v2707 = vld [vmem:[%s6 + $0x110] sm:$0xf]
      %v2708 = vld [vmem:[%s6 + $0x114] sm:$0xf]
      %v2709 = vld [vmem:[%s6 + $0x118] sm:$0xf]
      %v2710 = vld [vmem:[%s6 + $0x11c] sm:$0xf]
      %v2711 = vld [vmem:[%s6 + $0x120] sm:$0xf]
      %v2712 = vld [vmem:[%s6 + $0x124] sm:$0xf]
      %v2713 = vld [vmem:[%s6 + $0x128] sm:$0xf]
      %v2714 = vld [vmem:[%s6 + $0x12c] sm:$0xf]
      %v2715 = vld [vmem:[%s6 + $0x130] sm:$0xf]
      %v2716 = vld [vmem:[%s6 + $0x134] sm:$0xf]
      %v2717 = vld [vmem:[%s6 + $0x138] sm:$0xf]
      %v2718 = vld [vmem:[%s6 + $0x13c] sm:$0xf]
      %v2719 = vld [vmem:[%s6 + $0x140] sm:$0xf]
      %v2720 = vld [vmem:[%s6 + $0x144] sm:$0xf]
      %v2721 = vld [vmem:[%s6 + $0x148] sm:$0xf]
      %v2722 = vld [vmem:[%s6 + $0x14c] sm:$0xf]
      %v2723 = vld [vmem:[%s6 + $0x150] sm:$0xf]
      %v2724 = vld [vmem:[%s6 + $0x154] sm:$0xf]
      %v2725 = vld [vmem:[%s6 + $0x158] sm:$0xf]
      %v2726 = vld [vmem:[%s6 + $0x15c] sm:$0xf]
      %v2727 = vld [vmem:[%s6 + $0x160] sm:$0xf]
      %v2728 = vld [vmem:[%s6 + $0x164] sm:$0xf]
      %v2729 = vld [vmem:[%s6 + $0x168] sm:$0xf]
      %v2730 = vld [vmem:[%s6 + $0x16c] sm:$0xf]
      %v2731 = vld [vmem:[%s6 + $0x170] sm:$0xf]
      %v2732 = vld [vmem:[%s6 + $0x174] sm:$0xf]
      %v2733 = vld [vmem:[%s6 + $0x178] sm:$0xf]
      %v2734 = vld [vmem:[%s6 + $0x17c] sm:$0xf]
      %v2735 = vld [vmem:[%s6 + $0x180] sm:$0xf]
      %v2736 = vld [vmem:[%s6 + $0x184] sm:$0xf]
      %v2737 = vld [vmem:[%s6 + $0x188] sm:$0xf]
      %v2738 = vld [vmem:[%s6 + $0x18c] sm:$0xf]
      %v2739 = vld [vmem:[%s6 + $0x190] sm:$0xf]
      %v2740 = vld [vmem:[%s6 + $0x194] sm:$0xf]
      %v2741 = vld [vmem:[%s6 + $0x198] sm:$0xf]
      %v2742 = vld [vmem:[%s6 + $0x19c] sm:$0xf]
      %v2743 = vld [vmem:[%s6 + $0x1a0] sm:$0xf]
      %v2744 = vld [vmem:[%s6 + $0x1a4] sm:$0xf]
      %v2745 = vld [vmem:[%s6 + $0x1a8] sm:$0xf]
      %v2746 = vld [vmem:[%s6 + $0x1ac] sm:$0xf]
      %v2747 = vld [vmem:[%s6 + $0x1b0] sm:$0xf]
      %v2748 = vld [vmem:[%s6 + $0x1b4] sm:$0xf]
      %v2749 = vld [vmem:[%s6 + $0x1b8] sm:$0xf]
      %v2750 = vld [vmem:[%s6 + $0x1bc] sm:$0xf]
      %v2751 = vld [vmem:[%s6 + $0x1c0] sm:$0xf]
      %v2752 = vld [vmem:[%s6 + $0x1c4] sm:$0xf]
      %v2753 = vld [vmem:[%s6 + $0x1c8] sm:$0xf]
      %v2754 = vld [vmem:[%s6 + $0x1cc] sm:$0xf]
      %v2755 = vld [vmem:[%s6 + $0x1d0] sm:$0xf]
      %v2756 = vld [vmem:[%s6 + $0x1d4] sm:$0xf]
      %v2757 = vld [vmem:[%s6 + $0x1d8] sm:$0xf]
      %v2758 = vld [vmem:[%s6 + $0x1dc] sm:$0xf]
      %v2759 = vld [vmem:[%s6 + $0x1e0] sm:$0xf]
      %v2760 = vld [vmem:[%s6 + $0x1e4] sm:$0xf]
      %v2761 = vld [vmem:[%s6 + $0x1e8] sm:$0xf]
      %v2762 = vld [vmem:[%s6 + $0x1ec] sm:$0xf]
      %v2763 = vld [vmem:[%s6 + $0x1f0] sm:$0xf]
      %v2764 = vld [vmem:[%s6 + $0x1f4] sm:$0xf]
      %v2765 = vld [vmem:[%s6 + $0x1f8] sm:$0xf]
      %v2766 = vld [vmem:[%s6 + $0x1fc] sm:$0xf]
      %v2767 = vld [vmem:[%s7] sm:$0x1]
      %v2769 = vperm.slane %v2767, 0
      %v2787 = vunpack.c.l.b16 %v2623
      %v2788 = vunpack.c.h.b16 %v2623
      %v2789 = vunpack.c.l.b16 %v2624
      %v2790 = vunpack.c.h.b16 %v2624
      %v2791 = vunpack.c.l.b16 %v2625
      %v2792 = vunpack.c.h.b16 %v2625
      %v2793 = vunpack.c.l.b16 %v2626
      %v2794 = vunpack.c.h.b16 %v2626
      %v2795 = vunpack.c.l.b16 %v2627
      %v2796 = vunpack.c.h.b16 %v2627
      %v2797 = vunpack.c.l.b16 %v2628
      %v2798 = vunpack.c.h.b16 %v2628
      %v2799 = vunpack.c.l.b16 %v2629
      %v2800 = vunpack.c.h.b16 %v2629
      %v2801 = vunpack.c.l.b16 %v2630
      %v2802 = vunpack.c.h.b16 %v2630
      %v2803 = vunpack.c.l.b16 %v2631
      %v2804 = vunpack.c.h.b16 %v2631
      %v2805 = vunpack.c.l.b16 %v2632
      %v2806 = vunpack.c.h.b16 %v2632
      %v2807 = vunpack.c.l.b16 %v2633
      %v2808 = vunpack.c.h.b16 %v2633
      %v2809 = vunpack.c.l.b16 %v2634
      %v2810 = vunpack.c.h.b16 %v2634
      %v2811 = vunpack.c.l.b16 %v2635
      %v2812 = vunpack.c.h.b16 %v2635
      %v2813 = vunpack.c.l.b16 %v2636
      %v2814 = vunpack.c.h.b16 %v2636
      %v2815 = vunpack.c.l.b16 %v2637
      %v2816 = vunpack.c.h.b16 %v2637
      %v2817 = vunpack.c.l.b16 %v2638
      %v2818 = vunpack.c.h.b16 %v2638
      %v2819 = vpack.c.b16 %v2795, %v2787
      %v2820 = vpack.c.b16 %v2796, %v2788
      %v2821 = vpack.c.b16 %v2797, %v2789
      %v2822 = vpack.c.b16 %v2798, %v2790
      %v2823 = vpack.c.b16 %v2799, %v2791
      %v2824 = vpack.c.b16 %v2800, %v2792
      %v2825 = vpack.c.b16 %v2801, %v2793
      %v2826 = vpack.c.b16 %v2802, %v2794
      %v2827 = vpack.c.b16 %v2811, %v2803
      %v2828 = vpack.c.b16 %v2812, %v2804
      %v2829 = vpack.c.b16 %v2813, %v2805
      %v2830 = vpack.c.b16 %v2814, %v2806
      %v2831 = vpack.c.b16 %v2815, %v2807
      %v2832 = vpack.c.b16 %v2816, %v2808
      %v2833 = vpack.c.b16 %v2817, %v2809
      %v2834 = vpack.c.b16 %v2818, %v2810
      %v2979 = vunpack.c.l.b16 %v2639
      %v2980 = vunpack.c.l.b16 %v2640
      %v2981 = vunpack.c.l.b16 %v2641
      %v2982 = vunpack.c.l.b16 %v2642
      %v2983 = vunpack.c.l.b16 %v2643
      %v2984 = vunpack.c.l.b16 %v2644
      %v2985 = vunpack.c.l.b16 %v2645
      %v2986 = vunpack.c.l.b16 %v2646
      %v2987 = vunpack.c.l.b16 %v2647
      %v2988 = vunpack.c.l.b16 %v2648
      %v2989 = vunpack.c.l.b16 %v2649
      %v2990 = vunpack.c.l.b16 %v2650
      %v2991 = vunpack.c.l.b16 %v2651
      %v2992 = vunpack.c.l.b16 %v2652
      %v2993 = vunpack.c.l.b16 %v2653
      %v2994 = vunpack.c.l.b16 %v2654
      %v2995 = vunpack.c.l.b16 %v2655
      %v2996 = vunpack.c.l.b16 %v2656
      %v2997 = vunpack.c.l.b16 %v2657
      %v2998 = vunpack.c.l.b16 %v2658
      %v2999 = vunpack.c.l.b16 %v2659
      %v3000 = vunpack.c.l.b16 %v2660
      %v3001 = vunpack.c.l.b16 %v2661
      %v3002 = vunpack.c.l.b16 %v2662
      %v3003 = vunpack.c.l.b16 %v2663
      %v3004 = vunpack.c.l.b16 %v2664
      %v3005 = vunpack.c.l.b16 %v2665
      %v3006 = vunpack.c.l.b16 %v2666
      %v3007 = vunpack.c.l.b16 %v2667
      %v3008 = vunpack.c.l.b16 %v2668
      %v3009 = vunpack.c.l.b16 %v2669
      %v3010 = vunpack.c.l.b16 %v2670
      %v3011 = vunpack.c.l.b16 %v2671
      %v3012 = vunpack.c.l.b16 %v2672
      %v3013 = vunpack.c.l.b16 %v2673
      %v3014 = vunpack.c.l.b16 %v2674
      %v3015 = vunpack.c.l.b16 %v2675
      %v3016 = vunpack.c.l.b16 %v2676
      %v3017 = vunpack.c.l.b16 %v2677
      %v3018 = vunpack.c.l.b16 %v2678
      %v3019 = vunpack.c.l.b16 %v2679
      %v3020 = vunpack.c.l.b16 %v2680
      %v3021 = vunpack.c.l.b16 %v2681
      %v3022 = vunpack.c.l.b16 %v2682
      %v3023 = vunpack.c.l.b16 %v2683
      %v3024 = vunpack.c.l.b16 %v2684
      %v3025 = vunpack.c.l.b16 %v2685
      %v3026 = vunpack.c.l.b16 %v2686
      %v3027 = vunpack.c.l.b16 %v2687
      %v3028 = vunpack.c.l.b16 %v2688
      %v3029 = vunpack.c.l.b16 %v2689
      %v3030 = vunpack.c.l.b16 %v2690
      %v3031 = vunpack.c.l.b16 %v2691
      %v3032 = vunpack.c.l.b16 %v2692
      %v3033 = vunpack.c.l.b16 %v2693
      %v3034 = vunpack.c.l.b16 %v2694
      %v3035 = vunpack.c.l.b16 %v2695
      %v3036 = vunpack.c.l.b16 %v2696
      %v3037 = vunpack.c.l.b16 %v2697
      %v3038 = vunpack.c.l.b16 %v2698
      %v3039 = vunpack.c.l.b16 %v2699
      %v3040 = vunpack.c.l.b16 %v2700
      %v3041 = vunpack.c.l.b16 %v2701
      %v3042 = vunpack.c.l.b16 %v2702
      %v3043 = vunpack.c.l.b16 %v2703
      %v3044 = vunpack.c.l.b16 %v2704
      %v3045 = vunpack.c.l.b16 %v2705
      %v3046 = vunpack.c.l.b16 %v2706
      %v3047 = vunpack.c.l.b16 %v2707
      %v3048 = vunpack.c.l.b16 %v2708
      %v3049 = vunpack.c.l.b16 %v2709
      %v3050 = vunpack.c.l.b16 %v2710
      %v3051 = vunpack.c.l.b16 %v2711
      %v3052 = vunpack.c.l.b16 %v2712
      %v3053 = vunpack.c.l.b16 %v2713
      %v3054 = vunpack.c.l.b16 %v2714
      %v3055 = vunpack.c.l.b16 %v2715
      %v3056 = vunpack.c.l.b16 %v2716
      %v3057 = vunpack.c.l.b16 %v2717
      %v3058 = vunpack.c.l.b16 %v2718
      %v3059 = vunpack.c.l.b16 %v2719
      %v3060 = vunpack.c.l.b16 %v2720
      %v3061 = vunpack.c.l.b16 %v2721
      %v3062 = vunpack.c.l.b16 %v2722
      %v3063 = vunpack.c.l.b16 %v2723
      %v3064 = vunpack.c.l.b16 %v2724
      %v3065 = vunpack.c.l.b16 %v2725
      %v3066 = vunpack.c.l.b16 %v2726
      %v3067 = vunpack.c.l.b16 %v2727
      %v3068 = vunpack.c.l.b16 %v2728
      %v3069 = vunpack.c.l.b16 %v2729
      %v3070 = vunpack.c.l.b16 %v2730
      %v3071 = vunpack.c.l.b16 %v2731
      %v3072 = vunpack.c.l.b16 %v2732
      %v3073 = vunpack.c.l.b16 %v2733
      %v3074 = vunpack.c.l.b16 %v2734
      %v3075 = vunpack.c.l.b16 %v2735
      %v3076 = vunpack.c.l.b16 %v2736
      %v3077 = vunpack.c.l.b16 %v2737
      %v3078 = vunpack.c.l.b16 %v2738
      %v3079 = vunpack.c.l.b16 %v2739
      %v3080 = vunpack.c.l.b16 %v2740
      %v3081 = vunpack.c.l.b16 %v2741
      %v3082 = vunpack.c.l.b16 %v2742
      %v3083 = vunpack.c.l.b16 %v2743
      %v3084 = vunpack.c.l.b16 %v2744
      %v3085 = vunpack.c.l.b16 %v2745
      %v3086 = vunpack.c.l.b16 %v2746
      %v3087 = vunpack.c.l.b16 %v2747
      %v3088 = vunpack.c.l.b16 %v2748
      %v3089 = vunpack.c.l.b16 %v2749
      %v3090 = vunpack.c.l.b16 %v2750
      %v3091 = vunpack.c.l.b16 %v2751
      %v3092 = vunpack.c.l.b16 %v2752
      %v3093 = vunpack.c.l.b16 %v2753
      %v3094 = vunpack.c.l.b16 %v2754
      %v3095 = vunpack.c.l.b16 %v2755
      %v3096 = vunpack.c.l.b16 %v2756
      %v3097 = vunpack.c.l.b16 %v2757
      %v3098 = vunpack.c.l.b16 %v2758
      %v3099 = vunpack.c.l.b16 %v2759
      %v3100 = vunpack.c.l.b16 %v2760
      %v3101 = vunpack.c.l.b16 %v2761
      %v3102 = vunpack.c.l.b16 %v2762
      %v3103 = vunpack.c.l.b16 %v2763
      %v3104 = vunpack.c.l.b16 %v2764
      %v3105 = vunpack.c.l.b16 %v2765
      %v3106 = vunpack.c.l.b16 %v2766
      %v3107 = vpack.c.b16 %v2980, %v2979
      %v3108 = vpack.c.b16 %v2982, %v2981
      %v3109 = vpack.c.b16 %v2984, %v2983
      %v3110 = vpack.c.b16 %v2986, %v2985
      %v3111 = vpack.c.b16 %v2988, %v2987
      %v3112 = vpack.c.b16 %v2990, %v2989
      %v3113 = vpack.c.b16 %v2992, %v2991
      %v3114 = vpack.c.b16 %v2994, %v2993
      %v3115 = vpack.c.b16 %v2996, %v2995
      %v3116 = vpack.c.b16 %v2998, %v2997
      %v3117 = vpack.c.b16 %v3000, %v2999
      %v3118 = vpack.c.b16 %v3002, %v3001
      %v3119 = vpack.c.b16 %v3004, %v3003
      %v3120 = vpack.c.b16 %v3006, %v3005
      %v3121 = vpack.c.b16 %v3008, %v3007
      %v3122 = vpack.c.b16 %v3010, %v3009
      %v3123 = vpack.c.b16 %v3012, %v3011
      %v3124 = vpack.c.b16 %v3014, %v3013
      %v3125 = vpack.c.b16 %v3016, %v3015
      %v3126 = vpack.c.b16 %v3018, %v3017
      %v3127 = vpack.c.b16 %v3020, %v3019
      %v3128 = vpack.c.b16 %v3022, %v3021
      %v3129 = vpack.c.b16 %v3024, %v3023
      %v3130 = vpack.c.b16 %v3026, %v3025
      %v3131 = vpack.c.b16 %v3028, %v3027
      %v3132 = vpack.c.b16 %v3030, %v3029
      %v3133 = vpack.c.b16 %v3032, %v3031
      %v3134 = vpack.c.b16 %v3034, %v3033
      %v3135 = vpack.c.b16 %v3036, %v3035
      %v3136 = vpack.c.b16 %v3038, %v3037
      %v3137 = vpack.c.b16 %v3040, %v3039
      %v3138 = vpack.c.b16 %v3042, %v3041
      %v3139 = vpack.c.b16 %v3044, %v3043
      %v3140 = vpack.c.b16 %v3046, %v3045
      %v3141 = vpack.c.b16 %v3048, %v3047
      %v3142 = vpack.c.b16 %v3050, %v3049
      %v3143 = vpack.c.b16 %v3052, %v3051
      %v3144 = vpack.c.b16 %v3054, %v3053
      %v3145 = vpack.c.b16 %v3056, %v3055
      %v3146 = vpack.c.b16 %v3058, %v3057
      %v3147 = vpack.c.b16 %v3060, %v3059
      %v3148 = vpack.c.b16 %v3062, %v3061
      %v3149 = vpack.c.b16 %v3064, %v3063
      %v3150 = vpack.c.b16 %v3066, %v3065
      %v3151 = vpack.c.b16 %v3068, %v3067
      %v3152 = vpack.c.b16 %v3070, %v3069
      %v3153 = vpack.c.b16 %v3072, %v3071
      %v3154 = vpack.c.b16 %v3074, %v3073
      %v3155 = vpack.c.b16 %v3076, %v3075
      %v3156 = vpack.c.b16 %v3078, %v3077
      %v3157 = vpack.c.b16 %v3080, %v3079
      %v3158 = vpack.c.b16 %v3082, %v3081
      %v3159 = vpack.c.b16 %v3084, %v3083
      %v3160 = vpack.c.b16 %v3086, %v3085
      %v3161 = vpack.c.b16 %v3088, %v3087
      %v3162 = vpack.c.b16 %v3090, %v3089
      %v3163 = vpack.c.b16 %v3092, %v3091
      %v3164 = vpack.c.b16 %v3094, %v3093
      %v3165 = vpack.c.b16 %v3096, %v3095
      %v3166 = vpack.c.b16 %v3098, %v3097
      %v3167 = vpack.c.b16 %v3100, %v3099
      %v3168 = vpack.c.b16 %v3102, %v3101
      %v3169 = vpack.c.b16 %v3104, %v3103
      %v3170 = vpack.c.b16 %v3106, %v3105
      %3235 = vmatpush.bf16.msra.mxu0 %v3114
      %3236 = vmatpush.bf16.msra.mxu0 %v3113
      %3237 = vmatpush.bf16.msra.mxu0 %v3112
      %3238 = vmatpush.bf16.msra.mxu0 %v3111
      %3239 = vmatpush.bf16.msra.mxu0 %v3110
      %3240 = vmatpush.bf16.msra.mxu0 %v3109
      %3241 = vmatpush.bf16.msra.mxu0 %v3108
      %3242 = vmatpush.bf16.msra.mxu0 %v3107
      %3243 = vmatmul.bf16.gmra.mxu0 %v2819
      %v3244 = vpop.f32.mrf.mxu0
      %v3245 = vadd.f32 %v2769, %v3244
      %v3246 = vpop.f32.mrf.mxu0
      %v3247 = vadd.f32 %v2769, %v3246
      %3248 = vmatmul.bf16.gmra.mxu0 %v2827
      %v3249 = vpop.f32.mrf.mxu0
      %v3250 = vadd.f32 %v2769, %v3249
      %v3251 = vpop.f32.mrf.mxu0
      %v3252 = vadd.f32 %v2769, %v3251
      %3253 = vdwg.mxu0
      %3254 = vmatpush.bf16.msra.mxu0 %v3122
      %3255 = vmatpush.bf16.msra.mxu0 %v3121
      %3256 = vmatpush.bf16.msra.mxu0 %v3120
      %3257 = vmatpush.bf16.msra.mxu0 %v3119
      %3258 = vmatpush.bf16.msra.mxu0 %v3118
      %3259 = vmatpush.bf16.msra.mxu0 %v3117
      %3260 = vmatpush.bf16.msra.mxu0 %v3116
      %3261 = vmatpush.bf16.msra.mxu0 %v3115
      %3262 = vmatmul.bf16.gmra.mxu0 %v2820
      %v3263 = vpop.f32.mrf.mxu0
      %v3264 = vadd.f32 %v3245, %v3263
      %v3265 = vpop.f32.mrf.mxu0
      %v3266 = vadd.f32 %v3247, %v3265
      %3267 = vmatmul.bf16.gmra.mxu0 %v2828
      %v3268 = vpop.f32.mrf.mxu0
      %v3269 = vadd.f32 %v3250, %v3268
      %v3270 = vpop.f32.mrf.mxu0
      %v3271 = vadd.f32 %v3252, %v3270
      %3272 = vdwg.mxu0
      %3273 = vmatpush.bf16.msra.mxu0 %v3130
      %3274 = vmatpush.bf16.msra.mxu0 %v3129
      %3275 = vmatpush.bf16.msra.mxu0 %v3128
      %3276 = vmatpush.bf16.msra.mxu0 %v3127
      %3277 = vmatpush.bf16.msra.mxu0 %v3126
      %3278 = vmatpush.bf16.msra.mxu0 %v3125
      %3279 = vmatpush.bf16.msra.mxu0 %v3124
      %3280 = vmatpush.bf16.msra.mxu0 %v3123
      %3281 = vmatmul.bf16.gmra.mxu0 %v2821
      %v3282 = vpop.f32.mrf.mxu0
      %v3283 = vadd.f32 %v3264, %v3282
      %v3284 = vpop.f32.mrf.mxu0
      %v3285 = vadd.f32 %v3266, %v3284
      %3286 = vmatmul.bf16.gmra.mxu0 %v2829
      %v3287 = vpop.f32.mrf.mxu0
      %v3288 = vadd.f32 %v3269, %v3287
      %v3289 = vpop.f32.mrf.mxu0
      %v3290 = vadd.f32 %v3271, %v3289
      %3291 = vdwg.mxu0
      %3292 = vmatpush.bf16.msra.mxu0 %v3138
      %3293 = vmatpush.bf16.msra.mxu0 %v3137
      %3294 = vmatpush.bf16.msra.mxu0 %v3136
      %3295 = vmatpush.bf16.msra.mxu0 %v3135
      %3296 = vmatpush.bf16.msra.mxu0 %v3134
      %3297 = vmatpush.bf16.msra.mxu0 %v3133
      %3298 = vmatpush.bf16.msra.mxu0 %v3132
      %3299 = vmatpush.bf16.msra.mxu0 %v3131
      %3300 = vmatmul.bf16.gmra.mxu0 %v2822
      %v3301 = vpop.f32.mrf.mxu0
      %v3302 = vadd.f32 %v3283, %v3301
      %v3303 = vpop.f32.mrf.mxu0
      %v3304 = vadd.f32 %v3285, %v3303
      %3305 = vmatmul.bf16.gmra.mxu0 %v2830
      %v3306 = vpop.f32.mrf.mxu0
      %v3307 = vadd.f32 %v3288, %v3306
      %v3308 = vpop.f32.mrf.mxu0
      %v3309 = vadd.f32 %v3290, %v3308
      %3310 = vdwg.mxu0
      %3311 = vmatpush.bf16.msra.mxu0 %v3146
      %3312 = vmatpush.bf16.msra.mxu0 %v3145
      %3313 = vmatpush.bf16.msra.mxu0 %v3144
      %3314 = vmatpush.bf16.msra.mxu0 %v3143
      %3315 = vmatpush.bf16.msra.mxu0 %v3142
      %3316 = vmatpush.bf16.msra.mxu0 %v3141
      %3317 = vmatpush.bf16.msra.mxu0 %v3140
      %3318 = vmatpush.bf16.msra.mxu0 %v3139
      %3319 = vmatmul.bf16.gmra.mxu0 %v2823
      %v3320 = vpop.f32.mrf.mxu0
      %v3321 = vadd.f32 %v3302, %v3320
      %v3322 = vpop.f32.mrf.mxu0
      %v3323 = vadd.f32 %v3304, %v3322
      %3324 = vmatmul.bf16.gmra.mxu0 %v2831
      %v3325 = vpop.f32.mrf.mxu0
      %v3326 = vadd.f32 %v3307, %v3325
      %v3327 = vpop.f32.mrf.mxu0
      %v3328 = vadd.f32 %v3309, %v3327
      %3329 = vdwg.mxu0
      %3330 = vmatpush.bf16.msra.mxu0 %v3154
      %3331 = vmatpush.bf16.msra.mxu0 %v3153
      %3332 = vmatpush.bf16.msra.mxu0 %v3152
      %3333 = vmatpush.bf16.msra.mxu0 %v3151
      %3334 = vmatpush.bf16.msra.mxu0 %v3150
      %3335 = vmatpush.bf16.msra.mxu0 %v3149
      %3336 = vmatpush.bf16.msra.mxu0 %v3148
      %3337 = vmatpush.bf16.msra.mxu0 %v3147
      %3338 = vmatmul.bf16.gmra.mxu0 %v2824
      %v3339 = vpop.f32.mrf.mxu0
      %v3340 = vadd.f32 %v3321, %v3339
      %v3341 = vpop.f32.mrf.mxu0
      %v3342 = vadd.f32 %v3323, %v3341
      %3343 = vmatmul.bf16.gmra.mxu0 %v2832
      %v3344 = vpop.f32.mrf.mxu0
      %v3345 = vadd.f32 %v3326, %v3344
      %v3346 = vpop.f32.mrf.mxu0
      %v3347 = vadd.f32 %v3328, %v3346
      %3348 = vdwg.mxu0
      %3349 = vmatpush.bf16.msra.mxu0 %v3162
      %3350 = vmatpush.bf16.msra.mxu0 %v3161
      %3351 = vmatpush.bf16.msra.mxu0 %v3160
      %3352 = vmatpush.bf16.msra.mxu0 %v3159
      %3353 = vmatpush.bf16.msra.mxu0 %v3158
      %3354 = vmatpush.bf16.msra.mxu0 %v3157
      %3355 = vmatpush.bf16.msra.mxu0 %v3156
      %3356 = vmatpush.bf16.msra.mxu0 %v3155
      %3357 = vmatmul.bf16.gmra.mxu0 %v2825
      %v3358 = vpop.f32.mrf.mxu0
      %v3359 = vadd.f32 %v3340, %v3358
      %v3360 = vpop.f32.mrf.mxu0
      %v3361 = vadd.f32 %v3342, %v3360
      %3362 = vmatmul.bf16.gmra.mxu0 %v2833
      %v3363 = vpop.f32.mrf.mxu0
      %v3364 = vadd.f32 %v3345, %v3363
      %v3365 = vpop.f32.mrf.mxu0
      %v3366 = vadd.f32 %v3347, %v3365
      %3367 = vdwg.mxu0
      %3368 = vmatpush.bf16.msra.mxu0 %v3170
      %3369 = vmatpush.bf16.msra.mxu0 %v3169
      %3370 = vmatpush.bf16.msra.mxu0 %v3168
      %3371 = vmatpush.bf16.msra.mxu0 %v3167
      %3372 = vmatpush.bf16.msra.mxu0 %v3166
      %3373 = vmatpush.bf16.msra.mxu0 %v3165
      %3374 = vmatpush.bf16.msra.mxu0 %v3164
      %3375 = vmatpush.bf16.msra.mxu0 %v3163
      %3376 = vmatmul.bf16.gmra.mxu0 %v2826
      %v3377 = vpop.f32.mrf.mxu0
      %v3378 = vadd.f32 %v3359, %v3377
      %v3379 = vpop.f32.mrf.mxu0
      %v3380 = vadd.f32 %v3361, %v3379
      %3381 = vmatmul.bf16.gmra.mxu0 %v2834
      %v3382 = vpop.f32.mrf.mxu0
      %v3383 = vadd.f32 %v3364, %v3382
      %v3384 = vpop.f32.mrf.mxu0
      %v3385 = vadd.f32 %v3366, %v3384
      %3386 = vdwg.mxu0
      %v3387 = vadd.f32 %v548, %v3378
      %v3388 = vadd.f32 %v549, %v3380
      %v3389 = vadd.f32 %v550, %v3383
      %v3390 = vadd.f32 %v551, %v3385
      %v3391 = vpack.c.bf16 %v3388, %v3387
      %v3392 = vpack.c.bf16 %v3390, %v3389
      %v3393 = vld [vmem:[%s8] sm:$0xf]
      %v3394 = vld [vmem:[%s9] sm:$0x1]
      %v3396 = vperm.slane %v3394, 0
      %v3399 = vsel %vm758, %v3391, 0
      %v3402 = vsel %vm758, %v3392, 0
      %v3405 = vsel %vm765, %v3393, 0
      %3407 = vmatpush.bf16.msra.mxu0 0
      %3408 = vmatpush.bf16.msra.mxu0 0
      %3409 = vmatpush.bf16.msra.mxu0 0
      %3410 = vmatpush.bf16.msra.mxu0 0
      %3411 = vmatpush.bf16.msra.mxu0 0
      %3412 = vmatpush.bf16.msra.mxu0 0
      %3413 = vmatpush.bf16.msra.mxu0 0
      %3414 = vmatpush.bf16.msra.mxu0 %v3405
      %3415 = vmatmul.bf16.gmra.mxu0 %v3399
      %v3416 = vpop.f32.mrf.mxu0
      %v3417 = vadd.f32 %v3396, %v3416
      %v3418 = vpop.f32.mrf.mxu0
      %v3419 = vadd.f32 %v3396, %v3418
      %3420 = vmatmul.bf16.gmra.mxu0 %v3402
      %v3421 = vpop.f32.mrf.mxu0
      %v3422 = vadd.f32 %v3396, %v3421
      %v3423 = vpop.f32.mrf.mxu0
      %v3424 = vadd.f32 %v3396, %v3423
      %3425 = vdwg.mxu0
      %v3426 = vmax.f32 %v3417, 0.0
      %v3427 = vmax.f32 %v3419, 0.0
      %v3428 = vmax.f32 %v3422, 0.0
      %v3429 = vmax.f32 %v3424, 0.0
      %v3430 = vpack.c.bf16 %v3427, %v3426
      %v3431 = vpack.c.bf16 %v3429, %v3428
      %v3432 = vld [vmem:[%s10] sm:$0xf]
      %v3433 = vld [vmem:[%s10 + $0x4] sm:$0xf]
      %v3434 = vld [vmem:[%s10 + $0x8] sm:$0xf]
      %v3435 = vld [vmem:[%s10 + $0xc] sm:$0xf]
      %v3436 = vld [vmem:[%s10 + $0x10] sm:$0xf]
      %v3437 = vld [vmem:[%s10 + $0x14] sm:$0xf]
      %v3438 = vld [vmem:[%s10 + $0x18] sm:$0xf]
      %v3439 = vld [vmem:[%s10 + $0x1c] sm:$0xf]
      %v3440 = vld [vmem:[%s10 + $0x20] sm:$0xf]
      %v3441 = vld [vmem:[%s10 + $0x24] sm:$0xf]
      %v3442 = vld [vmem:[%s10 + $0x28] sm:$0xf]
      %v3443 = vld [vmem:[%s10 + $0x2c] sm:$0xf]
      %v3444 = vld [vmem:[%s10 + $0x30] sm:$0xf]
      %v3445 = vld [vmem:[%s10 + $0x34] sm:$0xf]
      %v3446 = vld [vmem:[%s10 + $0x38] sm:$0xf]
      %v3447 = vld [vmem:[%s10 + $0x3c] sm:$0xf]
      %v3448 = vld [vmem:[%s11] sm:$0x1]
      %v3450 = vperm.slane %v3448, 0
      %v3468 = vunpack.c.l.b16 %v3432
      %v3469 = vunpack.c.l.b16 %v3433
      %v3470 = vunpack.c.l.b16 %v3434
      %v3471 = vunpack.c.l.b16 %v3435
      %v3472 = vunpack.c.l.b16 %v3436
      %v3473 = vunpack.c.l.b16 %v3437
      %v3474 = vunpack.c.l.b16 %v3438
      %v3475 = vunpack.c.l.b16 %v3439
      %v3476 = vunpack.c.l.b16 %v3440
      %v3477 = vunpack.c.l.b16 %v3441
      %v3478 = vunpack.c.l.b16 %v3442
      %v3479 = vunpack.c.l.b16 %v3443
      %v3480 = vunpack.c.l.b16 %v3444
      %v3481 = vunpack.c.l.b16 %v3445
      %v3482 = vunpack.c.l.b16 %v3446
      %v3483 = vunpack.c.l.b16 %v3447
      %v3484 = vpack.c.b16 %v3469, %v3468
      %v3485 = vpack.c.b16 %v3471, %v3470
      %v3486 = vpack.c.b16 %v3473, %v3472
      %v3487 = vpack.c.b16 %v3475, %v3474
      %v3488 = vpack.c.b16 %v3477, %v3476
      %v3489 = vpack.c.b16 %v3479, %v3478
      %v3490 = vpack.c.b16 %v3481, %v3480
      %v3491 = vpack.c.b16 %v3483, %v3482
      %3500 = vmatpush.bf16.msra.mxu0 %v3491
      %3501 = vmatpush.bf16.msra.mxu0 %v3490
      %3502 = vmatpush.bf16.msra.mxu0 %v3489
      %3503 = vmatpush.bf16.msra.mxu0 %v3488
      %3504 = vmatpush.bf16.msra.mxu0 %v3487
      %3505 = vmatpush.bf16.msra.mxu0 %v3486
      %3506 = vmatpush.bf16.msra.mxu0 %v3485
      %3507 = vmatpush.bf16.msra.mxu0 %v3484
      %3508 = vmatmul.bf16.gmra.mxu0 %v3430
      %v3509 = vpop.f32.mrf.mxu0
      %v3510 = vadd.f32 %v3450, %v3509
      %v3511 = vpop.f32.mrf.mxu0
      %v3512 = vadd.f32 %v3450, %v3511
      %3513 = vmatmul.bf16.gmra.mxu0 %v3431
      %v3514 = vpop.f32.mrf.mxu0
      %v3515 = vadd.f32 %v3450, %v3514
      %v3516 = vpop.f32.mrf.mxu0
      %v3517 = vadd.f32 %v3450, %v3516
      %3518 = vdwg.mxu0
      %v3519 = vmax.f32 %v3510, 0.0
      %v3520 = vmax.f32 %v3512, 0.0
      %v3521 = vmax.f32 %v3515, 0.0
      %v3522 = vmax.f32 %v3517, 0.0
      %v3523 = vpack.c.bf16 %v3520, %v3519
      %v3524 = vpack.c.bf16 %v3522, %v3521
      %v3525 = vld [vmem:[%s12] sm:$0xf]
      %v3526 = vld [vmem:[%s12 + $0x4] sm:$0xf]
      %v3527 = vld [vmem:[%s12 + $0x8] sm:$0xf]
      %v3528 = vld [vmem:[%s12 + $0xc] sm:$0xf]
      %v3529 = vld [vmem:[%s12 + $0x10] sm:$0xf]
      %v3530 = vld [vmem:[%s12 + $0x14] sm:$0xf]
      %v3531 = vld [vmem:[%s12 + $0x18] sm:$0xf]
      %v3532 = vld [vmem:[%s12 + $0x1c] sm:$0xf]
      %v3533 = vld [vmem:[%s12 + $0x20] sm:$0xf]
      %v3534 = vld [vmem:[%s12 + $0x24] sm:$0xf]
      %v3535 = vld [vmem:[%s12 + $0x28] sm:$0xf]
      %v3536 = vld [vmem:[%s12 + $0x2c] sm:$0xf]
      %v3537 = vld [vmem:[%s12 + $0x30] sm:$0xf]
      %v3538 = vld [vmem:[%s12 + $0x34] sm:$0xf]
      %v3539 = vld [vmem:[%s12 + $0x38] sm:$0xf]
      %v3540 = vld [vmem:[%s12 + $0x3c] sm:$0xf]
      %v3541 = vld [vmem:[%s13] sm:$0x1]
      %v3543 = vperm.slane %v3541, 0
      %v3561 = vunpack.c.l.b16 %v3525
      %v3562 = vunpack.c.l.b16 %v3526
      %v3563 = vunpack.c.l.b16 %v3527
      %v3564 = vunpack.c.l.b16 %v3528
      %v3565 = vunpack.c.l.b16 %v3529
      %v3566 = vunpack.c.l.b16 %v3530
      %v3567 = vunpack.c.l.b16 %v3531
      %v3568 = vunpack.c.l.b16 %v3532
      %v3569 = vunpack.c.l.b16 %v3533
      %v3570 = vunpack.c.l.b16 %v3534
      %v3571 = vunpack.c.l.b16 %v3535
      %v3572 = vunpack.c.l.b16 %v3536
      %v3573 = vunpack.c.l.b16 %v3537
      %v3574 = vunpack.c.l.b16 %v3538
      %v3575 = vunpack.c.l.b16 %v3539
      %v3576 = vunpack.c.l.b16 %v3540
      %v3577 = vpack.c.b16 %v3562, %v3561
      %v3578 = vpack.c.b16 %v3564, %v3563
      %v3579 = vpack.c.b16 %v3566, %v3565
      %v3580 = vpack.c.b16 %v3568, %v3567
      %v3581 = vpack.c.b16 %v3570, %v3569
      %v3582 = vpack.c.b16 %v3572, %v3571
      %v3583 = vpack.c.b16 %v3574, %v3573
      %v3584 = vpack.c.b16 %v3576, %v3575
      %3593 = vmatpush.bf16.msra.mxu0 %v3584
      %3594 = vmatpush.bf16.msra.mxu0 %v3583
      %3595 = vmatpush.bf16.msra.mxu0 %v3582
      %3596 = vmatpush.bf16.msra.mxu0 %v3581
      %3597 = vmatpush.bf16.msra.mxu0 %v3580
      %3598 = vmatpush.bf16.msra.mxu0 %v3579
      %3599 = vmatpush.bf16.msra.mxu0 %v3578
      %3600 = vmatpush.bf16.msra.mxu0 %v3577
      %3601 = vmatmul.bf16.gmra.mxu0 %v3523
      %v3602 = vpop.f32.mrf.mxu0
      %v3603 = vadd.f32 %v3543, %v3602
      %v3604 = vpop.f32.mrf.mxu0
      %v3605 = vadd.f32 %v3543, %v3604
      %3606 = vmatmul.bf16.gmra.mxu0 %v3524
      %v3607 = vpop.f32.mrf.mxu0
      %v3608 = vadd.f32 %v3543, %v3607
      %v3609 = vpop.f32.mrf.mxu0
      %v3610 = vadd.f32 %v3543, %v3609
      %3611 = vdwg.mxu0
      %v3612 = vmax.f32 %v3603, 0.0
      %v3613 = vmax.f32 %v3605, 0.0
      %v3614 = vmax.f32 %v3608, 0.0
      %v3615 = vmax.f32 %v3610, 0.0
      %v3616 = vpack.c.bf16 %v3613, %v3612
      %v3617 = vpack.c.bf16 %v3615, %v3614
      %v3618 = vld [vmem:[%s14] sm:$0xf]
      %v3619 = vld [vmem:[%s14 + $0x4] sm:$0xf]
      %v3620 = vld [vmem:[%s14 + $0x8] sm:$0xf]
      %v3621 = vld [vmem:[%s14 + $0xc] sm:$0xf]
      %v3622 = vld [vmem:[%s14 + $0x10] sm:$0xf]
      %v3623 = vld [vmem:[%s14 + $0x14] sm:$0xf]
      %v3624 = vld [vmem:[%s14 + $0x18] sm:$0xf]
      %v3625 = vld [vmem:[%s14 + $0x1c] sm:$0xf]
      %v3626 = vld [vmem:[%s14 + $0x20] sm:$0xf]
      %v3627 = vld [vmem:[%s14 + $0x24] sm:$0xf]
      %v3628 = vld [vmem:[%s14 + $0x28] sm:$0xf]
      %v3629 = vld [vmem:[%s14 + $0x2c] sm:$0xf]
      %v3630 = vld [vmem:[%s14 + $0x30] sm:$0xf]
      %v3631 = vld [vmem:[%s14 + $0x34] sm:$0xf]
      %v3632 = vld [vmem:[%s14 + $0x38] sm:$0xf]
      %v3633 = vld [vmem:[%s14 + $0x3c] sm:$0xf]
      %v3634 = vld [vmem:[%s15] sm:$0x1]
      %v3636 = vperm.slane %v3634, 0
      %v3654 = vunpack.c.l.b16 %v3618
      %v3655 = vunpack.c.l.b16 %v3619
      %v3656 = vunpack.c.l.b16 %v3620
      %v3657 = vunpack.c.l.b16 %v3621
      %v3658 = vunpack.c.l.b16 %v3622
      %v3659 = vunpack.c.l.b16 %v3623
      %v3660 = vunpack.c.l.b16 %v3624
      %v3661 = vunpack.c.l.b16 %v3625
      %v3662 = vunpack.c.l.b16 %v3626
      %v3663 = vunpack.c.l.b16 %v3627
      %v3664 = vunpack.c.l.b16 %v3628
      %v3665 = vunpack.c.l.b16 %v3629
      %v3666 = vunpack.c.l.b16 %v3630
      %v3667 = vunpack.c.l.b16 %v3631
      %v3668 = vunpack.c.l.b16 %v3632
      %v3669 = vunpack.c.l.b16 %v3633
      %v3670 = vpack.c.b16 %v3655, %v3654
      %v3671 = vpack.c.b16 %v3657, %v3656
      %v3672 = vpack.c.b16 %v3659, %v3658
      %v3673 = vpack.c.b16 %v3661, %v3660
      %v3674 = vpack.c.b16 %v3663, %v3662
      %v3675 = vpack.c.b16 %v3665, %v3664
      %v3676 = vpack.c.b16 %v3667, %v3666
      %v3677 = vpack.c.b16 %v3669, %v3668
      %3686 = vmatpush.bf16.msra.mxu0 %v3677
      %3687 = vmatpush.bf16.msra.mxu0 %v3676
      %3688 = vmatpush.bf16.msra.mxu0 %v3675
      %3689 = vmatpush.bf16.msra.mxu0 %v3674
      %3690 = vmatpush.bf16.msra.mxu0 %v3673
      %3691 = vmatpush.bf16.msra.mxu0 %v3672
      %3692 = vmatpush.bf16.msra.mxu0 %v3671
      %3693 = vmatpush.bf16.msra.mxu0 %v3670
      %3694 = vmatmul.bf16.gmra.mxu0 %v3616
      %v3695 = vpop.f32.mrf.mxu0
      %v3696 = vadd.f32 %v3636, %v3695
      %v3697 = vpop.f32.mrf.mxu0
      %v3698 = vadd.f32 %v3636, %v3697
      %3699 = vmatmul.bf16.gmra.mxu0 %v3617
      %v3700 = vpop.f32.mrf.mxu0
      %v3701 = vadd.f32 %v3636, %v3700
      %v3702 = vpop.f32.mrf.mxu0
      %v3703 = vadd.f32 %v3636, %v3702
      %3704 = vdwg.mxu0
      %v3705 = vadd.f32 %v3387, %v3696
      %v3706 = vadd.f32 %v3388, %v3698
      %v3707 = vadd.f32 %v3389, %v3701
      %v3708 = vadd.f32 %v3390, %v3703
      %3709 = vst.msk [vmem:[%s545] sm:$0xff] %vm758, %v3705
      %3710 = vst.msk [vmem:[%s545 + $0x8] sm:$0xff] %vm758, %v3706
      %3711 = vst.msk [vmem:[%s545 + $0x10] sm:$0xff] %vm758, %v3707
      %3712 = vst.msk [vmem:[%s545 + $0x18] sm:$0xff] %vm758, %v3708
      %s3713 = smul.u32 4, %s27
      %p3714 = scmp.lt.s32.totalorder %s3713, 7
      %s3715 = scalar_select %p3714, %s3713, 7
      %s3716 = smul.addr %s3715, 8
      %s3717 = scalar_lea.vmem %s16, %s3716
      // Predicated region
      $region85: #{tpu_custom_call.1} parent=83 // pred_check
        %p3718 = pneg %p391
      $region86: #{tpu_custom_call.1} parent=83 // pred_check_branch
        %3720 = sbr.rel (%p3718) target = $region88
      $region87: #{tpu_custom_call.1} parent=83 // pred_region
        %s3721 = smul.u32 4, %s27
      $region88: #{tpu_custom_call.1} parent=83 // pred_fallthru
        _
    $region84: #{tpu_custom_call.1} parent=5 // pred_fallthru
      _
    %p3722 = scmp.le.s32.totalorder 2, %s22
    // Predicated region
    $region89: #{tpu_custom_call.1} parent=5 // pred_check
      %p3723 = pneg %p3722
    $region90: #{tpu_custom_call.1} parent=5 // pred_check_branch
      %3725 = sbr.rel (%p3723) target = $region92
    $region91: #{tpu_custom_call.1} parent=5 // pred_region
      %s3726 = ssub.s32 %s22, 2
      // Predicated region
      $region93: #{tpu_custom_call.1} parent=91 // pred_check
        %p3727 = pneg %p397
      $region94: #{tpu_custom_call.1} parent=91 // pred_check_branch
        %3729 = sbr.rel (%p3727) target = $region96
      $region95: #{tpu_custom_call.1} parent=91 // pred_region
        %s3730 = smul.u32 4, %s28
        %p3731 = scmp.lt.s32.totalorder %s3730, 7
        %s3732 = scalar_select %p3731, %s3730, 7
        %s3733 = smul.addr %s3732, 8
        %s3734 = scalar_lea.vmem %s16, %s3733
      $region96: #{tpu_custom_call.1} parent=91 // pred_fallthru
        _
    $region92: #{tpu_custom_call.1} parent=5 // pred_fallthru
      _
  $region6: #{tpu_custom_call.1} parent=0 // loop_footer
    %s26 = sadd.s32 1, %s22
  $region7: #{tpu_custom_call.1} parent=0 // loop_footer_branch
    %21 = sbr.rel target = $region3
  $region8: #{tpu_custom_call.1} parent=0 // loop_exit
    _

</llo_original>
